<compile_context>
chip_gen: v5e
topology: v5e:2x2
jax: 0.10.0
libtpu: 0.0.40
codegen_flags: <defaults>
</compile_context>

<pallas_src>
import functools

import jax
import jax.numpy as jnp
from jax.experimental import pallas as pl
from jax.experimental.pallas import tpu as pltpu

NEG_CLAMP = -50000.0
POS_CLAMP = 50000.0


def _max11(x):
    # Full (R, C) -> (1, 1) reduction kept 2-D: lane reduce then sublane reduce.
    return jnp.max(jnp.max(x, axis=1, keepdims=True), axis=0, keepdims=True)


def _vmem_budget(block_bytes, headroom=16 << 20):
    # Double-buffered block DMAs + generous headroom for compiler temporaries.
    return int(sum(2 * int(b) for b in block_bytes) + headroom)


# --------------------------------------------------------------------------- #
# Call 1: Q/K projections + per-batch score max (batch-parallel)              #
# --------------------------------------------------------------------------- #
def _qk_max_kernel(v_ref, l_ref, wq_ref, bq_ref, wk_ref, bk_ref,
                   q_out_ref, k_out_ref, max_ref,
                   *, num_heads: int, head_dim: int, scale: float):
    v = v_ref[0].astype(jnp.bfloat16)       # (tgt, v_dim)
    l = l_ref[0].astype(jnp.bfloat16)       # (src, l_dim)

    # bf16 operands, f32 accumulation; bias + scale in f32, then cache as bf16.
    q = jnp.dot(v, wq_ref[...], preferred_element_type=jnp.float32) + bq_ref[...]
    q = (q * scale).astype(jnp.bfloat16)                          # (tgt, E)
    k = (jnp.dot(l, wk_ref[...], preferred_element_type=jnp.float32)
         + bk_ref[...]).astype(jnp.bfloat16)                      # (src, E)

    q_out_ref[0] = q
    k_out_ref[0] = k

    # Per-batch max over all heads / positions of the (bf16-operand) scores.
    m = None
    for h in range(num_heads):
        sl = slice(h * head_dim, (h + 1) * head_dim)
        s = jnp.einsum("td,sd->ts", q[:, sl], k[:, sl],
                       preferred_element_type=jnp.float32)
        hm = _max11(s)
        m = hm if m is None else jnp.maximum(m, hm)
    max_ref[0] = jnp.broadcast_to(m, max_ref.shape[1:])


# --------------------------------------------------------------------------- #
# Call 2: attention pass (batch-parallel)                                     #
# --------------------------------------------------------------------------- #
def _attention_kernel(v_ref, l_ref, q_ref, k_ref, gmax_ref,
                      wvv_ref, bvv_ref, wvl_ref, bvl_ref,
                      wov_ref, bov_ref, wol_ref, bol_ref,
                      out_v_ref, out_l_ref,
                      *, num_heads: int, head_dim: int):
    v = v_ref[0].astype(jnp.bfloat16)       # (tgt, v_dim)
    l = l_ref[0].astype(jnp.bfloat16)       # (src, l_dim)
    q = q_ref[0]                            # (tgt, E) bf16, already scaled
    k = k_ref[0]                            # (src, E) bf16
    gmax = gmax_ref[...]                    # (1, 1) f32 global max
    # TODO(synk): keep gmax in SMEM (scalar path) instead of a (1,1) VMEM tile.

    vv = (jnp.dot(v, wvv_ref[...], preferred_element_type=jnp.float32)
          + bvv_ref[...]).astype(jnp.bfloat16)                    # (tgt, E)
    vl = (jnp.dot(l, wvl_ref[...], preferred_element_type=jnp.float32)
          + bvl_ref[...]).astype(jnp.bfloat16)                    # (src, E)

    o_v_heads = []                          # num_heads x (tgt, head_dim) f32
    o_l_heads = []                          # num_heads x (src, head_dim) f32
    for h in range(num_heads):
        sl = slice(h * head_dim, (h + 1) * head_dim)
        # Scores from the cached bf16 q/k -> identical to the values that
        # produced the global max in call 1.
        s = jnp.einsum("td,sd->ts", q[:, sl], k[:, sl],
                       preferred_element_type=jnp.float32)        # (tgt, src)
        aw = jnp.clip(s - gmax, NEG_CLAMP, POS_CLAMP)             # stable_softmax_2d + clamps

        # v attends to l: softmax over src (last axis).
        m_v = jnp.max(aw, axis=-1, keepdims=True)
        e_v = jnp.exp(aw - m_v)
        inv_v = pl.reciprocal(jnp.sum(e_v, axis=-1, keepdims=True), approx=True)
        p_v = (e_v * inv_v).astype(jnp.bfloat16)                  # (tgt, src)

        # l attends to v: transpose, re-stabilize over tgt, clamp, softmax.
        aw_t = aw.T                                               # (src, tgt)
        aw_l = jnp.clip(aw_t - jnp.max(aw_t, axis=-1, keepdims=True),
                        NEG_CLAMP, POS_CLAMP)
        e_l = jnp.exp(aw_l)
        inv_l = pl.reciprocal(jnp.sum(e_l, axis=-1, keepdims=True), approx=True)
        p_l = (e_l * inv_l).astype(jnp.bfloat16)                  # (src, tgt)

        # TODO(synk): attention_mask_v / attention_mask_l (masked_fill -inf) and
        # training-mode dropout are not implemented (inference path, masks=None).

        o_v_heads.append(jnp.dot(p_v, vl[:, sl], preferred_element_type=jnp.float32))
        o_l_heads.append(jnp.dot(p_l, vv[:, sl], preferred_element_type=jnp.float32))

    # Concat over heads -> ONE full-depth (seq, E) @ (E, dim) out-projection per
    # direction (fills the MXU contraction depth; no per-head accumulator adds).
    o_v = jnp.concatenate(o_v_heads, axis=-1).astype(jnp.bfloat16)  # (tgt, E)
    o_l = jnp.concatenate(o_l_heads, axis=-1).astype(jnp.bfloat16)  # (src, E)

    out_v = jnp.dot(o_v, wov_ref[...], preferred_element_type=jnp.float32) + bov_ref[...]
    out_l = jnp.dot(o_l, wol_ref[...], preferred_element_type=jnp.float32) + bol_ref[...]
    out_v_ref[0] = out_v.astype(out_v_ref.dtype)
    out_l_ref[0] = out_l.astype(out_l_ref.dtype)


# --------------------------------------------------------------------------- #
# Wrapper                                                                     #
# --------------------------------------------------------------------------- #
def bi_multi_head_attention_forward(v, l, params, *, num_heads):
    """v: (B, tgt, v_dim), l: (B, src, l_dim) -> (out_v, out_l)."""
    B, tgt, v_dim = v.shape
    B_l, src, l_dim = l.shape
    assert B == B_l
    E = params["wq"].shape[1]
    hd = E // num_heads
    scale = float(hd) ** -0.5
    bf16, f32 = jnp.bfloat16, jnp.float32

    # Cast weight matrices to bf16 once (outside the kernels): MXU operands are
    # bf16 and weight HBM/VMEM traffic halves.  Biases stay f32.
    wq, wk = params["wq"].astype(bf16), params["wk"].astype(bf16)
    wvv, wvl = params["wvv"].astype(bf16), params["wvl"].astype(bf16)
    wov, wol = params["wov"].astype(bf16), params["wol"].astype(bf16)
    bq, bk = params["bq"], params["bk"]
    bvv, bvl = params["bvv"], params["bvl"]
    bov, bol = params["bov"], params["bol"]

    def fixed(shape):
        # Whole-array block, constant index -> stays VMEM-resident across the grid.
        return pl.BlockSpec(shape, lambda b, *_: (0,) * len(shape))

    def batched(shape):
        return pl.BlockSpec(shape, lambda b, *_: (b,) + (0,) * (len(shape) - 1))

    # ---------------- Call 1: Q/K projections + per-batch score max ----------
    flops1 = B * (2 * tgt * v_dim * E + 2 * src * l_dim * E + 2 * tgt * src * E)
    bytes1 = (B * tgt * v_dim * 4 + B * src * l_dim * 4
              + (v_dim + l_dim) * E * 2 + 2 * E * 4
              + B * (tgt + src) * E * 2 + B * 8 * 128 * 4)
    blocks1 = [tgt * v_dim * 4, src * l_dim * 4,
               v_dim * E * 2, E * 4, l_dim * E * 2, E * 4,
               tgt * E * 2, src * E * 2, 8 * 128 * 4]

    q_bf, k_bf, maxes = pl.pallas_call(
        functools.partial(_qk_max_kernel, num_heads=num_heads, head_dim=hd, scale=scale),
        grid_spec=pltpu.PrefetchScalarGridSpec(
            num_scalar_prefetch=0,
            grid=(B,),
            in_specs=[
                batched((1, tgt, v_dim)),
                batched((1, src, l_dim)),
                fixed((v_dim, E)), fixed((1, E)),      # v_proj (query)
                fixed((l_dim, E)), fixed((1, E)),      # l_proj (key)
            ],
            out_specs=[
                batched((1, tgt, E)),                  # cached bf16 Q (scaled)
                batched((1, src, E)),                  # cached bf16 K
                batched((1, 8, 128)),                  # per-batch score max (broadcast)
            ],
        ),
        out_shape=[
            jax.ShapeDtypeStruct((B, tgt, E), bf16),
            jax.ShapeDtypeStruct((B, src, E), bf16),
            jax.ShapeDtypeStruct((B, 8, 128), f32),
        ],
        compiler_params=pltpu.CompilerParams(
            dimension_semantics=("parallel",),
            vmem_limit_bytes=_vmem_budget(blocks1),
        ),
        cost_estimate=pl.CostEstimate(
            flops=int(flops1), transcendentals=0, bytes_accessed=int(bytes1)),
    )(v, l, wq, bq, wk, bk)

    # Global max over all (batch, head, tgt, src): the stable_softmax_2d coupling.
    gmax = jnp.max(maxes).reshape(1, 1)

    # ---------------- Call 2: attention pass ---------------------------------
    flops2 = B * (2 * tgt * v_dim * E + 2 * src * l_dim * E            # vv / vl proj
                  + 2 * tgt * src * E                                  # scores
                  + 2 * tgt * src * E + 2 * src * tgt * E              # p @ V (both dirs)
                  + 2 * tgt * E * v_dim + 2 * src * E * l_dim)         # out projections
    trans2 = B * num_heads * 2 * tgt * src                             # exp count
    bytes2 = (B * tgt * v_dim * 4 + B * src * l_dim * 4
              + B * (tgt + src) * E * 2
              + (v_dim * E + l_dim * E + E * v_dim + E * l_dim) * 2
              + (2 * E + v_dim + l_dim) * 4 + 4
              + B * tgt * v_dim * 4 + B * src * l_dim * 4)
    blocks2 = [tgt * v_dim * 4, src * l_dim * 4, tgt * E * 2, src * E * 2, 4,
               v_dim * E * 2, E * 4, l_dim * E * 2, E * 4,
               E * v_dim * 2, v_dim * 4, E * l_dim * 2, l_dim * 4,
               tgt * v_dim * 4, src * l_dim * 4]

    # TODO(synk): for production GLIP-scale tgt (image tokens), add a tgt tile
    # axis to this grid instead of whole-sequence blocks (v7x has 64 MiB VMEM).
    out_v, out_l = pl.pallas_call(
        functools.partial(_attention_kernel, num_heads=num_heads, head_dim=hd),
        grid_spec=pltpu.PrefetchScalarGridSpec(
            num_scalar_prefetch=0,
            grid=(B,),
            in_specs=[
                batched((1, tgt, v_dim)),
                batched((1, src, l_dim)),
                batched((1, tgt, E)),                  # cached bf16 Q
                batched((1, src, E)),                  # cached bf16 K
                fixed((1, 1)),                         # global max
                fixed((v_dim, E)), fixed((1, E)),      # values_v_proj
                fixed((l_dim, E)), fixed((1, E)),      # values_l_proj
                fixed((E, v_dim)), fixed((1, v_dim)),  # out_v_proj
                fixed((E, l_dim)), fixed((1, l_dim)),  # out_l_proj
            ],
            out_specs=[
                batched((1, tgt, v_dim)),
                batched((1, src, l_dim)),
            ],
        ),
        out_shape=[
            jax.ShapeDtypeStruct((B, tgt, v_dim), v.dtype),
            jax.ShapeDtypeStruct((B, src, l_dim), l.dtype),
        ],
        compiler_params=pltpu.CompilerParams(
            dimension_semantics=("parallel",),
            vmem_limit_bytes=_vmem_budget(blocks2),
        ),
        cost_estimate=pl.CostEstimate(
            flops=int(flops2), transcendentals=int(trans2), bytes_accessed=int(bytes2)),
    )(v, l, q_bf, k_bf, gmax, wvv, bvv, wvl, bvl, wov, bov, wol, bol)

    return out_v, out_l


class BiMultiHeadAttention:
    """JAX/Pallas port of the PyTorch BiMultiHeadAttention forward pass (inference)."""

    def __init__(self, v_dim, l_dim, embed_dim, num_heads, dropout=0.1, key=None):
        assert embed_dim % num_heads == 0
        self.v_dim, self.l_dim = v_dim, l_dim
        self.embed_dim, self.num_heads = embed_dim, num_heads
        self.head_dim = embed_dim // num_heads
        self.scale = self.head_dim ** -0.5
        self.dropout = dropout  # inference: identity. TODO(synk): training-mode dropout.

        key = jax.random.PRNGKey(0) if key is None else key

        def xavier(k, n_in, n_out):
            bound = (6.0 / (n_in + n_out)) ** 0.5
            return jax.random.uniform(k, (n_in, n_out), jnp.float32, -bound, bound)

        ks = jax.random.split(key, 12)
        # Weights stored [in, out]. PyTorch zero-inits biases; small random biases
        # are used here so the bias path is exercised by the numeric check.
        self.params = dict(
            wq=xavier(ks[0], v_dim, embed_dim),
            bq=0.02 * jax.random.normal(ks[1], (1, embed_dim), jnp.float32),
            wk=xavier(ks[2], l_dim, embed_dim),
            bk=0.02 * jax.random.normal(ks[3], (1, embed_dim), jnp.float32),
            wvv=xavier(ks[4], v_dim, embed_dim),
            bvv=0.02 * jax.random.normal(ks[5], (1, embed_dim), jnp.float32),
            wvl=xavier(ks[6], l_dim, embed_dim),
            bvl=0.02 * jax.random.normal(ks[7], (1, embed_dim), jnp.float32),
            wov=xavier(ks[8], embed_dim, v_dim),
            bov=0.02 * jax.random.normal(ks[9], (1, v_dim), jnp.float32),
            wol=xavier(ks[10], embed_dim, l_dim),
            bol=0.02 * jax.random.normal(ks[11], (1, l_dim), jnp.float32),
        )
        self._fwd = jax.jit(functools.partial(
            bi_multi_head_attention_forward, num_heads=num_heads))

    def __call__(self, v, l, attention_mask_v=None, attention_mask_l=None):
        if attention_mask_v is not None or attention_mask_l is not None:
            # TODO(synk): additive -inf masking of the attention weights not implemented.
            raise NotImplementedError("attention masks not supported in this kernel")
        return self._fwd(v, l, self.params)


def _reference_forward(v, l, params, num_heads):
    """Pure-JAX f32 replica of the PyTorch forward (eval mode, no masks)."""
    hi = jax.lax.Precision.HIGHEST
    B, tgt, _ = v.shape
    _, src, _ = l.shape
    E = params["wq"].shape[1]
    hd = E // num_heads
    scale = float(hd) ** -0.5

    def lin(x, w, bias):
        return jnp.matmul(x, w, precision=hi) + bias

    q = lin(v, params["wq"], params["bq"]) * scale
    k = lin(l, params["wk"], params["bk"])
    vv = lin(v, params["wvv"], params["bvv"])
    vl = lin(l, params["wvl"], params["bvl"])

    def split_heads(x, L):
        return x.reshape(B, L, num_heads, hd).transpose(0, 2, 1, 3).reshape(B * num_heads, L, hd)

    qs, ks = split_heads(q, tgt), split_heads(k, src)
    vvs, vls = split_heads(vv, tgt), split_heads(vl, src)

    aw = jnp.matmul(qs, ks.transpose(0, 2, 1), precision=hi)       # (BH, tgt, src)
    aw = aw - jnp.max(aw)                                          # stable_softmax_2d
    aw = jnp.clip(aw, NEG_CLAMP, POS_CLAMP)
    aw_t = aw.transpose(0, 2, 1)
    aw_l = aw_t - jnp.max(aw_t, axis=-1, keepdims=True)
    aw_l = jnp.clip(aw_l, NEG_CLAMP, POS_CLAMP)
    p_l = jax.nn.softmax(aw_l, axis=-1)
    p_v = jax.nn.softmax(aw, axis=-1)

    o_v = jnp.matmul(p_v, vls, precision=hi)                       # (BH, tgt, hd)
    o_l = jnp.matmul(p_l, vvs, precision=hi)                       # (BH, src, hd)
    o_v = o_v.reshape(B, num_heads, tgt, hd).transpose(0, 2, 1, 3).reshape(B, tgt, E)
    o_l = o_l.reshape(B, num_heads, src, hd).transpose(0, 2, 1, 3).reshape(B, src, E)

    out_v = lin(o_v, params["wov"], params["bov"])
    out_l = lin(o_l, params["wol"], params["bol"])
    return out_v, out_l


if __name__ == "__main__":
    key = jax.random.PRNGKey(0)
    k_v, k_l, k_p = jax.random.split(key, 3)

    # Small but lane-dense shapes (every feature / seq dim is a multiple of 128).
    bsz, n_img, n_text = 2, 128, 128
    v_dim = l_dim = embed_dim = 128
    num_heads = 4

    v = jax.random.normal(k_v, (bsz, n_img, v_dim), jnp.float32)
    l = jax.random.normal(k_l, (bsz, n_text, l_dim), jnp.float32)

    mha = BiMultiHeadAttention(v_dim, l_dim, embed_dim, num_heads, dropout=0.1, key=k_p)

    out_v, out_l = jax.block_until_ready(mha(v, l))

    ref_v, ref_l = _reference_forward(v, l, mha.params, num_heads)

    assert out_v.shape == (bsz, n_img, v_dim)
    assert out_l.shape == (bsz, n_text, l_dim)
    # Tolerance accounts for bf16 MXU operands (f32 accumulation) vs the f32 reference.
    assert jnp.allclose(out_v, ref_v, atol=2e-2, rtol=2e-2), \
        float(jnp.max(jnp.abs(out_v - ref_v)))
    assert jnp.allclose(out_l, ref_l, atol=2e-2, rtol=2e-2), \
        float(jnp.max(jnp.abs(out_l - ref_l)))

    print("KERNEL_OK")
</pallas_src>

<mosaic_0001>
module attributes {stable_mosaic.version = 11 : i64} {
  func.func @_attention_kernel(%arg0: i32, %arg1: memref<1x128x128xf32, #tpu.memory_space<vmem>>, %arg2: memref<1x128x128xf32, #tpu.memory_space<vmem>>, %arg3: memref<1x128x128xbf16, #tpu.memory_space<vmem>>, %arg4: memref<1x128x128xbf16, #tpu.memory_space<vmem>>, %arg5: memref<1x1xf32, #tpu.memory_space<vmem>>, %arg6: memref<128x128xbf16, #tpu.memory_space<vmem>>, %arg7: memref<1x128xf32, #tpu.memory_space<vmem>>, %arg8: memref<128x128xbf16, #tpu.memory_space<vmem>>, %arg9: memref<1x128xf32, #tpu.memory_space<vmem>>, %arg10: memref<128x128xbf16, #tpu.memory_space<vmem>>, %arg11: memref<1x128xf32, #tpu.memory_space<vmem>>, %arg12: memref<128x128xbf16, #tpu.memory_space<vmem>>, %arg13: memref<1x128xf32, #tpu.memory_space<vmem>>, %arg14: memref<1x128x128xf32, #tpu.memory_space<vmem>>, %arg15: memref<1x128x128xf32, #tpu.memory_space<vmem>>) attributes {dimension_semantics = [#tpu.dimension_semantics<parallel>], iteration_bounds = array<i64: 2>, scalar_prefetch = 0 : i64, scratch_operands = 0 : i64, tpu.core_type = #tpu.core_type<tc>, window_params = [{transform_indices = @transform_0, window_bounds = array<i64: 1, 128, 128>}, {transform_indices = @transform_1, window_bounds = array<i64: 1, 128, 128>}, {transform_indices = @transform_2, window_bounds = array<i64: 1, 128, 128>}, {transform_indices = @transform_3, window_bounds = array<i64: 1, 128, 128>}, {pipeline_mode = #tpu.pipeline_mode<synchronous>, transform_indices = @transform_4, window_bounds = array<i64: 1, 1>}, {pipeline_mode = #tpu.pipeline_mode<synchronous>, transform_indices = @transform_5, window_bounds = array<i64: 128, 128>}, {pipeline_mode = #tpu.pipeline_mode<synchronous>, transform_indices = @transform_6, window_bounds = array<i64: 1, 128>}, {pipeline_mode = #tpu.pipeline_mode<synchronous>, transform_indices = @transform_7, window_bounds = array<i64: 128, 128>}, {pipeline_mode = #tpu.pipeline_mode<synchronous>, transform_indices = @transform_8, window_bounds = array<i64: 1, 128>}, {pipeline_mode = #tpu.pipeline_mode<synchronous>, transform_indices = @transform_9, window_bounds = array<i64: 128, 128>}, {pipeline_mode = #tpu.pipeline_mode<synchronous>, transform_indices = @transform_10, window_bounds = array<i64: 1, 128>}, {pipeline_mode = #tpu.pipeline_mode<synchronous>, transform_indices = @transform_11, window_bounds = array<i64: 128, 128>}, {pipeline_mode = #tpu.pipeline_mode<synchronous>, transform_indices = @transform_12, window_bounds = array<i64: 1, 128>}, {transform_indices = @transform_13, window_bounds = array<i64: 1, 128, 128>}, {transform_indices = @transform_14, window_bounds = array<i64: 1, 128, 128>}]} {
    %c0 = arith.constant 0 : index
    %c0_0 = arith.constant 0 : index
    %c0_1 = arith.constant 0 : index
    %0 = vector.load %arg1[%c0, %c0_0, %c0_1] : memref<1x128x128xf32, #tpu.memory_space<vmem>>, vector<1x128x128xf32>
    %1 = vector.shape_cast %0 : vector<1x128x128xf32> to vector<128x128xf32>
    %2 = arith.truncf %1 : vector<128x128xf32> to vector<128x128xbf16>
    %c0_2 = arith.constant 0 : index
    %c0_3 = arith.constant 0 : index
    %c0_4 = arith.constant 0 : index
    %3 = vector.load %arg2[%c0_2, %c0_3, %c0_4] : memref<1x128x128xf32, #tpu.memory_space<vmem>>, vector<1x128x128xf32>
    %4 = vector.shape_cast %3 : vector<1x128x128xf32> to vector<128x128xf32>
    %5 = arith.truncf %4 : vector<128x128xf32> to vector<128x128xbf16>
    %c0_5 = arith.constant 0 : index
    %c0_6 = arith.constant 0 : index
    %c0_7 = arith.constant 0 : index
    %6 = vector.load %arg3[%c0_5, %c0_6, %c0_7] : memref<1x128x128xbf16, #tpu.memory_space<vmem>>, vector<1x128x128xbf16>
    %7 = vector.shape_cast %6 : vector<1x128x128xbf16> to vector<128x128xbf16>
    %c0_8 = arith.constant 0 : index
    %c0_9 = arith.constant 0 : index
    %c0_10 = arith.constant 0 : index
    %8 = vector.load %arg4[%c0_8, %c0_9, %c0_10] : memref<1x128x128xbf16, #tpu.memory_space<vmem>>, vector<1x128x128xbf16>
    %9 = vector.shape_cast %8 : vector<1x128x128xbf16> to vector<128x128xbf16>
    %c0_11 = arith.constant 0 : index
    %c0_12 = arith.constant 0 : index
    %10 = vector.load %arg5[%c0_11, %c0_12] : memref<1x1xf32, #tpu.memory_space<vmem>>, vector<1x1xf32>
    %c0_13 = arith.constant 0 : index
    %c0_14 = arith.constant 0 : index
    %11 = vector.load %arg6[%c0_13, %c0_14] : memref<128x128xbf16, #tpu.memory_space<vmem>>, vector<128x128xbf16>
    %cst = arith.constant dense<0.000000e+00> : vector<128x128xf32>
    %12 = tpu.matmul %2, %11, %cst {dimension_numbers = #tpu.dot_dimension_numbers<[1], [0], [0], [1], [0, 0, 1, 1], [], []>} : vector<128x128xbf16>, vector<128x128xbf16>, vector<128x128xf32> -> vector<128x128xf32>
    %c0_15 = arith.constant 0 : index
    %c0_16 = arith.constant 0 : index
    %13 = vector.load %arg7[%c0_15, %c0_16] : memref<1x128xf32, #tpu.memory_space<vmem>>, vector<1x128xf32>
    %14 = vector.broadcast %13 : vector<1x128xf32> to vector<128x128xf32>
    %15 = arith.addf %12, %14 : vector<128x128xf32>
    %16 = arith.truncf %15 : vector<128x128xf32> to vector<128x128xbf16>
    %c0_17 = arith.constant 0 : index
    %c0_18 = arith.constant 0 : index
    %17 = vector.load %arg8[%c0_17, %c0_18] : memref<128x128xbf16, #tpu.memory_space<vmem>>, vector<128x128xbf16>
    %cst_19 = arith.constant dense<0.000000e+00> : vector<128x128xf32>
    %18 = tpu.matmul %5, %17, %cst_19 {dimension_numbers = #tpu.dot_dimension_numbers<[1], [0], [0], [1], [0, 0, 1, 1], [], []>} : vector<128x128xbf16>, vector<128x128xbf16>, vector<128x128xf32> -> vector<128x128xf32>
    %c0_20 = arith.constant 0 : index
    %c0_21 = arith.constant 0 : index
    %19 = vector.load %arg9[%c0_20, %c0_21] : memref<1x128xf32, #tpu.memory_space<vmem>>, vector<1x128xf32>
    %20 = vector.broadcast %19 : vector<1x128xf32> to vector<128x128xf32>
    %21 = arith.addf %18, %20 : vector<128x128xf32>
    %22 = arith.truncf %21 : vector<128x128xf32> to vector<128x128xbf16>
    %23 = vector.extract_strided_slice %7 {offsets = [0, 0], sizes = [128, 32], strides = [1, 1]} : vector<128x128xbf16> to vector<128x32xbf16>
    %24 = vector.extract_strided_slice %9 {offsets = [0, 0], sizes = [128, 32], strides = [1, 1]} : vector<128x128xbf16> to vector<128x32xbf16>
    "tpu.trace_start"() <{level = 10 : i32, message = "td,sd->ts"}> : () -> ()
    %cst_22 = arith.constant dense<0.000000e+00> : vector<128x128xf32>
    %25 = tpu.matmul %23, %24, %cst_22 {dimension_numbers = #tpu.dot_dimension_numbers<[1], [1], [0], [0], [0, 0, 1, 0], [], []>} : vector<128x32xbf16>, vector<128x32xbf16>, vector<128x128xf32> -> vector<128x128xf32>
    "tpu.trace_stop"() : () -> ()
    %26 = vector.broadcast %10 : vector<1x1xf32> to vector<128x128xf32>
    %27 = arith.subf %25, %26 : vector<128x128xf32>
    %cst_23 = arith.constant -5.000000e+04 : f32
    %cst_24 = arith.constant 5.000000e+04 : f32
    %28 = vector.broadcast %cst_23 : f32 to vector<128x128xf32>
    %29 = arith.maximumf %28, %27 : vector<128x128xf32>
    %30 = vector.broadcast %cst_24 : f32 to vector<128x128xf32>
    %31 = arith.minimumf %30, %29 : vector<128x128xf32>
    %cst_25 = arith.constant dense<0xFF800000> : vector<128xf32>
    %32 = vector.multi_reduction <maximumf>, %31, %cst_25 [1] : vector<128x128xf32> to vector<128xf32>
    %33 = vector.shape_cast %32 : vector<128xf32> to vector<128x1xf32>
    %34 = vector.broadcast %33 : vector<128x1xf32> to vector<128x128xf32>
    %35 = arith.subf %31, %34 : vector<128x128xf32>
    %36 = math.exp %35 : vector<128x128xf32>
    %cst_26 = arith.constant dense<0.000000e+00> : vector<128xf32>
    %37 = vector.multi_reduction <add>, %36, %cst_26 [1] : vector<128x128xf32> to vector<128xf32>
    %38 = vector.shape_cast %37 : vector<128xf32> to vector<128x1xf32>
    %39 = tpu.reciprocal %38 {approx = true} : vector<128x1xf32> -> vector<128x1xf32>
    %40 = vector.broadcast %39 : vector<128x1xf32> to vector<128x128xf32>
    %41 = arith.mulf %36, %40 : vector<128x128xf32>
    %42 = arith.truncf %41 : vector<128x128xf32> to vector<128x128xbf16>
    %43 = tpu.transpose %31, [1, 0] : vector<128x128xf32> -> vector<128x128xf32>
    %cst_27 = arith.constant dense<0xFF800000> : vector<128xf32>
    %44 = vector.multi_reduction <maximumf>, %43, %cst_27 [1] : vector<128x128xf32> to vector<128xf32>
    %45 = vector.shape_cast %44 : vector<128xf32> to vector<128x1xf32>
    %46 = vector.broadcast %45 : vector<128x1xf32> to vector<128x128xf32>
    %47 = arith.subf %43, %46 : vector<128x128xf32>
    %cst_28 = arith.constant -5.000000e+04 : f32
    %cst_29 = arith.constant 5.000000e+04 : f32
    %48 = vector.broadcast %cst_28 : f32 to vector<128x128xf32>
    %49 = arith.maximumf %48, %47 : vector<128x128xf32>
    %50 = vector.broadcast %cst_29 : f32 to vector<128x128xf32>
    %51 = arith.minimumf %50, %49 : vector<128x128xf32>
    %52 = math.exp %51 : vector<128x128xf32>
    %cst_30 = arith.constant dense<0.000000e+00> : vector<128xf32>
    %53 = vector.multi_reduction <add>, %52, %cst_30 [1] : vector<128x128xf32> to vector<128xf32>
    %54 = vector.shape_cast %53 : vector<128xf32> to vector<128x1xf32>
    %55 = tpu.reciprocal %54 {approx = true} : vector<128x1xf32> -> vector<128x1xf32>
    %56 = vector.broadcast %55 : vector<128x1xf32> to vector<128x128xf32>
    %57 = arith.mulf %52, %56 : vector<128x128xf32>
    %58 = arith.truncf %57 : vector<128x128xf32> to vector<128x128xbf16>
    %59 = vector.extract_strided_slice %22 {offsets = [0, 0], sizes = [128, 32], strides = [1, 1]} : vector<128x128xbf16> to vector<128x32xbf16>
    %cst_31 = arith.constant dense<0.000000e+00> : vector<128x32xf32>
    %60 = tpu.matmul %42, %59, %cst_31 {dimension_numbers = #tpu.dot_dimension_numbers<[1], [0], [0], [1], [0, 0, 1, 1], [], []>} : vector<128x128xbf16>, vector<128x32xbf16>, vector<128x32xf32> -> vector<128x32xf32>
    %61 = vector.extract_strided_slice %16 {offsets = [0, 0], sizes = [128, 32], strides = [1, 1]} : vector<128x128xbf16> to vector<128x32xbf16>
    %cst_32 = arith.constant dense<0.000000e+00> : vector<128x32xf32>
    %62 = tpu.matmul %58, %61, %cst_32 {dimension_numbers = #tpu.dot_dimension_numbers<[1], [0], [0], [1], [0, 0, 1, 1], [], []>} : vector<128x128xbf16>, vector<128x32xbf16>, vector<128x32xf32> -> vector<128x32xf32>
    %63 = vector.extract_strided_slice %7 {offsets = [0, 32], sizes = [128, 32], strides = [1, 1]} : vector<128x128xbf16> to vector<128x32xbf16>
    %64 = vector.extract_strided_slice %9 {offsets = [0, 32], sizes = [128, 32], strides = [1, 1]} : vector<128x128xbf16> to vector<128x32xbf16>
    "tpu.trace_start"() <{level = 10 : i32, message = "td,sd->ts"}> : () -> ()
    %cst_33 = arith.constant dense<0.000000e+00> : vector<128x128xf32>
    %65 = tpu.matmul %63, %64, %cst_33 {dimension_numbers = #tpu.dot_dimension_numbers<[1], [1], [0], [0], [0, 0, 1, 0], [], []>} : vector<128x32xbf16>, vector<128x32xbf16>, vector<128x128xf32> -> vector<128x128xf32>
    "tpu.trace_stop"() : () -> ()
    %66 = vector.broadcast %10 : vector<1x1xf32> to vector<128x128xf32>
    %67 = arith.subf %65, %66 : vector<128x128xf32>
    %cst_34 = arith.constant -5.000000e+04 : f32
    %cst_35 = arith.constant 5.000000e+04 : f32
    %68 = vector.broadcast %cst_34 : f32 to vector<128x128xf32>
    %69 = arith.maximumf %68, %67 : vector<128x128xf32>
    %70 = vector.broadcast %cst_35 : f32 to vector<128x128xf32>
    %71 = arith.minimumf %70, %69 : vector<128x128xf32>
    %cst_36 = arith.constant dense<0xFF800000> : vector<128xf32>
    %72 = vector.multi_reduction <maximumf>, %71, %cst_36 [1] : vector<128x128xf32> to vector<128xf32>
    %73 = vector.shape_cast %72 : vector<128xf32> to vector<128x1xf32>
    %74 = vector.broadcast %73 : vector<128x1xf32> to vector<128x128xf32>
    %75 = arith.subf %71, %74 : vector<128x128xf32>
    %76 = math.exp %75 : vector<128x128xf32>
    %cst_37 = arith.constant dense<0.000000e+00> : vector<128xf32>
    %77 = vector.multi_reduction <add>, %76, %cst_37 [1] : vector<128x128xf32> to vector<128xf32>
    %78 = vector.shape_cast %77 : vector<128xf32> to vector<128x1xf32>
    %79 = tpu.reciprocal %78 {approx = true} : vector<128x1xf32> -> vector<128x1xf32>
    %80 = vector.broadcast %79 : vector<128x1xf32> to vector<128x128xf32>
    %81 = arith.mulf %76, %80 : vector<128x128xf32>
    %82 = arith.truncf %81 : vector<128x128xf32> to vector<128x128xbf16>
    %83 = tpu.transpose %71, [1, 0] : vector<128x128xf32> -> vector<128x128xf32>
    %cst_38 = arith.constant dense<0xFF800000> : vector<128xf32>
    %84 = vector.multi_reduction <maximumf>, %83, %cst_38 [1] : vector<128x128xf32> to vector<128xf32>
    %85 = vector.shape_cast %84 : vector<128xf32> to vector<128x1xf32>
    %86 = vector.broadcast %85 : vector<128x1xf32> to vector<128x128xf32>
    %87 = arith.subf %83, %86 : vector<128x128xf32>
    %cst_39 = arith.constant -5.000000e+04 : f32
    %cst_40 = arith.constant 5.000000e+04 : f32
    %88 = vector.broadcast %cst_39 : f32 to vector<128x128xf32>
    %89 = arith.maximumf %88, %87 : vector<128x128xf32>
    %90 = vector.broadcast %cst_40 : f32 to vector<128x128xf32>
    %91 = arith.minimumf %90, %89 : vector<128x128xf32>
    %92 = math.exp %91 : vector<128x128xf32>
    %cst_41 = arith.constant dense<0.000000e+00> : vector<128xf32>
    %93 = vector.multi_reduction <add>, %92, %cst_41 [1] : vector<128x128xf32> to vector<128xf32>
    %94 = vector.shape_cast %93 : vector<128xf32> to vector<128x1xf32>
    %95 = tpu.reciprocal %94 {approx = true} : vector<128x1xf32> -> vector<128x1xf32>
    %96 = vector.broadcast %95 : vector<128x1xf32> to vector<128x128xf32>
    %97 = arith.mulf %92, %96 : vector<128x128xf32>
    %98 = arith.truncf %97 : vector<128x128xf32> to vector<128x128xbf16>
    %99 = vector.extract_strided_slice %22 {offsets = [0, 32], sizes = [128, 32], strides = [1, 1]} : vector<128x128xbf16> to vector<128x32xbf16>
    %cst_42 = arith.constant dense<0.000000e+00> : vector<128x32xf32>
    %100 = tpu.matmul %82, %99, %cst_42 {dimension_numbers = #tpu.dot_dimension_numbers<[1], [0], [0], [1], [0, 0, 1, 1], [], []>} : vector<128x128xbf16>, vector<128x32xbf16>, vector<128x32xf32> -> vector<128x32xf32>
    %101 = vector.extract_strided_slice %16 {offsets = [0, 32], sizes = [128, 32], strides = [1, 1]} : vector<128x128xbf16> to vector<128x32xbf16>
    %cst_43 = arith.constant dense<0.000000e+00> : vector<128x32xf32>
    %102 = tpu.matmul %98, %101, %cst_43 {dimension_numbers = #tpu.dot_dimension_numbers<[1], [0], [0], [1], [0, 0, 1, 1], [], []>} : vector<128x128xbf16>, vector<128x32xbf16>, vector<128x32xf32> -> vector<128x32xf32>
    %103 = vector.extract_strided_slice %7 {offsets = [0, 64], sizes = [128, 32], strides = [1, 1]} : vector<128x128xbf16> to vector<128x32xbf16>
    %104 = vector.extract_strided_slice %9 {offsets = [0, 64], sizes = [128, 32], strides = [1, 1]} : vector<128x128xbf16> to vector<128x32xbf16>
    "tpu.trace_start"() <{level = 10 : i32, message = "td,sd->ts"}> : () -> ()
    %cst_44 = arith.constant dense<0.000000e+00> : vector<128x128xf32>
    %105 = tpu.matmul %103, %104, %cst_44 {dimension_numbers = #tpu.dot_dimension_numbers<[1], [1], [0], [0], [0, 0, 1, 0], [], []>} : vector<128x32xbf16>, vector<128x32xbf16>, vector<128x128xf32> -> vector<128x128xf32>
    "tpu.trace_stop"() : () -> ()
    %106 = vector.broadcast %10 : vector<1x1xf32> to vector<128x128xf32>
    %107 = arith.subf %105, %106 : vector<128x128xf32>
    %cst_45 = arith.constant -5.000000e+04 : f32
    %cst_46 = arith.constant 5.000000e+04 : f32
    %108 = vector.broadcast %cst_45 : f32 to vector<128x128xf32>
    %109 = arith.maximumf %108, %107 : vector<128x128xf32>
    %110 = vector.broadcast %cst_46 : f32 to vector<128x128xf32>
    %111 = arith.minimumf %110, %109 : vector<128x128xf32>
    %cst_47 = arith.constant dense<0xFF800000> : vector<128xf32>
    %112 = vector.multi_reduction <maximumf>, %111, %cst_47 [1] : vector<128x128xf32> to vector<128xf32>
    %113 = vector.shape_cast %112 : vector<128xf32> to vector<128x1xf32>
    %114 = vector.broadcast %113 : vector<128x1xf32> to vector<128x128xf32>
    %115 = arith.subf %111, %114 : vector<128x128xf32>
    %116 = math.exp %115 : vector<128x128xf32>
    %cst_48 = arith.constant dense<0.000000e+00> : vector<128xf32>
    %117 = vector.multi_reduction <add>, %116, %cst_48 [1] : vector<128x128xf32> to vector<128xf32>
    %118 = vector.shape_cast %117 : vector<128xf32> to vector<128x1xf32>
    %119 = tpu.reciprocal %118 {approx = true} : vector<128x1xf32> -> vector<128x1xf32>
    %120 = vector.broadcast %119 : vector<128x1xf32> to vector<128x128xf32>
    %121 = arith.mulf %116, %120 : vector<128x128xf32>
    %122 = arith.truncf %121 : vector<128x128xf32> to vector<128x128xbf16>
    %123 = tpu.transpose %111, [1, 0] : vector<128x128xf32> -> vector<128x128xf32>
    %cst_49 = arith.constant dense<0xFF800000> : vector<128xf32>
    %124 = vector.multi_reduction <maximumf>, %123, %cst_49 [1] : vector<128x128xf32> to vector<128xf32>
    %125 = vector.shape_cast %124 : vector<128xf32> to vector<128x1xf32>
    %126 = vector.broadcast %125 : vector<128x1xf32> to vector<128x128xf32>
    %127 = arith.subf %123, %126 : vector<128x128xf32>
    %cst_50 = arith.constant -5.000000e+04 : f32
    %cst_51 = arith.constant 5.000000e+04 : f32
    %128 = vector.broadcast %cst_50 : f32 to vector<128x128xf32>
    %129 = arith.maximumf %128, %127 : vector<128x128xf32>
    %130 = vector.broadcast %cst_51 : f32 to vector<128x128xf32>
    %131 = arith.minimumf %130, %129 : vector<128x128xf32>
    %132 = math.exp %131 : vector<128x128xf32>
    %cst_52 = arith.constant dense<0.000000e+00> : vector<128xf32>
    %133 = vector.multi_reduction <add>, %132, %cst_52 [1] : vector<128x128xf32> to vector<128xf32>
    %134 = vector.shape_cast %133 : vector<128xf32> to vector<128x1xf32>
    %135 = tpu.reciprocal %134 {approx = true} : vector<128x1xf32> -> vector<128x1xf32>
    %136 = vector.broadcast %135 : vector<128x1xf32> to vector<128x128xf32>
    %137 = arith.mulf %132, %136 : vector<128x128xf32>
    %138 = arith.truncf %137 : vector<128x128xf32> to vector<128x128xbf16>
    %139 = vector.extract_strided_slice %22 {offsets = [0, 64], sizes = [128, 32], strides = [1, 1]} : vector<128x128xbf16> to vector<128x32xbf16>
    %cst_53 = arith.constant dense<0.000000e+00> : vector<128x32xf32>
    %140 = tpu.matmul %122, %139, %cst_53 {dimension_numbers = #tpu.dot_dimension_numbers<[1], [0], [0], [1], [0, 0, 1, 1], [], []>} : vector<128x128xbf16>, vector<128x32xbf16>, vector<128x32xf32> -> vector<128x32xf32>
    %141 = vector.extract_strided_slice %16 {offsets = [0, 64], sizes = [128, 32], strides = [1, 1]} : vector<128x128xbf16> to vector<128x32xbf16>
    %cst_54 = arith.constant dense<0.000000e+00> : vector<128x32xf32>
    %142 = tpu.matmul %138, %141, %cst_54 {dimension_numbers = #tpu.dot_dimension_numbers<[1], [0], [0], [1], [0, 0, 1, 1], [], []>} : vector<128x128xbf16>, vector<128x32xbf16>, vector<128x32xf32> -> vector<128x32xf32>
    %143 = vector.extract_strided_slice %7 {offsets = [0, 96], sizes = [128, 32], strides = [1, 1]} : vector<128x128xbf16> to vector<128x32xbf16>
    %144 = vector.extract_strided_slice %9 {offsets = [0, 96], sizes = [128, 32], strides = [1, 1]} : vector<128x128xbf16> to vector<128x32xbf16>
    "tpu.trace_start"() <{level = 10 : i32, message = "td,sd->ts"}> : () -> ()
    %cst_55 = arith.constant dense<0.000000e+00> : vector<128x128xf32>
    %145 = tpu.matmul %143, %144, %cst_55 {dimension_numbers = #tpu.dot_dimension_numbers<[1], [1], [0], [0], [0, 0, 1, 0], [], []>} : vector<128x32xbf16>, vector<128x32xbf16>, vector<128x128xf32> -> vector<128x128xf32>
    "tpu.trace_stop"() : () -> ()
    %146 = vector.broadcast %10 : vector<1x1xf32> to vector<128x128xf32>
    %147 = arith.subf %145, %146 : vector<128x128xf32>
    %cst_56 = arith.constant -5.000000e+04 : f32
    %cst_57 = arith.constant 5.000000e+04 : f32
    %148 = vector.broadcast %cst_56 : f32 to vector<128x128xf32>
    %149 = arith.maximumf %148, %147 : vector<128x128xf32>
    %150 = vector.broadcast %cst_57 : f32 to vector<128x128xf32>
    %151 = arith.minimumf %150, %149 : vector<128x128xf32>
    %cst_58 = arith.constant dense<0xFF800000> : vector<128xf32>
    %152 = vector.multi_reduction <maximumf>, %151, %cst_58 [1] : vector<128x128xf32> to vector<128xf32>
    %153 = vector.shape_cast %152 : vector<128xf32> to vector<128x1xf32>
    %154 = vector.broadcast %153 : vector<128x1xf32> to vector<128x128xf32>
    %155 = arith.subf %151, %154 : vector<128x128xf32>
    %156 = math.exp %155 : vector<128x128xf32>
    %cst_59 = arith.constant dense<0.000000e+00> : vector<128xf32>
    %157 = vector.multi_reduction <add>, %156, %cst_59 [1] : vector<128x128xf32> to vector<128xf32>
    %158 = vector.shape_cast %157 : vector<128xf32> to vector<128x1xf32>
    %159 = tpu.reciprocal %158 {approx = true} : vector<128x1xf32> -> vector<128x1xf32>
    %160 = vector.broadcast %159 : vector<128x1xf32> to vector<128x128xf32>
    %161 = arith.mulf %156, %160 : vector<128x128xf32>
    %162 = arith.truncf %161 : vector<128x128xf32> to vector<128x128xbf16>
    %163 = tpu.transpose %151, [1, 0] : vector<128x128xf32> -> vector<128x128xf32>
    %cst_60 = arith.constant dense<0xFF800000> : vector<128xf32>
    %164 = vector.multi_reduction <maximumf>, %163, %cst_60 [1] : vector<128x128xf32> to vector<128xf32>
    %165 = vector.shape_cast %164 : vector<128xf32> to vector<128x1xf32>
    %166 = vector.broadcast %165 : vector<128x1xf32> to vector<128x128xf32>
    %167 = arith.subf %163, %166 : vector<128x128xf32>
    %cst_61 = arith.constant -5.000000e+04 : f32
    %cst_62 = arith.constant 5.000000e+04 : f32
    %168 = vector.broadcast %cst_61 : f32 to vector<128x128xf32>
    %169 = arith.maximumf %168, %167 : vector<128x128xf32>
    %170 = vector.broadcast %cst_62 : f32 to vector<128x128xf32>
    %171 = arith.minimumf %170, %169 : vector<128x128xf32>
    %172 = math.exp %171 : vector<128x128xf32>
    %cst_63 = arith.constant dense<0.000000e+00> : vector<128xf32>
    %173 = vector.multi_reduction <add>, %172, %cst_63 [1] : vector<128x128xf32> to vector<128xf32>
    %174 = vector.shape_cast %173 : vector<128xf32> to vector<128x1xf32>
    %175 = tpu.reciprocal %174 {approx = true} : vector<128x1xf32> -> vector<128x1xf32>
    %176 = vector.broadcast %175 : vector<128x1xf32> to vector<128x128xf32>
    %177 = arith.mulf %172, %176 : vector<128x128xf32>
    %178 = arith.truncf %177 : vector<128x128xf32> to vector<128x128xbf16>
    %179 = vector.extract_strided_slice %22 {offsets = [0, 96], sizes = [128, 32], strides = [1, 1]} : vector<128x128xbf16> to vector<128x32xbf16>
    %cst_64 = arith.constant dense<0.000000e+00> : vector<128x32xf32>
    %180 = tpu.matmul %162, %179, %cst_64 {dimension_numbers = #tpu.dot_dimension_numbers<[1], [0], [0], [1], [0, 0, 1, 1], [], []>} : vector<128x128xbf16>, vector<128x32xbf16>, vector<128x32xf32> -> vector<128x32xf32>
    %181 = vector.extract_strided_slice %16 {offsets = [0, 96], sizes = [128, 32], strides = [1, 1]} : vector<128x128xbf16> to vector<128x32xbf16>
    %cst_65 = arith.constant dense<0.000000e+00> : vector<128x32xf32>
    %182 = tpu.matmul %178, %181, %cst_65 {dimension_numbers = #tpu.dot_dimension_numbers<[1], [0], [0], [1], [0, 0, 1, 1], [], []>} : vector<128x128xbf16>, vector<128x32xbf16>, vector<128x32xf32> -> vector<128x32xf32>
    %183 = tpu.concatenate %60, %100, %140, %180 in 1 : vector<128x32xf32>, vector<128x32xf32>, vector<128x32xf32>, vector<128x32xf32> -> vector<128x128xf32>
    %184 = arith.truncf %183 : vector<128x128xf32> to vector<128x128xbf16>
    %185 = tpu.concatenate %62, %102, %142, %182 in 1 : vector<128x32xf32>, vector<128x32xf32>, vector<128x32xf32>, vector<128x32xf32> -> vector<128x128xf32>
    %186 = arith.truncf %185 : vector<128x128xf32> to vector<128x128xbf16>
    %c0_66 = arith.constant 0 : index
    %c0_67 = arith.constant 0 : index
    %187 = vector.load %arg10[%c0_66, %c0_67] : memref<128x128xbf16, #tpu.memory_space<vmem>>, vector<128x128xbf16>
    %cst_68 = arith.constant dense<0.000000e+00> : vector<128x128xf32>
    %188 = tpu.matmul %184, %187, %cst_68 {dimension_numbers = #tpu.dot_dimension_numbers<[1], [0], [0], [1], [0, 0, 1, 1], [], []>} : vector<128x128xbf16>, vector<128x128xbf16>, vector<128x128xf32> -> vector<128x128xf32>
    %c0_69 = arith.constant 0 : index
    %c0_70 = arith.constant 0 : index
    %189 = vector.load %arg11[%c0_69, %c0_70] : memref<1x128xf32, #tpu.memory_space<vmem>>, vector<1x128xf32>
    %190 = vector.broadcast %189 : vector<1x128xf32> to vector<128x128xf32>
    %191 = arith.addf %188, %190 : vector<128x128xf32>
    %c0_71 = arith.constant 0 : index
    %c0_72 = arith.constant 0 : index
    %192 = vector.load %arg12[%c0_71, %c0_72] : memref<128x128xbf16, #tpu.memory_space<vmem>>, vector<128x128xbf16>
    %cst_73 = arith.constant dense<0.000000e+00> : vector<128x128xf32>
    %193 = tpu.matmul %186, %192, %cst_73 {dimension_numbers = #tpu.dot_dimension_numbers<[1], [0], [0], [1], [0, 0, 1, 1], [], []>} : vector<128x128xbf16>, vector<128x128xbf16>, vector<128x128xf32> -> vector<128x128xf32>
    %c0_74 = arith.constant 0 : index
    %c0_75 = arith.constant 0 : index
    %194 = vector.load %arg13[%c0_74, %c0_75] : memref<1x128xf32, #tpu.memory_space<vmem>>, vector<1x128xf32>
    %195 = vector.broadcast %194 : vector<1x128xf32> to vector<128x128xf32>
    %196 = arith.addf %193, %195 : vector<128x128xf32>
    %c0_76 = arith.constant 0 : index
    %c0_77 = arith.constant 0 : index
    %c0_78 = arith.constant 0 : index
    %197 = vector.load %arg14[%c0_76, %c0_77, %c0_78] : memref<1x128x128xf32, #tpu.memory_space<vmem>>, vector<1x128x128xf32>
    %198 = vector.shape_cast %197 : vector<1x128x128xf32> to vector<128x128xf32>
    %199 = vector.shape_cast %191 : vector<128x128xf32> to vector<1x128x128xf32>
    tpu.vector_store %arg14[%c0_76, %c0_77, %c0_78], %199 {strides = array<i32>} : memref<1x128x128xf32, #tpu.memory_space<vmem>>, vector<1x128x128xf32>,
    %c0_79 = arith.constant 0 : index
    %c0_80 = arith.constant 0 : index
    %c0_81 = arith.constant 0 : index
    %200 = vector.load %arg15[%c0_79, %c0_80, %c0_81] : memref<1x128x128xf32, #tpu.memory_space<vmem>>, vector<1x128x128xf32>
    %201 = vector.shape_cast %200 : vector<1x128x128xf32> to vector<128x128xf32>
    %202 = vector.shape_cast %196 : vector<128x128xf32> to vector<1x128x128xf32>
    tpu.vector_store %arg15[%c0_79, %c0_80, %c0_81], %202 {strides = array<i32>} : memref<1x128x128xf32, #tpu.memory_space<vmem>>, vector<1x128x128xf32>,
    return
  }
  func.func @transform_0(%arg0: i32) -> (i32, i32, i32) {
    %c0_i32 = arith.constant 0 : i32
    %c0_i32_0 = arith.constant 0 : i32
    %c0_i32_1 = arith.constant 0 : i32
    return %arg0, %c0_i32, %c0_i32_0 : i32, i32, i32
  }
  func.func @transform_1(%arg0: i32) -> (i32, i32, i32) {
    %c0_i32 = arith.constant 0 : i32
    %c0_i32_0 = arith.constant 0 : i32
    %c0_i32_1 = arith.constant 0 : i32
    return %arg0, %c0_i32, %c0_i32_0 : i32, i32, i32
  }
  func.func @transform_2(%arg0: i32) -> (i32, i32, i32) {
    %c0_i32 = arith.constant 0 : i32
    %c0_i32_0 = arith.constant 0 : i32
    %c0_i32_1 = arith.constant 0 : i32
    return %arg0, %c0_i32, %c0_i32_0 : i32, i32, i32
  }
  func.func @transform_3(%arg0: i32) -> (i32, i32, i32) {
    %c0_i32 = arith.constant 0 : i32
    %c0_i32_0 = arith.constant 0 : i32
    %c0_i32_1 = arith.constant 0 : i32
    return %arg0, %c0_i32, %c0_i32_0 : i32, i32, i32
  }
  func.func @transform_4(%arg0: i32) -> (i32, i32) {
    %c0_i32 = arith.constant 0 : i32
    %c0_i32_0 = arith.constant 0 : i32
    %c0_i32_1 = arith.constant 0 : i32
    return %c0_i32, %c0_i32_0 : i32, i32
  }
  func.func @transform_5(%arg0: i32) -> (i32, i32) {
    %c0_i32 = arith.constant 0 : i32
    %c0_i32_0 = arith.constant 0 : i32
    %c0_i32_1 = arith.constant 0 : i32
    return %c0_i32, %c0_i32_0 : i32, i32
  }
  func.func @transform_6(%arg0: i32) -> (i32, i32) {
    %c0_i32 = arith.constant 0 : i32
    %c0_i32_0 = arith.constant 0 : i32
    %c0_i32_1 = arith.constant 0 : i32
    return %c0_i32, %c0_i32_0 : i32, i32
  }
  func.func @transform_7(%arg0: i32) -> (i32, i32) {
    %c0_i32 = arith.constant 0 : i32
    %c0_i32_0 = arith.constant 0 : i32
    %c0_i32_1 = arith.constant 0 : i32
    return %c0_i32, %c0_i32_0 : i32, i32
  }
  func.func @transform_8(%arg0: i32) -> (i32, i32) {
    %c0_i32 = arith.constant 0 : i32
    %c0_i32_0 = arith.constant 0 : i32
    %c0_i32_1 = arith.constant 0 : i32
    return %c0_i32, %c0_i32_0 : i32, i32
  }
  func.func @transform_9(%arg0: i32) -> (i32, i32) {
    %c0_i32 = arith.constant 0 : i32
    %c0_i32_0 = arith.constant 0 : i32
    %c0_i32_1 = arith.constant 0 : i32
    return %c0_i32, %c0_i32_0 : i32, i32
  }
  func.func @transform_10(%arg0: i32) -> (i32, i32) {
    %c0_i32 = arith.constant 0 : i32
    %c0_i32_0 = arith.constant 0 : i32
    %c0_i32_1 = arith.constant 0 : i32
    return %c0_i32, %c0_i32_0 : i32, i32
  }
  func.func @transform_11(%arg0: i32) -> (i32, i32) {
    %c0_i32 = arith.constant 0 : i32
    %c0_i32_0 = arith.constant 0 : i32
    %c0_i32_1 = arith.constant 0 : i32
    return %c0_i32, %c0_i32_0 : i32, i32
  }
  func.func @transform_12(%arg0: i32) -> (i32, i32) {
    %c0_i32 = arith.constant 0 : i32
    %c0_i32_0 = arith.constant 0 : i32
    %c0_i32_1 = arith.constant 0 : i32
    return %c0_i32, %c0_i32_0 : i32, i32
  }
  func.func @transform_13(%arg0: i32) -> (i32, i32, i32) {
    %c0_i32 = arith.constant 0 : i32
    %c0_i32_0 = arith.constant 0 : i32
    %c0_i32_1 = arith.constant 0 : i32
    return %arg0, %c0_i32, %c0_i32_0 : i32, i32, i32
  }
  func.func @transform_14(%arg0: i32) -> (i32, i32, i32) {
    %c0_i32 = arith.constant 0 : i32
    %c0_i32_0 = arith.constant 0 : i32
    %c0_i32_1 = arith.constant 0 : i32
    return %arg0, %c0_i32, %c0_i32_0 : i32, i32, i32
  }
}

module attributes {stable_mosaic.version = 11 : i64} {
  func.func @_qk_max_kernel(%arg0: i32, %arg1: memref<1x128x128xf32, #tpu.memory_space<vmem>>, %arg2: memref<1x128x128xf32, #tpu.memory_space<vmem>>, %arg3: memref<128x128xbf16, #tpu.memory_space<vmem>>, %arg4: memref<1x128xf32, #tpu.memory_space<vmem>>, %arg5: memref<128x128xbf16, #tpu.memory_space<vmem>>, %arg6: memref<1x128xf32, #tpu.memory_space<vmem>>, %arg7: memref<1x128x128xbf16, #tpu.memory_space<vmem>>, %arg8: memref<1x128x128xbf16, #tpu.memory_space<vmem>>, %arg9: memref<1x8x128xf32, #tpu.memory_space<vmem>>) attributes {dimension_semantics = [#tpu.dimension_semantics<parallel>], iteration_bounds = array<i64: 2>, scalar_prefetch = 0 : i64, scratch_operands = 0 : i64, tpu.core_type = #tpu.core_type<tc>, window_params = [{transform_indices = @transform_0, window_bounds = array<i64: 1, 128, 128>}, {transform_indices = @transform_1, window_bounds = array<i64: 1, 128, 128>}, {pipeline_mode = #tpu.pipeline_mode<synchronous>, transform_indices = @transform_2, window_bounds = array<i64: 128, 128>}, {pipeline_mode = #tpu.pipeline_mode<synchronous>, transform_indices = @transform_3, window_bounds = array<i64: 1, 128>}, {pipeline_mode = #tpu.pipeline_mode<synchronous>, transform_indices = @transform_4, window_bounds = array<i64: 128, 128>}, {pipeline_mode = #tpu.pipeline_mode<synchronous>, transform_indices = @transform_5, window_bounds = array<i64: 1, 128>}, {transform_indices = @transform_6, window_bounds = array<i64: 1, 128, 128>}, {transform_indices = @transform_7, window_bounds = array<i64: 1, 128, 128>}, {transform_indices = @transform_8, window_bounds = array<i64: 1, 8, 128>}]} {
    %c0 = arith.constant 0 : index
    %c0_0 = arith.constant 0 : index
    %c0_1 = arith.constant 0 : index
    %0 = vector.load %arg1[%c0, %c0_0, %c0_1] : memref<1x128x128xf32, #tpu.memory_space<vmem>>, vector<1x128x128xf32>
    %1 = vector.shape_cast %0 : vector<1x128x128xf32> to vector<128x128xf32>
    %2 = arith.truncf %1 : vector<128x128xf32> to vector<128x128xbf16>
    %c0_2 = arith.constant 0 : index
    %c0_3 = arith.constant 0 : index
    %c0_4 = arith.constant 0 : index
    %3 = vector.load %arg2[%c0_2, %c0_3, %c0_4] : memref<1x128x128xf32, #tpu.memory_space<vmem>>, vector<1x128x128xf32>
    %4 = vector.shape_cast %3 : vector<1x128x128xf32> to vector<128x128xf32>
    %5 = arith.truncf %4 : vector<128x128xf32> to vector<128x128xbf16>
    %c0_5 = arith.constant 0 : index
    %c0_6 = arith.constant 0 : index
    %6 = vector.load %arg3[%c0_5, %c0_6] : memref<128x128xbf16, #tpu.memory_space<vmem>>, vector<128x128xbf16>
    %cst = arith.constant dense<0.000000e+00> : vector<128x128xf32>
    %7 = tpu.matmul %2, %6, %cst {dimension_numbers = #tpu.dot_dimension_numbers<[1], [0], [0], [1], [0, 0, 1, 1], [], []>} : vector<128x128xbf16>, vector<128x128xbf16>, vector<128x128xf32> -> vector<128x128xf32>
    %c0_7 = arith.constant 0 : index
    %c0_8 = arith.constant 0 : index
    %8 = vector.load %arg4[%c0_7, %c0_8] : memref<1x128xf32, #tpu.memory_space<vmem>>, vector<1x128xf32>
    %9 = vector.broadcast %8 : vector<1x128xf32> to vector<128x128xf32>
    %10 = arith.addf %7, %9 : vector<128x128xf32>
    %cst_9 = arith.constant 0.176776692 : f32
    %11 = vector.broadcast %cst_9 : f32 to vector<128x128xf32>
    %12 = arith.mulf %10, %11 : vector<128x128xf32>
    %13 = arith.truncf %12 : vector<128x128xf32> to vector<128x128xbf16>
    %c0_10 = arith.constant 0 : index
    %c0_11 = arith.constant 0 : index
    %14 = vector.load %arg5[%c0_10, %c0_11] : memref<128x128xbf16, #tpu.memory_space<vmem>>, vector<128x128xbf16>
    %cst_12 = arith.constant dense<0.000000e+00> : vector<128x128xf32>
    %15 = tpu.matmul %5, %14, %cst_12 {dimension_numbers = #tpu.dot_dimension_numbers<[1], [0], [0], [1], [0, 0, 1, 1], [], []>} : vector<128x128xbf16>, vector<128x128xbf16>, vector<128x128xf32> -> vector<128x128xf32>
    %c0_13 = arith.constant 0 : index
    %c0_14 = arith.constant 0 : index
    %16 = vector.load %arg6[%c0_13, %c0_14] : memref<1x128xf32, #tpu.memory_space<vmem>>, vector<1x128xf32>
    %17 = vector.broadcast %16 : vector<1x128xf32> to vector<128x128xf32>
    %18 = arith.addf %15, %17 : vector<128x128xf32>
    %19 = arith.truncf %18 : vector<128x128xf32> to vector<128x128xbf16>
    %c0_15 = arith.constant 0 : index
    %c0_16 = arith.constant 0 : index
    %c0_17 = arith.constant 0 : index
    %20 = vector.load %arg7[%c0_15, %c0_16, %c0_17] : memref<1x128x128xbf16, #tpu.memory_space<vmem>>, vector<1x128x128xbf16>
    %21 = vector.shape_cast %20 : vector<1x128x128xbf16> to vector<128x128xbf16>
    %22 = vector.shape_cast %13 : vector<128x128xbf16> to vector<1x128x128xbf16>
    tpu.vector_store %arg7[%c0_15, %c0_16, %c0_17], %22 {strides = array<i32>} : memref<1x128x128xbf16, #tpu.memory_space<vmem>>, vector<1x128x128xbf16>,
    %c0_18 = arith.constant 0 : index
    %c0_19 = arith.constant 0 : index
    %c0_20 = arith.constant 0 : index
    %23 = vector.load %arg8[%c0_18, %c0_19, %c0_20] : memref<1x128x128xbf16, #tpu.memory_space<vmem>>, vector<1x128x128xbf16>
    %24 = vector.shape_cast %23 : vector<1x128x128xbf16> to vector<128x128xbf16>
    %25 = vector.shape_cast %19 : vector<128x128xbf16> to vector<1x128x128xbf16>
    tpu.vector_store %arg8[%c0_18, %c0_19, %c0_20], %25 {strides = array<i32>} : memref<1x128x128xbf16, #tpu.memory_space<vmem>>, vector<1x128x128xbf16>,
    %26 = vector.extract_strided_slice %13 {offsets = [0, 0], sizes = [128, 32], strides = [1, 1]} : vector<128x128xbf16> to vector<128x32xbf16>
    %27 = vector.extract_strided_slice %19 {offsets = [0, 0], sizes = [128, 32], strides = [1, 1]} : vector<128x128xbf16> to vector<128x32xbf16>
    "tpu.trace_start"() <{level = 10 : i32, message = "td,sd->ts"}> : () -> ()
    %cst_21 = arith.constant dense<0.000000e+00> : vector<128x128xf32>
    %28 = tpu.matmul %26, %27, %cst_21 {dimension_numbers = #tpu.dot_dimension_numbers<[1], [1], [0], [0], [0, 0, 1, 0], [], []>} : vector<128x32xbf16>, vector<128x32xbf16>, vector<128x128xf32> -> vector<128x128xf32>
    "tpu.trace_stop"() : () -> ()
    %cst_22 = arith.constant dense<0xFF800000> : vector<128xf32>
    %29 = vector.multi_reduction <maximumf>, %28, %cst_22 [1] : vector<128x128xf32> to vector<128xf32>
    %30 = vector.shape_cast %29 : vector<128xf32> to vector<128x1xf32>
    %cst_23 = arith.constant dense<0xFF800000> : vector<1xf32>
    %31 = vector.multi_reduction <maximumf>, %30, %cst_23 [0] : vector<128x1xf32> to vector<1xf32>
    %32 = vector.shape_cast %31 : vector<1xf32> to vector<1x1xf32>
    %33 = vector.extract_strided_slice %13 {offsets = [0, 32], sizes = [128, 32], strides = [1, 1]} : vector<128x128xbf16> to vector<128x32xbf16>
    %34 = vector.extract_strided_slice %19 {offsets = [0, 32], sizes = [128, 32], strides = [1, 1]} : vector<128x128xbf16> to vector<128x32xbf16>
    "tpu.trace_start"() <{level = 10 : i32, message = "td,sd->ts"}> : () -> ()
    %cst_24 = arith.constant dense<0.000000e+00> : vector<128x128xf32>
    %35 = tpu.matmul %33, %34, %cst_24 {dimension_numbers = #tpu.dot_dimension_numbers<[1], [1], [0], [0], [0, 0, 1, 0], [], []>} : vector<128x32xbf16>, vector<128x32xbf16>, vector<128x128xf32> -> vector<128x128xf32>
    "tpu.trace_stop"() : () -> ()
    %cst_25 = arith.constant dense<0xFF800000> : vector<128xf32>
    %36 = vector.multi_reduction <maximumf>, %35, %cst_25 [1] : vector<128x128xf32> to vector<128xf32>
    %37 = vector.shape_cast %36 : vector<128xf32> to vector<128x1xf32>
    %cst_26 = arith.constant dense<0xFF800000> : vector<1xf32>
    %38 = vector.multi_reduction <maximumf>, %37, %cst_26 [0] : vector<128x1xf32> to vector<1xf32>
    %39 = vector.shape_cast %38 : vector<1xf32> to vector<1x1xf32>
    %40 = arith.maximumf %32, %39 : vector<1x1xf32>
    %41 = vector.extract_strided_slice %13 {offsets = [0, 64], sizes = [128, 32], strides = [1, 1]} : vector<128x128xbf16> to vector<128x32xbf16>
    %42 = vector.extract_strided_slice %19 {offsets = [0, 64], sizes = [128, 32], strides = [1, 1]} : vector<128x128xbf16> to vector<128x32xbf16>
    "tpu.trace_start"() <{level = 10 : i32, message = "td,sd->ts"}> : () -> ()
    %cst_27 = arith.constant dense<0.000000e+00> : vector<128x128xf32>
    %43 = tpu.matmul %41, %42, %cst_27 {dimension_numbers = #tpu.dot_dimension_numbers<[1], [1], [0], [0], [0, 0, 1, 0], [], []>} : vector<128x32xbf16>, vector<128x32xbf16>, vector<128x128xf32> -> vector<128x128xf32>
    "tpu.trace_stop"() : () -> ()
    %cst_28 = arith.constant dense<0xFF800000> : vector<128xf32>
    %44 = vector.multi_reduction <maximumf>, %43, %cst_28 [1] : vector<128x128xf32> to vector<128xf32>
    %45 = vector.shape_cast %44 : vector<128xf32> to vector<128x1xf32>
    %cst_29 = arith.constant dense<0xFF800000> : vector<1xf32>
    %46 = vector.multi_reduction <maximumf>, %45, %cst_29 [0] : vector<128x1xf32> to vector<1xf32>
    %47 = vector.shape_cast %46 : vector<1xf32> to vector<1x1xf32>
    %48 = arith.maximumf %40, %47 : vector<1x1xf32>
    %49 = vector.extract_strided_slice %13 {offsets = [0, 96], sizes = [128, 32], strides = [1, 1]} : vector<128x128xbf16> to vector<128x32xbf16>
    %50 = vector.extract_strided_slice %19 {offsets = [0, 96], sizes = [128, 32], strides = [1, 1]} : vector<128x128xbf16> to vector<128x32xbf16>
    "tpu.trace_start"() <{level = 10 : i32, message = "td,sd->ts"}> : () -> ()
    %cst_30 = arith.constant dense<0.000000e+00> : vector<128x128xf32>
    %51 = tpu.matmul %49, %50, %cst_30 {dimension_numbers = #tpu.dot_dimension_numbers<[1], [1], [0], [0], [0, 0, 1, 0], [], []>} : vector<128x32xbf16>, vector<128x32xbf16>, vector<128x128xf32> -> vector<128x128xf32>
    "tpu.trace_stop"() : () -> ()
    %cst_31 = arith.constant dense<0xFF800000> : vector<128xf32>
    %52 = vector.multi_reduction <maximumf>, %51, %cst_31 [1] : vector<128x128xf32> to vector<128xf32>
    %53 = vector.shape_cast %52 : vector<128xf32> to vector<128x1xf32>
    %cst_32 = arith.constant dense<0xFF800000> : vector<1xf32>
    %54 = vector.multi_reduction <maximumf>, %53, %cst_32 [0] : vector<128x1xf32> to vector<1xf32>
    %55 = vector.shape_cast %54 : vector<1xf32> to vector<1x1xf32>
    %56 = arith.maximumf %48, %55 : vector<1x1xf32>
    %57 = vector.shape_cast %56 : vector<1x1xf32> to vector<1x1xf32>
    %58 = vector.broadcast %57 : vector<1x1xf32> to vector<8x128xf32>
    %c0_33 = arith.constant 0 : index
    %c0_34 = arith.constant 0 : index
    %c0_35 = arith.constant 0 : index
    %59 = vector.load %arg9[%c0_33, %c0_34, %c0_35] : memref<1x8x128xf32, #tpu.memory_space<vmem>>, vector<1x8x128xf32>
    %60 = vector.shape_cast %59 : vector<1x8x128xf32> to vector<8x128xf32>
    %61 = vector.shape_cast %58 : vector<8x128xf32> to vector<1x8x128xf32>
    tpu.vector_store %arg9[%c0_33, %c0_34, %c0_35], %61 {strides = array<i32>} : memref<1x8x128xf32, #tpu.memory_space<vmem>>, vector<1x8x128xf32>,
    return
  }
  func.func @transform_0(%arg0: i32) -> (i32, i32, i32) {
    %c0_i32 = arith.constant 0 : i32
    %c0_i32_0 = arith.constant 0 : i32
    %c0_i32_1 = arith.constant 0 : i32
    return %arg0, %c0_i32, %c0_i32_0 : i32, i32, i32
  }
  func.func @transform_1(%arg0: i32) -> (i32, i32, i32) {
    %c0_i32 = arith.constant 0 : i32
    %c0_i32_0 = arith.constant 0 : i32
    %c0_i32_1 = arith.constant 0 : i32
    return %arg0, %c0_i32, %c0_i32_0 : i32, i32, i32
  }
  func.func @transform_2(%arg0: i32) -> (i32, i32) {
    %c0_i32 = arith.constant 0 : i32
    %c0_i32_0 = arith.constant 0 : i32
    %c0_i32_1 = arith.constant 0 : i32
    return %c0_i32, %c0_i32_0 : i32, i32
  }
  func.func @transform_3(%arg0: i32) -> (i32, i32) {
    %c0_i32 = arith.constant 0 : i32
    %c0_i32_0 = arith.constant 0 : i32
    %c0_i32_1 = arith.constant 0 : i32
    return %c0_i32, %c0_i32_0 : i32, i32
  }
  func.func @transform_4(%arg0: i32) -> (i32, i32) {
    %c0_i32 = arith.constant 0 : i32
    %c0_i32_0 = arith.constant 0 : i32
    %c0_i32_1 = arith.constant 0 : i32
    return %c0_i32, %c0_i32_0 : i32, i32
  }
  func.func @transform_5(%arg0: i32) -> (i32, i32) {
    %c0_i32 = arith.constant 0 : i32
    %c0_i32_0 = arith.constant 0 : i32
    %c0_i32_1 = arith.constant 0 : i32
    return %c0_i32, %c0_i32_0 : i32, i32
  }
  func.func @transform_6(%arg0: i32) -> (i32, i32, i32) {
    %c0_i32 = arith.constant 0 : i32
    %c0_i32_0 = arith.constant 0 : i32
    %c0_i32_1 = arith.constant 0 : i32
    return %arg0, %c0_i32, %c0_i32_0 : i32, i32, i32
  }
  func.func @transform_7(%arg0: i32) -> (i32, i32, i32) {
    %c0_i32 = arith.constant 0 : i32
    %c0_i32_0 = arith.constant 0 : i32
    %c0_i32_1 = arith.constant 0 : i32
    return %arg0, %c0_i32, %c0_i32_0 : i32, i32, i32
  }
  func.func @transform_8(%arg0: i32) -> (i32, i32, i32) {
    %c0_i32 = arith.constant 0 : i32
    %c0_i32_0 = arith.constant 0 : i32
    %c0_i32_1 = arith.constant 0 : i32
    return %arg0, %c0_i32, %c0_i32_0 : i32, i32, i32
  }
}

</mosaic_0001>

<llo_original>
// kernel: bi_multi_head_attention_forward.2
$region0: #{bi_multi_head_attention_forward.2}
  #allocation0 [shape = 'u32[]', space=smem, size = 0x4, offset = 0x4, fixed_abs, tag = 'smem constant byte address 0x4 - core index']
  #allocation1 [shape = 'u32[72,128]{1,0:T(1,128)}', space=vmem, size = 0x9000, scoped, tag = 'internal scratch']
  %s0 = inlined_call_operand.vmem [shape: f32[2,128,128], index: 0, kind: input, shape index: {}]
  %s1 = inlined_call_operand.vmem [shape: f32[2,128,128], index: 1, kind: input, shape index: {}]
  %s2 = inlined_call_operand.vmem [shape: bf16[128,128], index: 2, kind: input, shape index: {}]
  %s3 = inlined_call_operand.vmem [shape: f32[1,128], index: 3, kind: input, shape index: {}]
  %s4 = inlined_call_operand.vmem [shape: bf16[128,128], index: 4, kind: input, shape index: {}]
  %s5 = inlined_call_operand.vmem [shape: f32[1,128], index: 5, kind: input, shape index: {}]
  %s6 = inlined_call_operand.vmem [shape: bf16[2,128,128], index: 6, kind: output, shape index: {0}]
  %s7 = inlined_call_operand.vmem [shape: bf16[2,128,128], index: 7, kind: output, shape index: {1}]
  %s8 = inlined_call_operand.vmem [shape: f32[2,8,128], index: 8, kind: output, shape index: {2}]
  %9 = xla_tuple %s6, %s7, %s8
  %s10 = sld [smem:[#allocation0]]
  $region73: #{bi_multi_head_attention_forward.2} parent=0
    _
  %s12 = ssub.s32 1, %s10
  %s13 = scalar_select 0, %s12, %s10
  loop: start=0, step=1, limit=4
  $region2: #{bi_multi_head_attention_forward.2} parent=0 // loop_pre_header
    _
  $region3: #{bi_multi_head_attention_forward.2} parent=0 // loop_header
    %s15 = sphi 0, %s19
    %p16 = scmp.ge.s32.totalorder %s15, 4
    %s25 = sphi 0, %s27
    %s28 = sphi 0, %s25
    %s29 = sphi 0, %s28
    %s45 = sphi 0, %s29
    %s51 = sphi 0, %s53
    %s54 = sphi 0, %s51
    %s55 = sphi 0, %s54
    %s71 = sphi 0, %s55
    %s75 = sphi 0, %s75
    %s77 = sphi 0, %s75
    %s78 = sphi 0, %s77
    %s92 = sphi 0, %s78
    %s96 = sphi 0, %s96
    %s98 = sphi 0, %s96
    %s99 = sphi 0, %s98
    %s113 = sphi 0, %s99
    %s117 = sphi 0, %s117
    %s119 = sphi 0, %s117
    %s120 = sphi 0, %s119
    %s134 = sphi 0, %s120
    %s138 = sphi 0, %s138
    %s140 = sphi 0, %s138
    %s141 = sphi 0, %s140
    %s155 = sphi 0, %s141
    %s161 = sphi 0, %s163
    %s164 = sphi 0, %s161
    %s165 = sphi 0, %s164
    %s181 = sphi 0, %s165
    %s187 = sphi 0, %s189
    %s190 = sphi 0, %s187
    %s191 = sphi 0, %s190
    %s207 = sphi 0, %s191
    %s213 = sphi 0, %s215
    %s216 = sphi 0, %s213
    %s217 = sphi 0, %s216
    %s233 = sphi 0, %s217
  $region4: #{bi_multi_head_attention_forward.2} parent=0 // loop_header_branch
    %18 = sbr.rel (%p16) target = $region8
  $region5: #{bi_multi_head_attention_forward.2} parent=0 // loop_body
    %s20 = ssub.s32 %s15, 1
    %s21 = ssub.s32 %s15, 2
    %s22 = sadd.s32 %s15, 1
    %s23 = ssub.s32 %s15, %s22
    %p24 = scmp.eq.s32.totalorder %s23, 0
    %s26 = sadd.s32 %s25, 1
    %s27 = scalar_select %p24, %s25, %s26
    %p30 = pneg %p24
    %p31 = scmp.eq.s32.totalorder %s15, 1
    %p32 = por %p30, %p31
    %p33 = scmp.ne.s32.totalorder %s25, %s28
    %p34 = scmp.eq.s32.totalorder %s15, 0
    %p35 = por %p33, %p34
    %p36 = scmp.ne.s32.totalorder %s25, %s28
    %p37 = scmp.eq.s32.totalorder %s20, 1
    %p38 = por %p36, %p37
    %p39 = scmp.ne.s32.totalorder %s28, %s29
    %p40 = scmp.eq.s32.totalorder %s20, 0
    %p41 = por %p39, %p40
    %p42 = scmp.ne.s32.totalorder %s28, %s29
    %p43 = scmp.eq.s32.totalorder %s21, 1
    %p44 = por %p42, %p43
    %p46 = scmp.ne.s32.totalorder %s29, %s45
    %p47 = scmp.eq.s32.totalorder %s21, 0
    %p48 = por %p46, %p47
    %s49 = ssub.s32 %s15, %s22
    %p50 = scmp.eq.s32.totalorder %s49, 0
    %s52 = sadd.s32 %s51, 1
    %s53 = scalar_select %p50, %s51, %s52
    %p56 = pneg %p50
    %p57 = scmp.eq.s32.totalorder %s15, 1
    %p58 = por %p56, %p57
    %p59 = scmp.ne.s32.totalorder %s51, %s54
    %p60 = scmp.eq.s32.totalorder %s15, 0
    %p61 = por %p59, %p60
    %p62 = scmp.ne.s32.totalorder %s51, %s54
    %p63 = scmp.eq.s32.totalorder %s20, 1
    %p64 = por %p62, %p63
    %p65 = scmp.ne.s32.totalorder %s54, %s55
    %p66 = scmp.eq.s32.totalorder %s20, 0
    %p67 = por %p65, %p66
    %p68 = scmp.ne.s32.totalorder %s54, %s55
    %p69 = scmp.eq.s32.totalorder %s21, 1
    %p70 = por %p68, %p69
    %p72 = scmp.ne.s32.totalorder %s55, %s71
    %p73 = scmp.eq.s32.totalorder %s21, 0
    %p74 = por %p72, %p73
    %s76 = sadd.s32 %s75, 1
    %p79 = scmp.eq.s32.totalorder %s15, 1
    %p80 = scmp.ne.s32.totalorder %s75, %s77
    %p81 = scmp.eq.s32.totalorder %s15, 0
    %p82 = por %p80, %p81
    %p83 = scmp.ne.s32.totalorder %s75, %s77
    %p84 = scmp.eq.s32.totalorder %s20, 1
    %p85 = por %p83, %p84
    %p86 = scmp.ne.s32.totalorder %s77, %s78
    %p87 = scmp.eq.s32.totalorder %s20, 0
    %p88 = por %p86, %p87
    %p89 = scmp.ne.s32.totalorder %s77, %s78
    %p90 = scmp.eq.s32.totalorder %s21, 1
    %p91 = por %p89, %p90
    %p93 = scmp.ne.s32.totalorder %s78, %s92
    %p94 = scmp.eq.s32.totalorder %s21, 0
    %p95 = por %p93, %p94
    %s97 = sadd.s32 %s96, 1
    %p100 = scmp.eq.s32.totalorder %s15, 1
    %p101 = scmp.ne.s32.totalorder %s96, %s98
    %p102 = scmp.eq.s32.totalorder %s15, 0
    %p103 = por %p101, %p102
    %p104 = scmp.ne.s32.totalorder %s96, %s98
    %p105 = scmp.eq.s32.totalorder %s20, 1
    %p106 = por %p104, %p105
    %p107 = scmp.ne.s32.totalorder %s98, %s99
    %p108 = scmp.eq.s32.totalorder %s20, 0
    %p109 = por %p107, %p108
    %p110 = scmp.ne.s32.totalorder %s98, %s99
    %p111 = scmp.eq.s32.totalorder %s21, 1
    %p112 = por %p110, %p111
    %p114 = scmp.ne.s32.totalorder %s99, %s113
    %p115 = scmp.eq.s32.totalorder %s21, 0
    %p116 = por %p114, %p115
    %s118 = sadd.s32 %s117, 1
    %p121 = scmp.eq.s32.totalorder %s15, 1
    %p122 = scmp.ne.s32.totalorder %s117, %s119
    %p123 = scmp.eq.s32.totalorder %s15, 0
    %p124 = por %p122, %p123
    %p125 = scmp.ne.s32.totalorder %s117, %s119
    %p126 = scmp.eq.s32.totalorder %s20, 1
    %p127 = por %p125, %p126
    %p128 = scmp.ne.s32.totalorder %s119, %s120
    %p129 = scmp.eq.s32.totalorder %s20, 0
    %p130 = por %p128, %p129
    %p131 = scmp.ne.s32.totalorder %s119, %s120
    %p132 = scmp.eq.s32.totalorder %s21, 1
    %p133 = por %p131, %p132
    %p135 = scmp.ne.s32.totalorder %s120, %s134
    %p136 = scmp.eq.s32.totalorder %s21, 0
    %p137 = por %p135, %p136
    %s139 = sadd.s32 %s138, 1
    %p142 = scmp.eq.s32.totalorder %s15, 1
    %p143 = scmp.ne.s32.totalorder %s138, %s140
    %p144 = scmp.eq.s32.totalorder %s15, 0
    %p145 = por %p143, %p144
    %p146 = scmp.ne.s32.totalorder %s138, %s140
    %p147 = scmp.eq.s32.totalorder %s20, 1
    %p148 = por %p146, %p147
    %p149 = scmp.ne.s32.totalorder %s140, %s141
    %p150 = scmp.eq.s32.totalorder %s20, 0
    %p151 = por %p149, %p150
    %p152 = scmp.ne.s32.totalorder %s140, %s141
    %p153 = scmp.eq.s32.totalorder %s21, 1
    %p154 = por %p152, %p153
    %p156 = scmp.ne.s32.totalorder %s141, %s155
    %p157 = scmp.eq.s32.totalorder %s21, 0
    %p158 = por %p156, %p157
    %s159 = ssub.s32 %s15, %s22
    %p160 = scmp.eq.s32.totalorder %s159, 0
    %s162 = sadd.s32 %s161, 1
    %s163 = scalar_select %p160, %s161, %s162
    %p166 = pneg %p160
    %p167 = scmp.eq.s32.totalorder %s15, 1
    %p168 = por %p166, %p167
    %p169 = scmp.ne.s32.totalorder %s161, %s164
    %p170 = scmp.eq.s32.totalorder %s15, 0
    %p171 = por %p169, %p170
    %p172 = scmp.ne.s32.totalorder %s161, %s164
    %p173 = scmp.eq.s32.totalorder %s20, 1
    %p174 = por %p172, %p173
    %p175 = scmp.ne.s32.totalorder %s164, %s165
    %p176 = scmp.eq.s32.totalorder %s20, 0
    %p177 = por %p175, %p176
    %p178 = scmp.ne.s32.totalorder %s164, %s165
    %p179 = scmp.eq.s32.totalorder %s21, 1
    %p180 = por %p178, %p179
    %p182 = scmp.ne.s32.totalorder %s165, %s181
    %p183 = scmp.eq.s32.totalorder %s21, 0
    %p184 = por %p182, %p183
    %s185 = ssub.s32 %s15, %s22
    %p186 = scmp.eq.s32.totalorder %s185, 0
    %s188 = sadd.s32 %s187, 1
    %s189 = scalar_select %p186, %s187, %s188
    %p192 = pneg %p186
    %p193 = scmp.eq.s32.totalorder %s15, 1
    %p194 = por %p192, %p193
    %p195 = scmp.ne.s32.totalorder %s187, %s190
    %p196 = scmp.eq.s32.totalorder %s15, 0
    %p197 = por %p195, %p196
    %p198 = scmp.ne.s32.totalorder %s187, %s190
    %p199 = scmp.eq.s32.totalorder %s20, 1
    %p200 = por %p198, %p199
    %p201 = scmp.ne.s32.totalorder %s190, %s191
    %p202 = scmp.eq.s32.totalorder %s20, 0
    %p203 = por %p201, %p202
    %p204 = scmp.ne.s32.totalorder %s190, %s191
    %p205 = scmp.eq.s32.totalorder %s21, 1
    %p206 = por %p204, %p205
    %p208 = scmp.ne.s32.totalorder %s191, %s207
    %p209 = scmp.eq.s32.totalorder %s21, 0
    %p210 = por %p208, %p209
    %s211 = ssub.s32 %s15, %s22
    %p212 = scmp.eq.s32.totalorder %s211, 0
    %s214 = sadd.s32 %s213, 1
    %s215 = scalar_select %p212, %s213, %s214
    %p218 = pneg %p212
    %p219 = scmp.eq.s32.totalorder %s15, 1
    %p220 = por %p218, %p219
    %p221 = scmp.ne.s32.totalorder %s213, %s216
    %p222 = scmp.eq.s32.totalorder %s15, 0
    %p223 = por %p221, %p222
    %p224 = scmp.ne.s32.totalorder %s213, %s216
    %p225 = scmp.eq.s32.totalorder %s20, 1
    %p226 = por %p224, %p225
    %p227 = scmp.ne.s32.totalorder %s216, %s217
    %p228 = scmp.eq.s32.totalorder %s20, 0
    %p229 = por %p227, %p228
    %p230 = scmp.ne.s32.totalorder %s216, %s217
    %p231 = scmp.eq.s32.totalorder %s21, 1
    %p232 = por %p230, %p231
    %p234 = scmp.ne.s32.totalorder %s217, %s233
    %p235 = scmp.eq.s32.totalorder %s21, 0
    %p236 = por %p234, %p235
    %p237 = scmp.le.s32.totalorder 1, %s15
    %p238 = scmp.lt.s32.totalorder %s15, 3
    %p239 = pnand %p237, %p238
    %p240 = pneg %p239
    // Predicated region
    $region9: #{bi_multi_head_attention_forward.2} parent=5 // pred_check
      _
    $region10: #{bi_multi_head_attention_forward.2} parent=5 // pred_check_branch
      %242 = sbr.rel (%p239) target = $region12
    $region11: #{bi_multi_head_attention_forward.2} parent=5 // pred_region
      %s243 = ssub.s32 %s15, 1
      // Predicated region
      $region13: #{bi_multi_head_attention_forward.2} parent=11 // pred_check
        %p244 = pneg %p88
      $region14: #{bi_multi_head_attention_forward.2} parent=11 // pred_check_branch
        %246 = sbr.rel (%p244) target = $region16
      $region15: #{bi_multi_head_attention_forward.2} parent=11 // pred_region
        _
      $region16: #{bi_multi_head_attention_forward.2} parent=11 // pred_fallthru
        _
      // Predicated region
      $region17: #{bi_multi_head_attention_forward.2} parent=11 // pred_check
        %p247 = pneg %p109
      $region18: #{bi_multi_head_attention_forward.2} parent=11 // pred_check_branch
        %249 = sbr.rel (%p247) target = $region20
      $region19: #{bi_multi_head_attention_forward.2} parent=11 // pred_region
        _
      $region20: #{bi_multi_head_attention_forward.2} parent=11 // pred_fallthru
        _
      // Predicated region
      $region21: #{bi_multi_head_attention_forward.2} parent=11 // pred_check
        %p250 = pneg %p130
      $region22: #{bi_multi_head_attention_forward.2} parent=11 // pred_check_branch
        %252 = sbr.rel (%p250) target = $region24
      $region23: #{bi_multi_head_attention_forward.2} parent=11 // pred_region
        _
      $region24: #{bi_multi_head_attention_forward.2} parent=11 // pred_fallthru
        _
      // Predicated region
      $region25: #{bi_multi_head_attention_forward.2} parent=11 // pred_check
        %p253 = pneg %p151
      $region26: #{bi_multi_head_attention_forward.2} parent=11 // pred_check_branch
        %255 = sbr.rel (%p253) target = $region28
      $region27: #{bi_multi_head_attention_forward.2} parent=11 // pred_region
        _
      $region28: #{bi_multi_head_attention_forward.2} parent=11 // pred_fallthru
        _
    $region12: #{bi_multi_head_attention_forward.2} parent=5 // pred_fallthru
      _
    %p256 = scmp.lt.s32.totalorder %s15, 2
    // Predicated region
    $region29: #{bi_multi_head_attention_forward.2} parent=5 // pred_check
      %p257 = pneg %p256
    $region30: #{bi_multi_head_attention_forward.2} parent=5 // pred_check_branch
      %259 = sbr.rel (%p257) target = $region32
    $region31: #{bi_multi_head_attention_forward.2} parent=5 // pred_region
      // Predicated region
      $region33: #{bi_multi_head_attention_forward.2} parent=31 // pred_check
        %p260 = pneg %p35
      $region34: #{bi_multi_head_attention_forward.2} parent=31 // pred_check_branch
        %262 = sbr.rel (%p260) target = $region36
      $region35: #{bi_multi_head_attention_forward.2} parent=31 // pred_region
        %p263 = scmp.lt.s32.totalorder %s15, 1
        %s264 = scalar_select %p263, %s15, 1
        %s265 = smul.addr %s264, 16
        %s266 = smul.addr %s265, 8
        %s267 = scalar_lea.vmem %s0, %s266
      $region36: #{bi_multi_head_attention_forward.2} parent=31 // pred_fallthru
        _
      // Predicated region
      $region37: #{bi_multi_head_attention_forward.2} parent=31 // pred_check
        %p268 = pneg %p61
      $region38: #{bi_multi_head_attention_forward.2} parent=31 // pred_check_branch
        %270 = sbr.rel (%p268) target = $region40
      $region39: #{bi_multi_head_attention_forward.2} parent=31 // pred_region
        %p271 = scmp.lt.s32.totalorder %s15, 1
        %s272 = scalar_select %p271, %s15, 1
        %s273 = smul.addr %s272, 16
        %s274 = smul.addr %s273, 8
        %s275 = scalar_lea.vmem %s1, %s274
      $region40: #{bi_multi_head_attention_forward.2} parent=31 // pred_fallthru
        _
    $region32: #{bi_multi_head_attention_forward.2} parent=5 // pred_fallthru
      _
    %p276 = scmp.le.s32.totalorder 1, %s15
    %p277 = scmp.lt.s32.totalorder %s15, 3
    %p278 = pnand %p276, %p277
    %p279 = pneg %p278
    // Predicated region
    $region41: #{bi_multi_head_attention_forward.2} parent=5 // pred_check
      _
    $region42: #{bi_multi_head_attention_forward.2} parent=5 // pred_check_branch
      %281 = sbr.rel (%p278) target = $region44
    $region43: #{bi_multi_head_attention_forward.2} parent=5 // pred_region
      %s282 = ssub.s32 %s15, 1
      %p283 = scmp.lt.s32.totalorder %s20, 1
      %s284 = scalar_select %p283, %s20, 1
      %s285 = smul.addr %s284, 16
      %s286 = smul.addr %s285, 8
      %s287 = scalar_lea.vmem %s0, %s286
      %p288 = pneg %p41
      %p289 = pneg %p38
      %p290 = scmp.lt.s32.totalorder %s20, 1
      %s291 = scalar_select %p290, %s20, 1
      %s292 = smul.addr %s291, 16
      %s293 = smul.addr %s292, 8
      %s294 = scalar_lea.vmem %s1, %s293
      %p295 = pneg %p67
      %p296 = pneg %p64
      %p297 = pneg %p88
      %p298 = pneg %p85
      %p299 = pneg %p109
      %p300 = pneg %p106
      %p301 = pneg %p130
      %p302 = pneg %p127
      %p303 = pneg %p151
      %p304 = pneg %p148
      %p305 = pneg %p177
      %p306 = pneg %p174
      %p307 = scmp.lt.s32.totalorder %s20, 1
      %s308 = scalar_select %p307, %s20, 1
      %s309 = smul.addr %s308, 16
      %s310 = smul.addr %s309, 4
      %s311 = scalar_lea.vmem %s6, %s310
      %p312 = pneg %p203
      %p313 = pneg %p200
      %p314 = scmp.lt.s32.totalorder %s20, 1
      %s315 = scalar_select %p314, %s20, 1
      %s316 = smul.addr %s315, 16
      %s317 = smul.addr %s316, 4
      %s318 = scalar_lea.vmem %s7, %s317
      %p319 = pneg %p229
      %p320 = pneg %p226
      %p321 = scmp.lt.s32.totalorder %s20, 1
      %s322 = scalar_select %p321, %s20, 1
      %s323 = smul.addr %s322, 8
      %s324 = scalar_lea.vmem %s8, %s323
      %p325 = scmp.lt.s32.totalorder %s20, 1
      %s326 = scalar_select %p325, %s20, 1
      %s327 = smul.addr %s326, 16
      %s328 = smul.addr %s327, 8
      %s329 = scalar_lea.vmem %s0, %s328
      %p330 = scmp.lt.s32.totalorder %s20, 1
      %s331 = scalar_select %p330, %s20, 1
      %s332 = smul.addr %s331, 16
      %s333 = smul.addr %s332, 8
      %s334 = scalar_lea.vmem %s1, %s333
      %p335 = scmp.lt.s32.totalorder %s20, 1
      %s336 = scalar_select %p335, %s20, 1
      %s337 = smul.addr %s336, 16
      %s338 = smul.addr %s337, 4
      %s339 = scalar_lea.vmem %s6, %s338
      %p340 = scmp.lt.s32.totalorder %s20, 1
      %s341 = scalar_select %p340, %s20, 1
      %s342 = smul.addr %s341, 16
      %s343 = smul.addr %s342, 4
      %s344 = scalar_lea.vmem %s7, %s343
      %p345 = scmp.lt.s32.totalorder %s20, 1
      %s346 = scalar_select %p345, %s20, 1
      %s347 = smul.addr %s346, 8
      %s348 = scalar_lea.vmem %s8, %s347
      %v349 = vld [vmem:[%s329] sm:$0xff]
      %v350 = vld [vmem:[%s329 + $0x8] sm:$0xff]
      %v351 = vld [vmem:[%s329 + $0x10] sm:$0xff]
      %v352 = vld [vmem:[%s329 + $0x18] sm:$0xff]
      %v353 = vld [vmem:[%s329 + $0x20] sm:$0xff]
      %v354 = vld [vmem:[%s329 + $0x28] sm:$0xff]
      %v355 = vld [vmem:[%s329 + $0x30] sm:$0xff]
      %v356 = vld [vmem:[%s329 + $0x38] sm:$0xff]
      %v357 = vld [vmem:[%s329 + $0x40] sm:$0xff]
      %v358 = vld [vmem:[%s329 + $0x48] sm:$0xff]
      %v359 = vld [vmem:[%s329 + $0x50] sm:$0xff]
      %v360 = vld [vmem:[%s329 + $0x58] sm:$0xff]
      %v361 = vld [vmem:[%s329 + $0x60] sm:$0xff]
      %v362 = vld [vmem:[%s329 + $0x68] sm:$0xff]
      %v363 = vld [vmem:[%s329 + $0x70] sm:$0xff]
      %v364 = vld [vmem:[%s329 + $0x78] sm:$0xff]
      %v365 = vpack.c.bf16 %v350, %v349
      %v366 = vpack.c.bf16 %v352, %v351
      %v367 = vpack.c.bf16 %v354, %v353
      %v368 = vpack.c.bf16 %v356, %v355
      %v369 = vpack.c.bf16 %v358, %v357
      %v370 = vpack.c.bf16 %v360, %v359
      %v371 = vpack.c.bf16 %v362, %v361
      %v372 = vpack.c.bf16 %v364, %v363
      %v373 = vld [vmem:[%s334] sm:$0xff]
      %v374 = vld [vmem:[%s334 + $0x8] sm:$0xff]
      %v375 = vld [vmem:[%s334 + $0x10] sm:$0xff]
      %v376 = vld [vmem:[%s334 + $0x18] sm:$0xff]
      %v377 = vld [vmem:[%s334 + $0x20] sm:$0xff]
      %v378 = vld [vmem:[%s334 + $0x28] sm:$0xff]
      %v379 = vld [vmem:[%s334 + $0x30] sm:$0xff]
      %v380 = vld [vmem:[%s334 + $0x38] sm:$0xff]
      %v381 = vld [vmem:[%s334 + $0x40] sm:$0xff]
      %v382 = vld [vmem:[%s334 + $0x48] sm:$0xff]
      %v383 = vld [vmem:[%s334 + $0x50] sm:$0xff]
      %v384 = vld [vmem:[%s334 + $0x58] sm:$0xff]
      %v385 = vld [vmem:[%s334 + $0x60] sm:$0xff]
      %v386 = vld [vmem:[%s334 + $0x68] sm:$0xff]
      %v387 = vld [vmem:[%s334 + $0x70] sm:$0xff]
      %v388 = vld [vmem:[%s334 + $0x78] sm:$0xff]
      %v389 = vpack.c.bf16 %v374, %v373
      %v390 = vpack.c.bf16 %v376, %v375
      %v391 = vpack.c.bf16 %v378, %v377
      %v392 = vpack.c.bf16 %v380, %v379
      %v393 = vpack.c.bf16 %v382, %v381
      %v394 = vpack.c.bf16 %v384, %v383
      %v395 = vpack.c.bf16 %v386, %v385
      %v396 = vpack.c.bf16 %v388, %v387
      %v397 = vld [vmem:[%s2] sm:$0xf]
      %v398 = vld [vmem:[%s2 + $0x4] sm:$0xf]
      %v399 = vld [vmem:[%s2 + $0x8] sm:$0xf]
      %v400 = vld [vmem:[%s2 + $0xc] sm:$0xf]
      %v401 = vld [vmem:[%s2 + $0x10] sm:$0xf]
      %v402 = vld [vmem:[%s2 + $0x14] sm:$0xf]
      %v403 = vld [vmem:[%s2 + $0x18] sm:$0xf]
      %v404 = vld [vmem:[%s2 + $0x1c] sm:$0xf]
      %v405 = vld [vmem:[%s2 + $0x20] sm:$0xf]
      %v406 = vld [vmem:[%s2 + $0x24] sm:$0xf]
      %v407 = vld [vmem:[%s2 + $0x28] sm:$0xf]
      %v408 = vld [vmem:[%s2 + $0x2c] sm:$0xf]
      %v409 = vld [vmem:[%s2 + $0x30] sm:$0xf]
      %v410 = vld [vmem:[%s2 + $0x34] sm:$0xf]
      %v411 = vld [vmem:[%s2 + $0x38] sm:$0xf]
      %v412 = vld [vmem:[%s2 + $0x3c] sm:$0xf]
      %v413 = vld [vmem:[%s3] sm:$0x1]
      %v415 = vperm.slane %v413, 0
      %v433 = vunpack.c.l.b16 %v397
      %v434 = vunpack.c.l.b16 %v398
      %v435 = vunpack.c.l.b16 %v399
      %v436 = vunpack.c.l.b16 %v400
      %v437 = vunpack.c.l.b16 %v401
      %v438 = vunpack.c.l.b16 %v402
      %v439 = vunpack.c.l.b16 %v403
      %v440 = vunpack.c.l.b16 %v404
      %v441 = vunpack.c.l.b16 %v405
      %v442 = vunpack.c.l.b16 %v406
      %v443 = vunpack.c.l.b16 %v407
      %v444 = vunpack.c.l.b16 %v408
      %v445 = vunpack.c.l.b16 %v409
      %v446 = vunpack.c.l.b16 %v410
      %v447 = vunpack.c.l.b16 %v411
      %v448 = vunpack.c.l.b16 %v412
      %v449 = vpack.c.b16 %v434, %v433
      %v450 = vpack.c.b16 %v436, %v435
      %v451 = vpack.c.b16 %v438, %v437
      %v452 = vpack.c.b16 %v440, %v439
      %v453 = vpack.c.b16 %v442, %v441
      %v454 = vpack.c.b16 %v444, %v443
      %v455 = vpack.c.b16 %v446, %v445
      %v456 = vpack.c.b16 %v448, %v447
      %465 = vmatpush.bf16.msra.mxu0 %v456
      %466 = vmatpush.bf16.msra.mxu0 %v455
      %467 = vmatpush.bf16.msra.mxu0 %v454
      %468 = vmatpush.bf16.msra.mxu0 %v453
      %469 = vmatpush.bf16.msra.mxu0 %v452
      %470 = vmatpush.bf16.msra.mxu0 %v451
      %471 = vmatpush.bf16.msra.mxu0 %v450
      %472 = vmatpush.bf16.msra.mxu0 %v449
      %473 = vmatmul.bf16.gmra.mxu0 %v365
      %v474 = vpop.f32.mrf.mxu0
      %v475 = vadd.f32 %v415, %v474
      %v476 = vpop.f32.mrf.mxu0
      %v477 = vadd.f32 %v415, %v476
      %478 = vmatmul.bf16.gmra.mxu0 %v366
      %v479 = vpop.f32.mrf.mxu0
      %v480 = vadd.f32 %v415, %v479
      %v481 = vpop.f32.mrf.mxu0
      %v482 = vadd.f32 %v415, %v481
      %483 = vmatmul.bf16.gmra.mxu0 %v367
      %v484 = vpop.f32.mrf.mxu0
      %v485 = vadd.f32 %v415, %v484
      %v486 = vpop.f32.mrf.mxu0
      %v487 = vadd.f32 %v415, %v486
      %488 = vmatmul.bf16.gmra.mxu0 %v368
      %v489 = vpop.f32.mrf.mxu0
      %v490 = vadd.f32 %v415, %v489
      %v491 = vpop.f32.mrf.mxu0
      %v492 = vadd.f32 %v415, %v491
      %493 = vmatmul.bf16.gmra.mxu0 %v369
      %v494 = vpop.f32.mrf.mxu0
      %v495 = vadd.f32 %v415, %v494
      %v496 = vpop.f32.mrf.mxu0
      %v497 = vadd.f32 %v415, %v496
      %498 = vmatmul.bf16.gmra.mxu0 %v370
      %v499 = vpop.f32.mrf.mxu0
      %v500 = vadd.f32 %v415, %v499
      %v501 = vpop.f32.mrf.mxu0
      %v502 = vadd.f32 %v415, %v501
      %503 = vmatmul.bf16.gmra.mxu0 %v371
      %v504 = vpop.f32.mrf.mxu0
      %v505 = vadd.f32 %v415, %v504
      %v506 = vpop.f32.mrf.mxu0
      %v507 = vadd.f32 %v415, %v506
      %508 = vmatmul.bf16.gmra.mxu0 %v372
      %v509 = vpop.f32.mrf.mxu0
      %v510 = vadd.f32 %v415, %v509
      %v511 = vpop.f32.mrf.mxu0
      %v512 = vadd.f32 %v415, %v511
      %513 = vdwg.mxu0
      %v514 = vmul.f32 %v475, 0.17677669
      %v515 = vmul.f32 %v477, 0.17677669
      %v516 = vmul.f32 %v480, 0.17677669
      %v517 = vmul.f32 %v482, 0.17677669
      %v518 = vmul.f32 %v485, 0.17677669
      %v519 = vmul.f32 %v487, 0.17677669
      %v520 = vmul.f32 %v490, 0.17677669
      %v521 = vmul.f32 %v492, 0.17677669
      %v522 = vmul.f32 %v495, 0.17677669
      %v523 = vmul.f32 %v497, 0.17677669
      %v524 = vmul.f32 %v500, 0.17677669
      %v525 = vmul.f32 %v502, 0.17677669
      %v526 = vmul.f32 %v505, 0.17677669
      %v527 = vmul.f32 %v507, 0.17677669
      %v528 = vmul.f32 %v510, 0.17677669
      %v529 = vmul.f32 %v512, 0.17677669
      %v530 = vpack.c.bf16 %v514, %v514
      %v531 = vpack.c.bf16 %v515, %v515
      %v532 = vpack.c.bf16 %v516, %v516
      %v533 = vpack.c.bf16 %v517, %v517
      %v534 = vpack.c.bf16 %v518, %v518
      %v535 = vpack.c.bf16 %v519, %v519
      %v536 = vpack.c.bf16 %v520, %v520
      %v537 = vpack.c.bf16 %v521, %v521
      %v538 = vpack.c.bf16 %v522, %v522
      %v539 = vpack.c.bf16 %v523, %v523
      %v540 = vpack.c.bf16 %v524, %v524
      %v541 = vpack.c.bf16 %v525, %v525
      %v542 = vpack.c.bf16 %v526, %v526
      %v543 = vpack.c.bf16 %v527, %v527
      %v544 = vpack.c.bf16 %v528, %v528
      %v545 = vpack.c.bf16 %v529, %v529
      %v546 = vld [vmem:[%s4] sm:$0xf]
      %v547 = vld [vmem:[%s4 + $0x4] sm:$0xf]
      %v548 = vld [vmem:[%s4 + $0x8] sm:$0xf]
      %v549 = vld [vmem:[%s4 + $0xc] sm:$0xf]
      %v550 = vld [vmem:[%s4 + $0x10] sm:$0xf]
      %v551 = vld [vmem:[%s4 + $0x14] sm:$0xf]
      %v552 = vld [vmem:[%s4 + $0x18] sm:$0xf]
      %v553 = vld [vmem:[%s4 + $0x1c] sm:$0xf]
      %v554 = vld [vmem:[%s4 + $0x20] sm:$0xf]
      %v555 = vld [vmem:[%s4 + $0x24] sm:$0xf]
      %v556 = vld [vmem:[%s4 + $0x28] sm:$0xf]
      %v557 = vld [vmem:[%s4 + $0x2c] sm:$0xf]
      %v558 = vld [vmem:[%s4 + $0x30] sm:$0xf]
      %v559 = vld [vmem:[%s4 + $0x34] sm:$0xf]
      %v560 = vld [vmem:[%s4 + $0x38] sm:$0xf]
      %v561 = vld [vmem:[%s4 + $0x3c] sm:$0xf]
      %v562 = vld [vmem:[%s5] sm:$0x1]
      %v564 = vperm.slane %v562, 0
      %v582 = vunpack.c.l.b16 %v546
      %v583 = vunpack.c.l.b16 %v547
      %v584 = vunpack.c.l.b16 %v548
      %v585 = vunpack.c.l.b16 %v549
      %v586 = vunpack.c.l.b16 %v550
      %v587 = vunpack.c.l.b16 %v551
      %v588 = vunpack.c.l.b16 %v552
      %v589 = vunpack.c.l.b16 %v553
      %v590 = vunpack.c.l.b16 %v554
      %v591 = vunpack.c.l.b16 %v555
      %v592 = vunpack.c.l.b16 %v556
      %v593 = vunpack.c.l.b16 %v557
      %v594 = vunpack.c.l.b16 %v558
      %v595 = vunpack.c.l.b16 %v559
      %v596 = vunpack.c.l.b16 %v560
      %v597 = vunpack.c.l.b16 %v561
      %v598 = vpack.c.b16 %v583, %v582
      %v599 = vpack.c.b16 %v585, %v584
      %v600 = vpack.c.b16 %v587, %v586
      %v601 = vpack.c.b16 %v589, %v588
      %v602 = vpack.c.b16 %v591, %v590
      %v603 = vpack.c.b16 %v593, %v592
      %v604 = vpack.c.b16 %v595, %v594
      %v605 = vpack.c.b16 %v597, %v596
      %614 = vmatpush.bf16.msra.mxu0 %v605
      %615 = vmatpush.bf16.msra.mxu0 %v604
      %616 = vmatpush.bf16.msra.mxu0 %v603
      %617 = vmatpush.bf16.msra.mxu0 %v602
      %618 = vmatpush.bf16.msra.mxu0 %v601
      %619 = vmatpush.bf16.msra.mxu0 %v600
      %620 = vmatpush.bf16.msra.mxu0 %v599
      %621 = vmatpush.bf16.msra.mxu0 %v598
      %622 = vmatmul.bf16.gmra.mxu0 %v389
      %v623 = vpop.f32.mrf.mxu0
      %v624 = vadd.f32 %v564, %v623
      %v625 = vpop.f32.mrf.mxu0
      %v626 = vadd.f32 %v564, %v625
      %627 = vmatmul.bf16.gmra.mxu0 %v390
      %v628 = vpop.f32.mrf.mxu0
      %v629 = vadd.f32 %v564, %v628
      %v630 = vpop.f32.mrf.mxu0
      %v631 = vadd.f32 %v564, %v630
      %632 = vmatmul.bf16.gmra.mxu0 %v391
      %v633 = vpop.f32.mrf.mxu0
      %v634 = vadd.f32 %v564, %v633
      %v635 = vpop.f32.mrf.mxu0
      %v636 = vadd.f32 %v564, %v635
      %637 = vmatmul.bf16.gmra.mxu0 %v392
      %v638 = vpop.f32.mrf.mxu0
      %v639 = vadd.f32 %v564, %v638
      %v640 = vpop.f32.mrf.mxu0
      %v641 = vadd.f32 %v564, %v640
      %642 = vmatmul.bf16.gmra.mxu0 %v393
      %v643 = vpop.f32.mrf.mxu0
      %v644 = vadd.f32 %v564, %v643
      %v645 = vpop.f32.mrf.mxu0
      %v646 = vadd.f32 %v564, %v645
      %647 = vmatmul.bf16.gmra.mxu0 %v394
      %v648 = vpop.f32.mrf.mxu0
      %v649 = vadd.f32 %v564, %v648
      %v650 = vpop.f32.mrf.mxu0
      %v651 = vadd.f32 %v564, %v650
      %652 = vmatmul.bf16.gmra.mxu0 %v395
      %v653 = vpop.f32.mrf.mxu0
      %v654 = vadd.f32 %v564, %v653
      %v655 = vpop.f32.mrf.mxu0
      %v656 = vadd.f32 %v564, %v655
      %657 = vmatmul.bf16.gmra.mxu0 %v396
      %v658 = vpop.f32.mrf.mxu0
      %v659 = vadd.f32 %v564, %v658
      %v660 = vpop.f32.mrf.mxu0
      %v661 = vadd.f32 %v564, %v660
      %662 = vdwg.mxu0
      %v663 = vpack.c.bf16 %v624, %v624
      %v664 = vpack.c.bf16 %v626, %v626
      %v665 = vpack.c.bf16 %v629, %v629
      %v666 = vpack.c.bf16 %v631, %v631
      %v667 = vpack.c.bf16 %v634, %v634
      %v668 = vpack.c.bf16 %v636, %v636
      %v669 = vpack.c.bf16 %v639, %v639
      %v670 = vpack.c.bf16 %v641, %v641
      %v671 = vpack.c.bf16 %v644, %v644
      %v672 = vpack.c.bf16 %v646, %v646
      %v673 = vpack.c.bf16 %v649, %v649
      %v674 = vpack.c.bf16 %v651, %v651
      %v675 = vpack.c.bf16 %v654, %v654
      %v676 = vpack.c.bf16 %v656, %v656
      %v677 = vpack.c.bf16 %v659, %v659
      %v678 = vpack.c.bf16 %v661, %v661
      %679 = vst [vmem:[%s339] sm:$0xf] %v530
      %680 = vst [vmem:[%s339 + $0x4] sm:$0xf] %v531
      %681 = vst [vmem:[%s339 + $0x8] sm:$0xf] %v532
      %682 = vst [vmem:[%s339 + $0xc] sm:$0xf] %v533
      %683 = vst [vmem:[%s339 + $0x10] sm:$0xf] %v534
      %684 = vst [vmem:[%s339 + $0x14] sm:$0xf] %v535
      %685 = vst [vmem:[%s339 + $0x18] sm:$0xf] %v536
      %686 = vst [vmem:[%s339 + $0x1c] sm:$0xf] %v537
      %687 = vst [vmem:[%s339 + $0x20] sm:$0xf] %v538
      %688 = vst [vmem:[%s339 + $0x24] sm:$0xf] %v539
      %689 = vst [vmem:[%s339 + $0x28] sm:$0xf] %v540
      %690 = vst [vmem:[%s339 + $0x2c] sm:$0xf] %v541
      %691 = vst [vmem:[%s339 + $0x30] sm:$0xf] %v542
      %692 = vst [vmem:[%s339 + $0x34] sm:$0xf] %v543
      %693 = vst [vmem:[%s339 + $0x38] sm:$0xf] %v544
      %694 = vst [vmem:[%s339 + $0x3c] sm:$0xf] %v545
      %695 = vst [vmem:[%s344] sm:$0xf] %v663
      %696 = vst [vmem:[%s344 + $0x4] sm:$0xf] %v664
      %697 = vst [vmem:[%s344 + $0x8] sm:$0xf] %v665
      %698 = vst [vmem:[%s344 + $0xc] sm:$0xf] %v666
      %699 = vst [vmem:[%s344 + $0x10] sm:$0xf] %v667
      %700 = vst [vmem:[%s344 + $0x14] sm:$0xf] %v668
      %701 = vst [vmem:[%s344 + $0x18] sm:$0xf] %v669
      %702 = vst [vmem:[%s344 + $0x1c] sm:$0xf] %v670
      %703 = vst [vmem:[%s344 + $0x20] sm:$0xf] %v671
      %704 = vst [vmem:[%s344 + $0x24] sm:$0xf] %v672
      %705 = vst [vmem:[%s344 + $0x28] sm:$0xf] %v673
      %706 = vst [vmem:[%s344 + $0x2c] sm:$0xf] %v674
      %707 = vst [vmem:[%s344 + $0x30] sm:$0xf] %v675
      %708 = vst [vmem:[%s344 + $0x34] sm:$0xf] %v676
      %709 = vst [vmem:[%s344 + $0x38] sm:$0xf] %v677
      %710 = vst [vmem:[%s344 + $0x3c] sm:$0xf] %v678
      %v727 = vunpack.c.l.b16 %v530
      %v728 = vunpack.c.l.b16 %v531
      %v729 = vunpack.c.l.b16 %v532
      %v730 = vunpack.c.l.b16 %v533
      %v731 = vunpack.c.l.b16 %v534
      %v732 = vunpack.c.l.b16 %v535
      %v733 = vunpack.c.l.b16 %v536
      %v734 = vunpack.c.l.b16 %v537
      %v735 = vunpack.c.l.b16 %v538
      %v736 = vunpack.c.l.b16 %v539
      %v737 = vunpack.c.l.b16 %v540
      %v738 = vunpack.c.l.b16 %v541
      %v739 = vunpack.c.l.b16 %v542
      %v740 = vunpack.c.l.b16 %v543
      %v741 = vunpack.c.l.b16 %v544
      %v742 = vunpack.c.l.b16 %v545
      %v743 = vpack.c.b16 %v728, %v727
      %v744 = vpack.c.b16 %v730, %v729
      %v745 = vpack.c.b16 %v732, %v731
      %v746 = vpack.c.b16 %v734, %v733
      %v747 = vpack.c.b16 %v736, %v735
      %v748 = vpack.c.b16 %v738, %v737
      %v749 = vpack.c.b16 %v740, %v739
      %v750 = vpack.c.b16 %v742, %v741
      %v767 = vunpack.c.l.b16 %v663
      %v768 = vunpack.c.l.b16 %v664
      %v769 = vunpack.c.l.b16 %v665
      %v770 = vunpack.c.l.b16 %v666
      %v771 = vunpack.c.l.b16 %v667
      %v772 = vunpack.c.l.b16 %v668
      %v773 = vunpack.c.l.b16 %v669
      %v774 = vunpack.c.l.b16 %v670
      %v775 = vunpack.c.l.b16 %v671
      %v776 = vunpack.c.l.b16 %v672
      %v777 = vunpack.c.l.b16 %v673
      %v778 = vunpack.c.l.b16 %v674
      %v779 = vunpack.c.l.b16 %v675
      %v780 = vunpack.c.l.b16 %v676
      %v781 = vunpack.c.l.b16 %v677
      %v782 = vunpack.c.l.b16 %v678
      %v783 = vpack.c.b16 %v768, %v767
      %v784 = vpack.c.b16 %v770, %v769
      %v785 = vpack.c.b16 %v772, %v771
      %v786 = vpack.c.b16 %v774, %v773
      %v787 = vpack.c.b16 %v776, %v775
      %v788 = vpack.c.b16 %v778, %v777
      %v789 = vpack.c.b16 %v780, %v779
      %v790 = vpack.c.b16 %v782, %v781
      %vm791 = vcmask 261120
      %v793 = vsel %vm791, %v743, 0
      %v796 = vsel %vm791, %v744, 0
      %v799 = vsel %vm791, %v745, 0
      %v802 = vsel %vm791, %v746, 0
      %v805 = vsel %vm791, %v747, 0
      %v808 = vsel %vm791, %v748, 0
      %v811 = vsel %vm791, %v749, 0
      %v814 = vsel %vm791, %v750, 0
      %v817 = vsel %vm791, %v783, 0
      %v820 = vsel %vm791, %v784, 0
      %v823 = vsel %vm791, %v785, 0
      %v826 = vsel %vm791, %v786, 0
      %v829 = vsel %vm791, %v787, 0
      %v832 = vsel %vm791, %v788, 0
      %v835 = vsel %vm791, %v789, 0
      %v838 = vsel %vm791, %v790, 0
      %840 = vmatpush.bf16.xpose.msra.mxu0 %v838
      %841 = vmatpush.bf16.xpose.msra.mxu0 %v835
      %842 = vmatpush.bf16.xpose.msra.mxu0 %v832
      %843 = vmatpush.bf16.xpose.msra.mxu0 %v829
      %844 = vmatpush.bf16.xpose.msra.mxu0 %v826
      %845 = vmatpush.bf16.xpose.msra.mxu0 %v823
      %846 = vmatpush.bf16.xpose.msra.mxu0 %v820
      %847 = vmatpush.bf16.xpose.msra.mxu0 %v817
      %848 = vmatmul.bf16.gmra.mxu0 %v793
      %v849 = vpop.f32.mrf.mxu0
      %v850 = vadd.f32 0.0, %v849
      %v851 = vpop.f32.mrf.mxu0
      %v852 = vadd.f32 0.0, %v851
      %853 = vmatmul.bf16.gmra.mxu0 %v796
      %v854 = vpop.f32.mrf.mxu0
      %v855 = vadd.f32 0.0, %v854
      %v856 = vpop.f32.mrf.mxu0
      %v857 = vadd.f32 0.0, %v856
      %858 = vmatmul.bf16.gmra.mxu0 %v799
      %v859 = vpop.f32.mrf.mxu0
      %v860 = vadd.f32 0.0, %v859
      %v861 = vpop.f32.mrf.mxu0
      %v862 = vadd.f32 0.0, %v861
      %863 = vmatmul.bf16.gmra.mxu0 %v802
      %v864 = vpop.f32.mrf.mxu0
      %v865 = vadd.f32 0.0, %v864
      %v866 = vpop.f32.mrf.mxu0
      %v867 = vadd.f32 0.0, %v866
      %868 = vmatmul.bf16.gmra.mxu0 %v805
      %v869 = vpop.f32.mrf.mxu0
      %v870 = vadd.f32 0.0, %v869
      %v871 = vpop.f32.mrf.mxu0
      %v872 = vadd.f32 0.0, %v871
      %873 = vmatmul.bf16.gmra.mxu0 %v808
      %v874 = vpop.f32.mrf.mxu0
      %v875 = vadd.f32 0.0, %v874
      %v876 = vpop.f32.mrf.mxu0
      %v877 = vadd.f32 0.0, %v876
      %878 = vmatmul.bf16.gmra.mxu0 %v811
      %v879 = vpop.f32.mrf.mxu0
      %v880 = vadd.f32 0.0, %v879
      %v881 = vpop.f32.mrf.mxu0
      %v882 = vadd.f32 0.0, %v881
      %883 = vmatmul.bf16.gmra.mxu0 %v814
      %v884 = vpop.f32.mrf.mxu0
      %v885 = vadd.f32 0.0, %v884
      %v886 = vpop.f32.mrf.mxu0
      %v887 = vadd.f32 0.0, %v886
      %888 = vdwg.mxu0
      %889 = vmax.xlane.f32.xlu0 %v850
      %v890 = vpop.xlane.xlu0 %889
      %891 = vmax.xlane.f32.xlu0 %v852
      %v892 = vpop.xlane.xlu0 %891
      %893 = vmax.xlane.f32.xlu0 %v855
      %v894 = vpop.xlane.xlu0 %893
      %895 = vmax.xlane.f32.xlu0 %v857
      %v896 = vpop.xlane.xlu0 %895
      %897 = vmax.xlane.f32.xlu0 %v860
      %v898 = vpop.xlane.xlu0 %897
      %899 = vmax.xlane.f32.xlu0 %v862
      %v900 = vpop.xlane.xlu0 %899
      %901 = vmax.xlane.f32.xlu0 %v865
      %v902 = vpop.xlane.xlu0 %901
      %903 = vmax.xlane.f32.xlu0 %v867
      %v904 = vpop.xlane.xlu0 %903
      %905 = vmax.xlane.f32.xlu0 %v870
      %v906 = vpop.xlane.xlu0 %905
      %907 = vmax.xlane.f32.xlu0 %v872
      %v908 = vpop.xlane.xlu0 %907
      %909 = vmax.xlane.f32.xlu0 %v875
      %v910 = vpop.xlane.xlu0 %909
      %911 = vmax.xlane.f32.xlu0 %v877
      %v912 = vpop.xlane.xlu0 %911
      %913 = vmax.xlane.f32.xlu0 %v880
      %v914 = vpop.xlane.xlu0 %913
      %915 = vmax.xlane.f32.xlu0 %v882
      %v916 = vpop.xlane.xlu0 %915
      %917 = vmax.xlane.f32.xlu0 %v885
      %v918 = vpop.xlane.xlu0 %917
      %919 = vmax.xlane.f32.xlu0 %v887
      %v920 = vpop.xlane.xlu0 %919
      %v921 = vmax.f32 %v890, %v898
      %v922 = vmax.f32 %v892, %v900
      %v923 = vmax.f32 %v894, %v902
      %v924 = vmax.f32 %v896, %v904
      %v925 = vmax.f32 %v921, %v906
      %v926 = vmax.f32 %v922, %v908
      %v927 = vmax.f32 %v923, %v910
      %v928 = vmax.f32 %v924, %v912
      %v929 = vmax.f32 %v925, %v914
      %v930 = vmax.f32 %v926, %v916
      %v931 = vmax.f32 %v927, %v918
      %v932 = vmax.f32 %v928, %v920
      %v933 = vmax.f32 %v929, %v930
      %v934 = vmax.f32 %v931, %v932
      %v935 = vmax.f32 %v933, %v934
      %v936 = vrot.slane %v935, 4
      %v937 = vmax.f32 %v935, %v936
      %v938 = vrot.slane %v937, 2
      %v939 = vmax.f32 %v937, %v938
      %v940 = vrot.slane %v939, 1
      %v941 = vmax.f32 %v939, %v940
      %942 = vrot.lane.b32.xlu0 %v743, 96
      %v943 = vpop.permute.xlu0 %942
      %944 = vrot.lane.b32.xlu0 %v744, 96
      %v945 = vpop.permute.xlu0 %944
      %946 = vrot.lane.b32.xlu0 %v745, 96
      %v947 = vpop.permute.xlu0 %946
      %948 = vrot.lane.b32.xlu0 %v746, 96
      %v949 = vpop.permute.xlu0 %948
      %950 = vrot.lane.b32.xlu0 %v747, 96
      %v951 = vpop.permute.xlu0 %950
      %952 = vrot.lane.b32.xlu0 %v748, 96
      %v953 = vpop.permute.xlu0 %952
      %954 = vrot.lane.b32.xlu0 %v749, 96
      %v955 = vpop.permute.xlu0 %954
      %956 = vrot.lane.b32.xlu0 %v750, 96
      %v957 = vpop.permute.xlu0 %956
      %958 = vrot.lane.b32.xlu0 %v783, 96
      %v959 = vpop.permute.xlu0 %958
      %960 = vrot.lane.b32.xlu0 %v784, 96
      %v961 = vpop.permute.xlu0 %960
      %962 = vrot.lane.b32.xlu0 %v785, 96
      %v963 = vpop.permute.xlu0 %962
      %964 = vrot.lane.b32.xlu0 %v786, 96
      %v965 = vpop.permute.xlu0 %964
      %966 = vrot.lane.b32.xlu0 %v787, 96
      %v967 = vpop.permute.xlu0 %966
      %968 = vrot.lane.b32.xlu0 %v788, 96
      %v969 = vpop.permute.xlu0 %968
      %970 = vrot.lane.b32.xlu0 %v789, 96
      %v971 = vpop.permute.xlu0 %970
      %972 = vrot.lane.b32.xlu0 %v790, 96
      %v973 = vpop.permute.xlu0 %972
      %v975 = vsel %vm791, %v943, 0
      %v978 = vsel %vm791, %v945, 0
      %v981 = vsel %vm791, %v947, 0
      %v984 = vsel %vm791, %v949, 0
      %v987 = vsel %vm791, %v951, 0
      %v990 = vsel %vm791, %v953, 0
      %v993 = vsel %vm791, %v955, 0
      %v996 = vsel %vm791, %v957, 0
      %v999 = vsel %vm791, %v959, 0
      %v1002 = vsel %vm791, %v961, 0
      %v1005 = vsel %vm791, %v963, 0
      %v1008 = vsel %vm791, %v965, 0
      %v1011 = vsel %vm791, %v967, 0
      %v1014 = vsel %vm791, %v969, 0
      %v1017 = vsel %vm791, %v971, 0
      %v1020 = vsel %vm791, %v973, 0
      %1022 = vmatpush.bf16.xpose.msra.mxu0 %v1020
      %1023 = vmatpush.bf16.xpose.msra.mxu0 %v1017
      %1024 = vmatpush.bf16.xpose.msra.mxu0 %v1014
      %1025 = vmatpush.bf16.xpose.msra.mxu0 %v1011
      %1026 = vmatpush.bf16.xpose.msra.mxu0 %v1008
      %1027 = vmatpush.bf16.xpose.msra.mxu0 %v1005
      %1028 = vmatpush.bf16.xpose.msra.mxu0 %v1002
      %1029 = vmatpush.bf16.xpose.msra.mxu0 %v999
      %1030 = vmatmul.bf16.gmra.mxu0 %v975
      %v1031 = vpop.f32.mrf.mxu0
      %v1032 = vadd.f32 0.0, %v1031
      %v1033 = vpop.f32.mrf.mxu0
      %v1034 = vadd.f32 0.0, %v1033
      %1035 = vmatmul.bf16.gmra.mxu0 %v978
      %v1036 = vpop.f32.mrf.mxu0
      %v1037 = vadd.f32 0.0, %v1036
      %v1038 = vpop.f32.mrf.mxu0
      %v1039 = vadd.f32 0.0, %v1038
      %1040 = vmatmul.bf16.gmra.mxu0 %v981
      %v1041 = vpop.f32.mrf.mxu0
      %v1042 = vadd.f32 0.0, %v1041
      %v1043 = vpop.f32.mrf.mxu0
      %v1044 = vadd.f32 0.0, %v1043
      %1045 = vmatmul.bf16.gmra.mxu0 %v984
      %v1046 = vpop.f32.mrf.mxu0
      %v1047 = vadd.f32 0.0, %v1046
      %v1048 = vpop.f32.mrf.mxu0
      %v1049 = vadd.f32 0.0, %v1048
      %1050 = vmatmul.bf16.gmra.mxu0 %v987
      %v1051 = vpop.f32.mrf.mxu0
      %v1052 = vadd.f32 0.0, %v1051
      %v1053 = vpop.f32.mrf.mxu0
      %v1054 = vadd.f32 0.0, %v1053
      %1055 = vmatmul.bf16.gmra.mxu0 %v990
      %v1056 = vpop.f32.mrf.mxu0
      %v1057 = vadd.f32 0.0, %v1056
      %v1058 = vpop.f32.mrf.mxu0
      %v1059 = vadd.f32 0.0, %v1058
      %1060 = vmatmul.bf16.gmra.mxu0 %v993
      %v1061 = vpop.f32.mrf.mxu0
      %v1062 = vadd.f32 0.0, %v1061
      %v1063 = vpop.f32.mrf.mxu0
      %v1064 = vadd.f32 0.0, %v1063
      %1065 = vmatmul.bf16.gmra.mxu0 %v996
      %v1066 = vpop.f32.mrf.mxu0
      %v1067 = vadd.f32 0.0, %v1066
      %v1068 = vpop.f32.mrf.mxu0
      %v1069 = vadd.f32 0.0, %v1068
      %1070 = vdwg.mxu0
      %1071 = vmax.xlane.f32.xlu0 %v1032
      %v1072 = vpop.xlane.xlu0 %1071
      %1073 = vmax.xlane.f32.xlu0 %v1034
      %v1074 = vpop.xlane.xlu0 %1073
      %1075 = vmax.xlane.f32.xlu0 %v1037
      %v1076 = vpop.xlane.xlu0 %1075
      %1077 = vmax.xlane.f32.xlu0 %v1039
      %v1078 = vpop.xlane.xlu0 %1077
      %1079 = vmax.xlane.f32.xlu0 %v1042
      %v1080 = vpop.xlane.xlu0 %1079
      %1081 = vmax.xlane.f32.xlu0 %v1044
      %v1082 = vpop.xlane.xlu0 %1081
      %1083 = vmax.xlane.f32.xlu0 %v1047
      %v1084 = vpop.xlane.xlu0 %1083
      %1085 = vmax.xlane.f32.xlu0 %v1049
      %v1086 = vpop.xlane.xlu0 %1085
      %1087 = vmax.xlane.f32.xlu0 %v1052
      %v1088 = vpop.xlane.xlu0 %1087
      %1089 = vmax.xlane.f32.xlu0 %v1054
      %v1090 = vpop.xlane.xlu0 %1089
      %1091 = vmax.xlane.f32.xlu0 %v1057
      %v1092 = vpop.xlane.xlu0 %1091
      %1093 = vmax.xlane.f32.xlu0 %v1059
      %v1094 = vpop.xlane.xlu0 %1093
      %1095 = vmax.xlane.f32.xlu0 %v1062
      %v1096 = vpop.xlane.xlu0 %1095
      %1097 = vmax.xlane.f32.xlu0 %v1064
      %v1098 = vpop.xlane.xlu0 %1097
      %1099 = vmax.xlane.f32.xlu0 %v1067
      %v1100 = vpop.xlane.xlu0 %1099
      %1101 = vmax.xlane.f32.xlu0 %v1069
      %v1102 = vpop.xlane.xlu0 %1101
      %v1103 = vmax.f32 %v1072, %v1080
      %v1104 = vmax.f32 %v1074, %v1082
      %v1105 = vmax.f32 %v1076, %v1084
      %v1106 = vmax.f32 %v1078, %v1086
      %v1107 = vmax.f32 %v1103, %v1088
      %v1108 = vmax.f32 %v1104, %v1090
      %v1109 = vmax.f32 %v1105, %v1092
      %v1110 = vmax.f32 %v1106, %v1094
      %v1111 = vmax.f32 %v1107, %v1096
      %v1112 = vmax.f32 %v1108, %v1098
      %v1113 = vmax.f32 %v1109, %v1100
      %v1114 = vmax.f32 %v1110, %v1102
      %v1115 = vmax.f32 %v1111, %v1112
      %v1116 = vmax.f32 %v1113, %v1114
      %v1117 = vmax.f32 %v1115, %v1116
      %v1118 = vrot.slane %v1117, 4
      %v1119 = vmax.f32 %v1117, %v1118
      %v1120 = vrot.slane %v1119, 2
      %v1121 = vmax.f32 %v1119, %v1120
      %v1122 = vrot.slane %v1121, 1
      %v1123 = vmax.f32 %v1121, %v1122
      %v1124 = vmax.f32 %v941, %v1123
      %1125 = vrot.lane.b32.xlu0 %v743, 64
      %v1126 = vpop.permute.xlu0 %1125
      %1127 = vrot.lane.b32.xlu0 %v744, 64
      %v1128 = vpop.permute.xlu0 %1127
      %1129 = vrot.lane.b32.xlu0 %v745, 64
      %v1130 = vpop.permute.xlu0 %1129
      %1131 = vrot.lane.b32.xlu0 %v746, 64
      %v1132 = vpop.permute.xlu0 %1131
      %1133 = vrot.lane.b32.xlu0 %v747, 64
      %v1134 = vpop.permute.xlu0 %1133
      %1135 = vrot.lane.b32.xlu0 %v748, 64
      %v1136 = vpop.permute.xlu0 %1135
      %1137 = vrot.lane.b32.xlu0 %v749, 64
      %v1138 = vpop.permute.xlu0 %1137
      %1139 = vrot.lane.b32.xlu0 %v750, 64
      %v1140 = vpop.permute.xlu0 %1139
      %1141 = vrot.lane.b32.xlu0 %v783, 64
      %v1142 = vpop.permute.xlu0 %1141
      %1143 = vrot.lane.b32.xlu0 %v784, 64
      %v1144 = vpop.permute.xlu0 %1143
      %1145 = vrot.lane.b32.xlu0 %v785, 64
      %v1146 = vpop.permute.xlu0 %1145
      %1147 = vrot.lane.b32.xlu0 %v786, 64
      %v1148 = vpop.permute.xlu0 %1147
      %1149 = vrot.lane.b32.xlu0 %v787, 64
      %v1150 = vpop.permute.xlu0 %1149
      %1151 = vrot.lane.b32.xlu0 %v788, 64
      %v1152 = vpop.permute.xlu0 %1151
      %1153 = vrot.lane.b32.xlu0 %v789, 64
      %v1154 = vpop.permute.xlu0 %1153
      %1155 = vrot.lane.b32.xlu0 %v790, 64
      %v1156 = vpop.permute.xlu0 %1155
      %v1158 = vsel %vm791, %v1126, 0
      %v1161 = vsel %vm791, %v1128, 0
      %v1164 = vsel %vm791, %v1130, 0
      %v1167 = vsel %vm791, %v1132, 0
      %v1170 = vsel %vm791, %v1134, 0
      %v1173 = vsel %vm791, %v1136, 0
      %v1176 = vsel %vm791, %v1138, 0
      %v1179 = vsel %vm791, %v1140, 0
      %v1182 = vsel %vm791, %v1142, 0
      %v1185 = vsel %vm791, %v1144, 0
      %v1188 = vsel %vm791, %v1146, 0
      %v1191 = vsel %vm791, %v1148, 0
      %v1194 = vsel %vm791, %v1150, 0
      %v1197 = vsel %vm791, %v1152, 0
      %v1200 = vsel %vm791, %v1154, 0
      %v1203 = vsel %vm791, %v1156, 0
      %1205 = vmatpush.bf16.xpose.msra.mxu0 %v1203
      %1206 = vmatpush.bf16.xpose.msra.mxu0 %v1200
      %1207 = vmatpush.bf16.xpose.msra.mxu0 %v1197
      %1208 = vmatpush.bf16.xpose.msra.mxu0 %v1194
      %1209 = vmatpush.bf16.xpose.msra.mxu0 %v1191
      %1210 = vmatpush.bf16.xpose.msra.mxu0 %v1188
      %1211 = vmatpush.bf16.xpose.msra.mxu0 %v1185
      %1212 = vmatpush.bf16.xpose.msra.mxu0 %v1182
      %1213 = vmatmul.bf16.gmra.mxu0 %v1158
      %v1214 = vpop.f32.mrf.mxu0
      %v1215 = vadd.f32 0.0, %v1214
      %v1216 = vpop.f32.mrf.mxu0
      %v1217 = vadd.f32 0.0, %v1216
      %1218 = vmatmul.bf16.gmra.mxu0 %v1161
      %v1219 = vpop.f32.mrf.mxu0
      %v1220 = vadd.f32 0.0, %v1219
      %v1221 = vpop.f32.mrf.mxu0
      %v1222 = vadd.f32 0.0, %v1221
      %1223 = vmatmul.bf16.gmra.mxu0 %v1164
      %v1224 = vpop.f32.mrf.mxu0
      %v1225 = vadd.f32 0.0, %v1224
      %v1226 = vpop.f32.mrf.mxu0
      %v1227 = vadd.f32 0.0, %v1226
      %1228 = vmatmul.bf16.gmra.mxu0 %v1167
      %v1229 = vpop.f32.mrf.mxu0
      %v1230 = vadd.f32 0.0, %v1229
      %v1231 = vpop.f32.mrf.mxu0
      %v1232 = vadd.f32 0.0, %v1231
      %1233 = vmatmul.bf16.gmra.mxu0 %v1170
      %v1234 = vpop.f32.mrf.mxu0
      %v1235 = vadd.f32 0.0, %v1234
      %v1236 = vpop.f32.mrf.mxu0
      %v1237 = vadd.f32 0.0, %v1236
      %1238 = vmatmul.bf16.gmra.mxu0 %v1173
      %v1239 = vpop.f32.mrf.mxu0
      %v1240 = vadd.f32 0.0, %v1239
      %v1241 = vpop.f32.mrf.mxu0
      %v1242 = vadd.f32 0.0, %v1241
      %1243 = vmatmul.bf16.gmra.mxu0 %v1176
      %v1244 = vpop.f32.mrf.mxu0
      %v1245 = vadd.f32 0.0, %v1244
      %v1246 = vpop.f32.mrf.mxu0
      %v1247 = vadd.f32 0.0, %v1246
      %1248 = vmatmul.bf16.gmra.mxu0 %v1179
      %v1249 = vpop.f32.mrf.mxu0
      %v1250 = vadd.f32 0.0, %v1249
      %v1251 = vpop.f32.mrf.mxu0
      %v1252 = vadd.f32 0.0, %v1251
      %1253 = vdwg.mxu0
      %1254 = vmax.xlane.f32.xlu0 %v1215
      %v1255 = vpop.xlane.xlu0 %1254
      %1256 = vmax.xlane.f32.xlu0 %v1217
      %v1257 = vpop.xlane.xlu0 %1256
      %1258 = vmax.xlane.f32.xlu0 %v1220
      %v1259 = vpop.xlane.xlu0 %1258
      %1260 = vmax.xlane.f32.xlu0 %v1222
      %v1261 = vpop.xlane.xlu0 %1260
      %1262 = vmax.xlane.f32.xlu0 %v1225
      %v1263 = vpop.xlane.xlu0 %1262
      %1264 = vmax.xlane.f32.xlu0 %v1227
      %v1265 = vpop.xlane.xlu0 %1264
      %1266 = vmax.xlane.f32.xlu0 %v1230
      %v1267 = vpop.xlane.xlu0 %1266
      %1268 = vmax.xlane.f32.xlu0 %v1232
      %v1269 = vpop.xlane.xlu0 %1268
      %1270 = vmax.xlane.f32.xlu0 %v1235
      %v1271 = vpop.xlane.xlu0 %1270
      %1272 = vmax.xlane.f32.xlu0 %v1237
      %v1273 = vpop.xlane.xlu0 %1272
      %1274 = vmax.xlane.f32.xlu0 %v1240
      %v1275 = vpop.xlane.xlu0 %1274
      %1276 = vmax.xlane.f32.xlu0 %v1242
      %v1277 = vpop.xlane.xlu0 %1276
      %1278 = vmax.xlane.f32.xlu0 %v1245
      %v1279 = vpop.xlane.xlu0 %1278
      %1280 = vmax.xlane.f32.xlu0 %v1247
      %v1281 = vpop.xlane.xlu0 %1280
      %1282 = vmax.xlane.f32.xlu0 %v1250
      %v1283 = vpop.xlane.xlu0 %1282
      %1284 = vmax.xlane.f32.xlu0 %v1252
      %v1285 = vpop.xlane.xlu0 %1284
      %v1286 = vmax.f32 %v1255, %v1263
      %v1287 = vmax.f32 %v1257, %v1265
      %v1288 = vmax.f32 %v1259, %v1267
      %v1289 = vmax.f32 %v1261, %v1269
      %v1290 = vmax.f32 %v1286, %v1271
      %v1291 = vmax.f32 %v1287, %v1273
      %v1292 = vmax.f32 %v1288, %v1275
      %v1293 = vmax.f32 %v1289, %v1277
      %v1294 = vmax.f32 %v1290, %v1279
      %v1295 = vmax.f32 %v1291, %v1281
      %v1296 = vmax.f32 %v1292, %v1283
      %v1297 = vmax.f32 %v1293, %v1285
      %v1298 = vmax.f32 %v1294, %v1295
      %v1299 = vmax.f32 %v1296, %v1297
      %v1300 = vmax.f32 %v1298, %v1299
      %v1301 = vrot.slane %v1300, 4
      %v1302 = vmax.f32 %v1300, %v1301
      %v1303 = vrot.slane %v1302, 2
      %v1304 = vmax.f32 %v1302, %v1303
      %v1305 = vrot.slane %v1304, 1
      %v1306 = vmax.f32 %v1304, %v1305
      %v1307 = vmax.f32 %v1124, %v1306
      %1308 = vrot.lane.b32.xlu0 %v743, 32
      %v1309 = vpop.permute.xlu0 %1308
      %1310 = vrot.lane.b32.xlu0 %v744, 32
      %v1311 = vpop.permute.xlu0 %1310
      %1312 = vrot.lane.b32.xlu0 %v745, 32
      %v1313 = vpop.permute.xlu0 %1312
      %1314 = vrot.lane.b32.xlu0 %v746, 32
      %v1315 = vpop.permute.xlu0 %1314
      %1316 = vrot.lane.b32.xlu0 %v747, 32
      %v1317 = vpop.permute.xlu0 %1316
      %1318 = vrot.lane.b32.xlu0 %v748, 32
      %v1319 = vpop.permute.xlu0 %1318
      %1320 = vrot.lane.b32.xlu0 %v749, 32
      %v1321 = vpop.permute.xlu0 %1320
      %1322 = vrot.lane.b32.xlu0 %v750, 32
      %v1323 = vpop.permute.xlu0 %1322
      %1324 = vrot.lane.b32.xlu0 %v783, 32
      %v1325 = vpop.permute.xlu0 %1324
      %1326 = vrot.lane.b32.xlu0 %v784, 32
      %v1327 = vpop.permute.xlu0 %1326
      %1328 = vrot.lane.b32.xlu0 %v785, 32
      %v1329 = vpop.permute.xlu0 %1328
      %1330 = vrot.lane.b32.xlu0 %v786, 32
      %v1331 = vpop.permute.xlu0 %1330
      %1332 = vrot.lane.b32.xlu0 %v787, 32
      %v1333 = vpop.permute.xlu0 %1332
      %1334 = vrot.lane.b32.xlu0 %v788, 32
      %v1335 = vpop.permute.xlu0 %1334
      %1336 = vrot.lane.b32.xlu0 %v789, 32
      %v1337 = vpop.permute.xlu0 %1336
      %1338 = vrot.lane.b32.xlu0 %v790, 32
      %v1339 = vpop.permute.xlu0 %1338
      %v1341 = vsel %vm791, %v1309, 0
      %v1344 = vsel %vm791, %v1311, 0
      %v1347 = vsel %vm791, %v1313, 0
      %v1350 = vsel %vm791, %v1315, 0
      %v1353 = vsel %vm791, %v1317, 0
      %v1356 = vsel %vm791, %v1319, 0
      %v1359 = vsel %vm791, %v1321, 0
      %v1362 = vsel %vm791, %v1323, 0
      %v1365 = vsel %vm791, %v1325, 0
      %v1368 = vsel %vm791, %v1327, 0
      %v1371 = vsel %vm791, %v1329, 0
      %v1374 = vsel %vm791, %v1331, 0
      %v1377 = vsel %vm791, %v1333, 0
      %v1380 = vsel %vm791, %v1335, 0
      %v1383 = vsel %vm791, %v1337, 0
      %v1386 = vsel %vm791, %v1339, 0
      %1388 = vmatpush.bf16.xpose.msra.mxu0 %v1386
      %1389 = vmatpush.bf16.xpose.msra.mxu0 %v1383
      %1390 = vmatpush.bf16.xpose.msra.mxu0 %v1380
      %1391 = vmatpush.bf16.xpose.msra.mxu0 %v1377
      %1392 = vmatpush.bf16.xpose.msra.mxu0 %v1374
      %1393 = vmatpush.bf16.xpose.msra.mxu0 %v1371
      %1394 = vmatpush.bf16.xpose.msra.mxu0 %v1368
      %1395 = vmatpush.bf16.xpose.msra.mxu0 %v1365
      %1396 = vmatmul.bf16.gmra.mxu0 %v1341
      %v1397 = vpop.f32.mrf.mxu0
      %v1398 = vadd.f32 0.0, %v1397
      %v1399 = vpop.f32.mrf.mxu0
      %v1400 = vadd.f32 0.0, %v1399
      %1401 = vmatmul.bf16.gmra.mxu0 %v1344
      %v1402 = vpop.f32.mrf.mxu0
      %v1403 = vadd.f32 0.0, %v1402
      %v1404 = vpop.f32.mrf.mxu0
      %v1405 = vadd.f32 0.0, %v1404
      %1406 = vmatmul.bf16.gmra.mxu0 %v1347
      %v1407 = vpop.f32.mrf.mxu0
      %v1408 = vadd.f32 0.0, %v1407
      %v1409 = vpop.f32.mrf.mxu0
      %v1410 = vadd.f32 0.0, %v1409
      %1411 = vmatmul.bf16.gmra.mxu0 %v1350
      %v1412 = vpop.f32.mrf.mxu0
      %v1413 = vadd.f32 0.0, %v1412
      %v1414 = vpop.f32.mrf.mxu0
      %v1415 = vadd.f32 0.0, %v1414
      %1416 = vmatmul.bf16.gmra.mxu0 %v1353
      %v1417 = vpop.f32.mrf.mxu0
      %v1418 = vadd.f32 0.0, %v1417
      %v1419 = vpop.f32.mrf.mxu0
      %v1420 = vadd.f32 0.0, %v1419
      %1421 = vmatmul.bf16.gmra.mxu0 %v1356
      %v1422 = vpop.f32.mrf.mxu0
      %v1423 = vadd.f32 0.0, %v1422
      %v1424 = vpop.f32.mrf.mxu0
      %v1425 = vadd.f32 0.0, %v1424
      %1426 = vmatmul.bf16.gmra.mxu0 %v1359
      %v1427 = vpop.f32.mrf.mxu0
      %v1428 = vadd.f32 0.0, %v1427
      %v1429 = vpop.f32.mrf.mxu0
      %v1430 = vadd.f32 0.0, %v1429
      %1431 = vmatmul.bf16.gmra.mxu0 %v1362
      %v1432 = vpop.f32.mrf.mxu0
      %v1433 = vadd.f32 0.0, %v1432
      %v1434 = vpop.f32.mrf.mxu0
      %v1435 = vadd.f32 0.0, %v1434
      %1436 = vdwg.mxu0
      %1437 = vmax.xlane.f32.xlu0 %v1398
      %v1438 = vpop.xlane.xlu0 %1437
      %1439 = vmax.xlane.f32.xlu0 %v1400
      %v1440 = vpop.xlane.xlu0 %1439
      %1441 = vmax.xlane.f32.xlu0 %v1403
      %v1442 = vpop.xlane.xlu0 %1441
      %1443 = vmax.xlane.f32.xlu0 %v1405
      %v1444 = vpop.xlane.xlu0 %1443
      %1445 = vmax.xlane.f32.xlu0 %v1408
      %v1446 = vpop.xlane.xlu0 %1445
      %1447 = vmax.xlane.f32.xlu0 %v1410
      %v1448 = vpop.xlane.xlu0 %1447
      %1449 = vmax.xlane.f32.xlu0 %v1413
      %v1450 = vpop.xlane.xlu0 %1449
      %1451 = vmax.xlane.f32.xlu0 %v1415
      %v1452 = vpop.xlane.xlu0 %1451
      %1453 = vmax.xlane.f32.xlu0 %v1418
      %v1454 = vpop.xlane.xlu0 %1453
      %1455 = vmax.xlane.f32.xlu0 %v1420
      %v1456 = vpop.xlane.xlu0 %1455
      %1457 = vmax.xlane.f32.xlu0 %v1423
      %v1458 = vpop.xlane.xlu0 %1457
      %1459 = vmax.xlane.f32.xlu0 %v1425
      %v1460 = vpop.xlane.xlu0 %1459
      %1461 = vmax.xlane.f32.xlu0 %v1428
      %v1462 = vpop.xlane.xlu0 %1461
      %1463 = vmax.xlane.f32.xlu0 %v1430
      %v1464 = vpop.xlane.xlu0 %1463
      %1465 = vmax.xlane.f32.xlu0 %v1433
      %v1466 = vpop.xlane.xlu0 %1465
      %1467 = vmax.xlane.f32.xlu0 %v1435
      %v1468 = vpop.xlane.xlu0 %1467
      %v1469 = vmax.f32 %v1438, %v1446
      %v1470 = vmax.f32 %v1440, %v1448
      %v1471 = vmax.f32 %v1442, %v1450
      %v1472 = vmax.f32 %v1444, %v1452
      %v1473 = vmax.f32 %v1469, %v1454
      %v1474 = vmax.f32 %v1470, %v1456
      %v1475 = vmax.f32 %v1471, %v1458
      %v1476 = vmax.f32 %v1472, %v1460
      %v1477 = vmax.f32 %v1473, %v1462
      %v1478 = vmax.f32 %v1474, %v1464
      %v1479 = vmax.f32 %v1475, %v1466
      %v1480 = vmax.f32 %v1476, %v1468
      %v1481 = vmax.f32 %v1477, %v1478
      %v1482 = vmax.f32 %v1479, %v1480
      %v1483 = vmax.f32 %v1481, %v1482
      %v1484 = vrot.slane %v1483, 4
      %v1485 = vmax.f32 %v1483, %v1484
      %v1486 = vrot.slane %v1485, 2
      %v1487 = vmax.f32 %v1485, %v1486
      %v1488 = vrot.slane %v1487, 1
      %v1489 = vmax.f32 %v1487, %v1488
      %v1490 = vmax.f32 %v1307, %v1489
      %1491 = vst [vmem:[%s348] sm:$0xff] %v1490
      %p1492 = scmp.lt.s32.totalorder %s20, 1
      %s1493 = scalar_select %p1492, %s20, 1
      %s1494 = smul.addr %s1493, 16
      %s1495 = smul.addr %s1494, 4
      %s1496 = scalar_lea.vmem %s6, %s1495
      %p1497 = scmp.lt.s32.totalorder %s20, 1
      %s1498 = scalar_select %p1497, %s20, 1
      %s1499 = smul.addr %s1498, 16
      %s1500 = smul.addr %s1499, 4
      %s1501 = scalar_lea.vmem %s7, %s1500
      %p1502 = scmp.lt.s32.totalorder %s20, 1
      %s1503 = scalar_select %p1502, %s20, 1
      %s1504 = smul.addr %s1503, 8
      %s1505 = scalar_lea.vmem %s8, %s1504
      // Predicated region
      $region45: #{bi_multi_head_attention_forward.2} parent=43 // pred_check
        %p1506 = pneg %p174
      $region46: #{bi_multi_head_attention_forward.2} parent=43 // pred_check_branch
        %1508 = sbr.rel (%p1506) target = $region48
      $region47: #{bi_multi_head_attention_forward.2} parent=43 // pred_region
        _
      $region48: #{bi_multi_head_attention_forward.2} parent=43 // pred_fallthru
        _
      // Predicated region
      $region49: #{bi_multi_head_attention_forward.2} parent=43 // pred_check
        %p1509 = pneg %p200
      $region50: #{bi_multi_head_attention_forward.2} parent=43 // pred_check_branch
        %1511 = sbr.rel (%p1509) target = $region52
      $region51: #{bi_multi_head_attention_forward.2} parent=43 // pred_region
        _
      $region52: #{bi_multi_head_attention_forward.2} parent=43 // pred_fallthru
        _
      // Predicated region
      $region53: #{bi_multi_head_attention_forward.2} parent=43 // pred_check
        %p1512 = pneg %p226
      $region54: #{bi_multi_head_attention_forward.2} parent=43 // pred_check_branch
        %1514 = sbr.rel (%p1512) target = $region56
      $region55: #{bi_multi_head_attention_forward.2} parent=43 // pred_region
        _
      $region56: #{bi_multi_head_attention_forward.2} parent=43 // pred_fallthru
        _
    $region44: #{bi_multi_head_attention_forward.2} parent=5 // pred_fallthru
      _
    %p1515 = scmp.le.s32.totalorder 2, %s15
    // Predicated region
    $region57: #{bi_multi_head_attention_forward.2} parent=5 // pred_check
      %p1516 = pneg %p1515
    $region58: #{bi_multi_head_attention_forward.2} parent=5 // pred_check_branch
      %1518 = sbr.rel (%p1516) target = $region60
    $region59: #{bi_multi_head_attention_forward.2} parent=5 // pred_region
      %s1519 = ssub.s32 %s15, 2
      // Predicated region
      $region61: #{bi_multi_head_attention_forward.2} parent=59 // pred_check
        %p1520 = pneg %p180
      $region62: #{bi_multi_head_attention_forward.2} parent=59 // pred_check_branch
        %1522 = sbr.rel (%p1520) target = $region64
      $region63: #{bi_multi_head_attention_forward.2} parent=59 // pred_region
        %p1523 = scmp.lt.s32.totalorder %s21, 1
        %s1524 = scalar_select %p1523, %s21, 1
        %s1525 = smul.addr %s1524, 16
        %s1526 = smul.addr %s1525, 4
        %s1527 = scalar_lea.vmem %s6, %s1526
      $region64: #{bi_multi_head_attention_forward.2} parent=59 // pred_fallthru
        _
      // Predicated region
      $region65: #{bi_multi_head_attention_forward.2} parent=59 // pred_check
        %p1528 = pneg %p206
      $region66: #{bi_multi_head_attention_forward.2} parent=59 // pred_check_branch
        %1530 = sbr.rel (%p1528) target = $region68
      $region67: #{bi_multi_head_attention_forward.2} parent=59 // pred_region
        %p1531 = scmp.lt.s32.totalorder %s21, 1
        %s1532 = scalar_select %p1531, %s21, 1
        %s1533 = smul.addr %s1532, 16
        %s1534 = smul.addr %s1533, 4
        %s1535 = scalar_lea.vmem %s7, %s1534
      $region68: #{bi_multi_head_attention_forward.2} parent=59 // pred_fallthru
        _
      // Predicated region
      $region69: #{bi_multi_head_attention_forward.2} parent=59 // pred_check
        %p1536 = pneg %p232
      $region70: #{bi_multi_head_attention_forward.2} parent=59 // pred_check_branch
        %1538 = sbr.rel (%p1536) target = $region72
      $region71: #{bi_multi_head_attention_forward.2} parent=59 // pred_region
        %p1539 = scmp.lt.s32.totalorder %s21, 1
        %s1540 = scalar_select %p1539, %s21, 1
        %s1541 = smul.addr %s1540, 8
        %s1542 = scalar_lea.vmem %s8, %s1541
      $region72: #{bi_multi_head_attention_forward.2} parent=59 // pred_fallthru
        _
    $region60: #{bi_multi_head_attention_forward.2} parent=5 // pred_fallthru
      _
  $region6: #{bi_multi_head_attention_forward.2} parent=0 // loop_footer
    %s19 = sadd.s32 1, %s15
  $region7: #{bi_multi_head_attention_forward.2} parent=0 // loop_footer_branch
    %14 = sbr.rel target = $region3
  $region8: #{bi_multi_head_attention_forward.2} parent=0 // loop_exit
    _

// kernel: bi_multi_head_attention_forward.3
$region0: #{bi_multi_head_attention_forward.3}
  #allocation0 [shape = 'u32[]', space=smem, size = 0x4, offset = 0x4, fixed_abs, tag = 'smem constant byte address 0x4 - core index']
  #allocation1 [shape = 'u32[72,128]{1,0:T(1,128)}', space=vmem, size = 0x9000, scoped, tag = 'internal scratch']
  #allocation2 [shape = 'f32[1,1]{1,0:T(1,128)S(1)}', space=vmem, size = 0x200, scoped, tag = 'scoped memory for bi_multi_head_attention_forward.3']
  %s0 = inlined_call_operand.vmem [shape: f32[2,128,128], index: 0, kind: input, shape index: {}]
  %s1 = inlined_call_operand.vmem [shape: f32[2,128,128], index: 1, kind: input, shape index: {}]
  %s2 = inlined_call_operand.vmem [shape: bf16[2,128,128], index: 2, kind: input, shape index: {}]
  %s3 = inlined_call_operand.vmem [shape: bf16[2,128,128], index: 3, kind: input, shape index: {}]
  %s4 = inlined_call_operand.<no memory space> [shape: f32[1,1], index: 4, kind: input, shape index: {}]
  %s5 = inlined_call_operand.vmem [shape: bf16[128,128], index: 5, kind: input, shape index: {}]
  %s6 = inlined_call_operand.vmem [shape: f32[1,128], index: 6, kind: input, shape index: {}]
  %s7 = inlined_call_operand.vmem [shape: bf16[128,128], index: 7, kind: input, shape index: {}]
  %s8 = inlined_call_operand.vmem [shape: f32[1,128], index: 8, kind: input, shape index: {}]
  %s9 = inlined_call_operand.vmem [shape: bf16[128,128], index: 9, kind: input, shape index: {}]
  %s10 = inlined_call_operand.vmem [shape: f32[1,128], index: 10, kind: input, shape index: {}]
  %s11 = inlined_call_operand.vmem [shape: bf16[128,128], index: 11, kind: input, shape index: {}]
  %s12 = inlined_call_operand.vmem [shape: f32[1,128], index: 12, kind: input, shape index: {}]
  %s13 = inlined_call_operand.hbm [shape: f32[2,128,128], index: 13, kind: output, shape index: {0}]
  %s14 = inlined_call_operand.hbm [shape: f32[2,128,128], index: 14, kind: output, shape index: {1}]
  %15 = xla_tuple %s13, %s14
  %s16 = sld [smem:[#allocation0]]
  $region93: #{bi_multi_head_attention_forward.3} parent=0
    _
  %s18 = ssub.s32 1, %s16
  %s19 = scalar_select 0, %s18, %s16
  %v20 = vstv %s4
  %21 = vst [vmem:[#allocation2] sm:$0x1] %v20
  $region1: #{bi_multi_head_attention_forward.3} parent=0
    #allocation3 [shape = 'u8[131072]{0}', space=vmem, size = 0x20000, scoped, tag = 'output window, operand 0']
    #allocation4 [shape = 's32[2]{0}', space=sflag, size = 0x8, scoped, tag = 'scoped memory for bi_multi_head_attention_forward.3']
    #allocation5 [shape = 'u8[131072]{0}', space=vmem, size = 0x20000, scoped, tag = 'output window, operand 1']
    #allocation6 [shape = 's32[2]{0}', space=sflag, size = 0x8, scoped, tag = 'scoped memory for bi_multi_head_attention_forward.3']
    %22 = vsyncpa [#allocation4], 0
    %s23 = scalar_lea.sflag [#allocation4], 1
    %24 = vsyncpa %s23, 0
    %25 = vsyncpa [#allocation6], 0
    %s26 = scalar_lea.sflag [#allocation6], 1
    %27 = vsyncpa %s26, 0
    loop: start=0, step=1, limit=4
    $region2: #{bi_multi_head_attention_forward.3} parent=1 // loop_pre_header
      _
    $region3: #{bi_multi_head_attention_forward.3} parent=1 // loop_header
      %s29 = sphi 0, %s33
      %p30 = scmp.ge.s32.totalorder %s29, 4
      %s39 = sphi 0, %s41
      %s42 = sphi 0, %s39
      %s43 = sphi 0, %s42
      %s59 = sphi 0, %s43
      %s65 = sphi 0, %s67
      %s68 = sphi 0, %s65
      %s69 = sphi 0, %s68
      %s85 = sphi 0, %s69
      %s91 = sphi 0, %s93
      %s94 = sphi 0, %s91
      %s95 = sphi 0, %s94
      %s111 = sphi 0, %s95
      %s117 = sphi 0, %s119
      %s120 = sphi 0, %s117
      %s121 = sphi 0, %s120
      %s137 = sphi 0, %s121
      %s141 = sphi 0, %s141
      %s143 = sphi 0, %s141
      %s144 = sphi 0, %s143
      %s158 = sphi 0, %s144
      %s162 = sphi 0, %s162
      %s164 = sphi 0, %s162
      %s165 = sphi 0, %s164
      %s179 = sphi 0, %s165
      %s183 = sphi 0, %s183
      %s185 = sphi 0, %s183
      %s186 = sphi 0, %s185
      %s200 = sphi 0, %s186
      %s204 = sphi 0, %s204
      %s206 = sphi 0, %s204
      %s207 = sphi 0, %s206
      %s221 = sphi 0, %s207
      %s225 = sphi 0, %s225
      %s227 = sphi 0, %s225
      %s228 = sphi 0, %s227
      %s242 = sphi 0, %s228
      %s246 = sphi 0, %s246
      %s248 = sphi 0, %s246
      %s249 = sphi 0, %s248
      %s263 = sphi 0, %s249
      %s267 = sphi 0, %s267
      %s269 = sphi 0, %s267
      %s270 = sphi 0, %s269
      %s284 = sphi 0, %s270
      %s288 = sphi 0, %s288
      %s290 = sphi 0, %s288
      %s291 = sphi 0, %s290
      %s305 = sphi 0, %s291
      %s309 = sphi 0, %s309
      %s311 = sphi 0, %s309
      %s312 = sphi 0, %s311
      %s326 = sphi 0, %s312
      %s332 = sphi 0, %s334
      %s335 = sphi 0, %s332
      %s336 = sphi 0, %s335
      %s352 = sphi 0, %s336
      %s358 = sphi 0, %s360
      %s361 = sphi 0, %s358
      %s362 = sphi 0, %s361
      %s378 = sphi 0, %s362
    $region4: #{bi_multi_head_attention_forward.3} parent=1 // loop_header_branch
      %32 = sbr.rel (%p30) target = $region8
    $region5: #{bi_multi_head_attention_forward.3} parent=1 // loop_body
      %s34 = ssub.s32 %s29, 1
      %s35 = ssub.s32 %s29, 2
      %s36 = sadd.s32 %s29, 1
      %s37 = ssub.s32 %s29, %s36
      %p38 = scmp.eq.s32.totalorder %s37, 0
      %s40 = sadd.s32 %s39, 1
      %s41 = scalar_select %p38, %s39, %s40
      %p44 = pneg %p38
      %p45 = scmp.eq.s32.totalorder %s29, 1
      %p46 = por %p44, %p45
      %p47 = scmp.ne.s32.totalorder %s39, %s42
      %p48 = scmp.eq.s32.totalorder %s29, 0
      %p49 = por %p47, %p48
      %p50 = scmp.ne.s32.totalorder %s39, %s42
      %p51 = scmp.eq.s32.totalorder %s34, 1
      %p52 = por %p50, %p51
      %p53 = scmp.ne.s32.totalorder %s42, %s43
      %p54 = scmp.eq.s32.totalorder %s34, 0
      %p55 = por %p53, %p54
      %p56 = scmp.ne.s32.totalorder %s42, %s43
      %p57 = scmp.eq.s32.totalorder %s35, 1
      %p58 = por %p56, %p57
      %p60 = scmp.ne.s32.totalorder %s43, %s59
      %p61 = scmp.eq.s32.totalorder %s35, 0
      %p62 = por %p60, %p61
      %s63 = ssub.s32 %s29, %s36
      %p64 = scmp.eq.s32.totalorder %s63, 0
      %s66 = sadd.s32 %s65, 1
      %s67 = scalar_select %p64, %s65, %s66
      %p70 = pneg %p64
      %p71 = scmp.eq.s32.totalorder %s29, 1
      %p72 = por %p70, %p71
      %p73 = scmp.ne.s32.totalorder %s65, %s68
      %p74 = scmp.eq.s32.totalorder %s29, 0
      %p75 = por %p73, %p74
      %p76 = scmp.ne.s32.totalorder %s65, %s68
      %p77 = scmp.eq.s32.totalorder %s34, 1
      %p78 = por %p76, %p77
      %p79 = scmp.ne.s32.totalorder %s68, %s69
      %p80 = scmp.eq.s32.totalorder %s34, 0
      %p81 = por %p79, %p80
      %p82 = scmp.ne.s32.totalorder %s68, %s69
      %p83 = scmp.eq.s32.totalorder %s35, 1
      %p84 = por %p82, %p83
      %p86 = scmp.ne.s32.totalorder %s69, %s85
      %p87 = scmp.eq.s32.totalorder %s35, 0
      %p88 = por %p86, %p87
      %s89 = ssub.s32 %s29, %s36
      %p90 = scmp.eq.s32.totalorder %s89, 0
      %s92 = sadd.s32 %s91, 1
      %s93 = scalar_select %p90, %s91, %s92
      %p96 = pneg %p90
      %p97 = scmp.eq.s32.totalorder %s29, 1
      %p98 = por %p96, %p97
      %p99 = scmp.ne.s32.totalorder %s91, %s94
      %p100 = scmp.eq.s32.totalorder %s29, 0
      %p101 = por %p99, %p100
      %p102 = scmp.ne.s32.totalorder %s91, %s94
      %p103 = scmp.eq.s32.totalorder %s34, 1
      %p104 = por %p102, %p103
      %p105 = scmp.ne.s32.totalorder %s94, %s95
      %p106 = scmp.eq.s32.totalorder %s34, 0
      %p107 = por %p105, %p106
      %p108 = scmp.ne.s32.totalorder %s94, %s95
      %p109 = scmp.eq.s32.totalorder %s35, 1
      %p110 = por %p108, %p109
      %p112 = scmp.ne.s32.totalorder %s95, %s111
      %p113 = scmp.eq.s32.totalorder %s35, 0
      %p114 = por %p112, %p113
      %s115 = ssub.s32 %s29, %s36
      %p116 = scmp.eq.s32.totalorder %s115, 0
      %s118 = sadd.s32 %s117, 1
      %s119 = scalar_select %p116, %s117, %s118
      %p122 = pneg %p116
      %p123 = scmp.eq.s32.totalorder %s29, 1
      %p124 = por %p122, %p123
      %p125 = scmp.ne.s32.totalorder %s117, %s120
      %p126 = scmp.eq.s32.totalorder %s29, 0
      %p127 = por %p125, %p126
      %p128 = scmp.ne.s32.totalorder %s117, %s120
      %p129 = scmp.eq.s32.totalorder %s34, 1
      %p130 = por %p128, %p129
      %p131 = scmp.ne.s32.totalorder %s120, %s121
      %p132 = scmp.eq.s32.totalorder %s34, 0
      %p133 = por %p131, %p132
      %p134 = scmp.ne.s32.totalorder %s120, %s121
      %p135 = scmp.eq.s32.totalorder %s35, 1
      %p136 = por %p134, %p135
      %p138 = scmp.ne.s32.totalorder %s121, %s137
      %p139 = scmp.eq.s32.totalorder %s35, 0
      %p140 = por %p138, %p139
      %s142 = sadd.s32 %s141, 1
      %p145 = scmp.eq.s32.totalorder %s29, 1
      %p146 = scmp.ne.s32.totalorder %s141, %s143
      %p147 = scmp.eq.s32.totalorder %s29, 0
      %p148 = por %p146, %p147
      %p149 = scmp.ne.s32.totalorder %s141, %s143
      %p150 = scmp.eq.s32.totalorder %s34, 1
      %p151 = por %p149, %p150
      %p152 = scmp.ne.s32.totalorder %s143, %s144
      %p153 = scmp.eq.s32.totalorder %s34, 0
      %p154 = por %p152, %p153
      %p155 = scmp.ne.s32.totalorder %s143, %s144
      %p156 = scmp.eq.s32.totalorder %s35, 1
      %p157 = por %p155, %p156
      %p159 = scmp.ne.s32.totalorder %s144, %s158
      %p160 = scmp.eq.s32.totalorder %s35, 0
      %p161 = por %p159, %p160
      %s163 = sadd.s32 %s162, 1
      %p166 = scmp.eq.s32.totalorder %s29, 1
      %p167 = scmp.ne.s32.totalorder %s162, %s164
      %p168 = scmp.eq.s32.totalorder %s29, 0
      %p169 = por %p167, %p168
      %p170 = scmp.ne.s32.totalorder %s162, %s164
      %p171 = scmp.eq.s32.totalorder %s34, 1
      %p172 = por %p170, %p171
      %p173 = scmp.ne.s32.totalorder %s164, %s165
      %p174 = scmp.eq.s32.totalorder %s34, 0
      %p175 = por %p173, %p174
      %p176 = scmp.ne.s32.totalorder %s164, %s165
      %p177 = scmp.eq.s32.totalorder %s35, 1
      %p178 = por %p176, %p177
      %p180 = scmp.ne.s32.totalorder %s165, %s179
      %p181 = scmp.eq.s32.totalorder %s35, 0
      %p182 = por %p180, %p181
      %s184 = sadd.s32 %s183, 1
      %p187 = scmp.eq.s32.totalorder %s29, 1
      %p188 = scmp.ne.s32.totalorder %s183, %s185
      %p189 = scmp.eq.s32.totalorder %s29, 0
      %p190 = por %p188, %p189
      %p191 = scmp.ne.s32.totalorder %s183, %s185
      %p192 = scmp.eq.s32.totalorder %s34, 1
      %p193 = por %p191, %p192
      %p194 = scmp.ne.s32.totalorder %s185, %s186
      %p195 = scmp.eq.s32.totalorder %s34, 0
      %p196 = por %p194, %p195
      %p197 = scmp.ne.s32.totalorder %s185, %s186
      %p198 = scmp.eq.s32.totalorder %s35, 1
      %p199 = por %p197, %p198
      %p201 = scmp.ne.s32.totalorder %s186, %s200
      %p202 = scmp.eq.s32.totalorder %s35, 0
      %p203 = por %p201, %p202
      %s205 = sadd.s32 %s204, 1
      %p208 = scmp.eq.s32.totalorder %s29, 1
      %p209 = scmp.ne.s32.totalorder %s204, %s206
      %p210 = scmp.eq.s32.totalorder %s29, 0
      %p211 = por %p209, %p210
      %p212 = scmp.ne.s32.totalorder %s204, %s206
      %p213 = scmp.eq.s32.totalorder %s34, 1
      %p214 = por %p212, %p213
      %p215 = scmp.ne.s32.totalorder %s206, %s207
      %p216 = scmp.eq.s32.totalorder %s34, 0
      %p217 = por %p215, %p216
      %p218 = scmp.ne.s32.totalorder %s206, %s207
      %p219 = scmp.eq.s32.totalorder %s35, 1
      %p220 = por %p218, %p219
      %p222 = scmp.ne.s32.totalorder %s207, %s221
      %p223 = scmp.eq.s32.totalorder %s35, 0
      %p224 = por %p222, %p223
      %s226 = sadd.s32 %s225, 1
      %p229 = scmp.eq.s32.totalorder %s29, 1
      %p230 = scmp.ne.s32.totalorder %s225, %s227
      %p231 = scmp.eq.s32.totalorder %s29, 0
      %p232 = por %p230, %p231
      %p233 = scmp.ne.s32.totalorder %s225, %s227
      %p234 = scmp.eq.s32.totalorder %s34, 1
      %p235 = por %p233, %p234
      %p236 = scmp.ne.s32.totalorder %s227, %s228
      %p237 = scmp.eq.s32.totalorder %s34, 0
      %p238 = por %p236, %p237
      %p239 = scmp.ne.s32.totalorder %s227, %s228
      %p240 = scmp.eq.s32.totalorder %s35, 1
      %p241 = por %p239, %p240
      %p243 = scmp.ne.s32.totalorder %s228, %s242
      %p244 = scmp.eq.s32.totalorder %s35, 0
      %p245 = por %p243, %p244
      %s247 = sadd.s32 %s246, 1
      %p250 = scmp.eq.s32.totalorder %s29, 1
      %p251 = scmp.ne.s32.totalorder %s246, %s248
      %p252 = scmp.eq.s32.totalorder %s29, 0
      %p253 = por %p251, %p252
      %p254 = scmp.ne.s32.totalorder %s246, %s248
      %p255 = scmp.eq.s32.totalorder %s34, 1
      %p256 = por %p254, %p255
      %p257 = scmp.ne.s32.totalorder %s248, %s249
      %p258 = scmp.eq.s32.totalorder %s34, 0
      %p259 = por %p257, %p258
      %p260 = scmp.ne.s32.totalorder %s248, %s249
      %p261 = scmp.eq.s32.totalorder %s35, 1
      %p262 = por %p260, %p261
      %p264 = scmp.ne.s32.totalorder %s249, %s263
      %p265 = scmp.eq.s32.totalorder %s35, 0
      %p266 = por %p264, %p265
      %s268 = sadd.s32 %s267, 1
      %p271 = scmp.eq.s32.totalorder %s29, 1
      %p272 = scmp.ne.s32.totalorder %s267, %s269
      %p273 = scmp.eq.s32.totalorder %s29, 0
      %p274 = por %p272, %p273
      %p275 = scmp.ne.s32.totalorder %s267, %s269
      %p276 = scmp.eq.s32.totalorder %s34, 1
      %p277 = por %p275, %p276
      %p278 = scmp.ne.s32.totalorder %s269, %s270
      %p279 = scmp.eq.s32.totalorder %s34, 0
      %p280 = por %p278, %p279
      %p281 = scmp.ne.s32.totalorder %s269, %s270
      %p282 = scmp.eq.s32.totalorder %s35, 1
      %p283 = por %p281, %p282
      %p285 = scmp.ne.s32.totalorder %s270, %s284
      %p286 = scmp.eq.s32.totalorder %s35, 0
      %p287 = por %p285, %p286
      %s289 = sadd.s32 %s288, 1
      %p292 = scmp.eq.s32.totalorder %s29, 1
      %p293 = scmp.ne.s32.totalorder %s288, %s290
      %p294 = scmp.eq.s32.totalorder %s29, 0
      %p295 = por %p293, %p294
      %p296 = scmp.ne.s32.totalorder %s288, %s290
      %p297 = scmp.eq.s32.totalorder %s34, 1
      %p298 = por %p296, %p297
      %p299 = scmp.ne.s32.totalorder %s290, %s291
      %p300 = scmp.eq.s32.totalorder %s34, 0
      %p301 = por %p299, %p300
      %p302 = scmp.ne.s32.totalorder %s290, %s291
      %p303 = scmp.eq.s32.totalorder %s35, 1
      %p304 = por %p302, %p303
      %p306 = scmp.ne.s32.totalorder %s291, %s305
      %p307 = scmp.eq.s32.totalorder %s35, 0
      %p308 = por %p306, %p307
      %s310 = sadd.s32 %s309, 1
      %p313 = scmp.eq.s32.totalorder %s29, 1
      %p314 = scmp.ne.s32.totalorder %s309, %s311
      %p315 = scmp.eq.s32.totalorder %s29, 0
      %p316 = por %p314, %p315
      %p317 = scmp.ne.s32.totalorder %s309, %s311
      %p318 = scmp.eq.s32.totalorder %s34, 1
      %p319 = por %p317, %p318
      %p320 = scmp.ne.s32.totalorder %s311, %s312
      %p321 = scmp.eq.s32.totalorder %s34, 0
      %p322 = por %p320, %p321
      %p323 = scmp.ne.s32.totalorder %s311, %s312
      %p324 = scmp.eq.s32.totalorder %s35, 1
      %p325 = por %p323, %p324
      %p327 = scmp.ne.s32.totalorder %s312, %s326
      %p328 = scmp.eq.s32.totalorder %s35, 0
      %p329 = por %p327, %p328
      %s330 = ssub.s32 %s29, %s36
      %p331 = scmp.eq.s32.totalorder %s330, 0
      %s333 = sadd.s32 %s332, 1
      %s334 = scalar_select %p331, %s332, %s333
      %p337 = pneg %p331
      %p338 = scmp.eq.s32.totalorder %s29, 1
      %p339 = por %p337, %p338
      %p340 = scmp.ne.s32.totalorder %s332, %s335
      %p341 = scmp.eq.s32.totalorder %s29, 0
      %p342 = por %p340, %p341
      %p343 = scmp.ne.s32.totalorder %s332, %s335
      %p344 = scmp.eq.s32.totalorder %s34, 1
      %p345 = por %p343, %p344
      %p346 = scmp.ne.s32.totalorder %s335, %s336
      %p347 = scmp.eq.s32.totalorder %s34, 0
      %p348 = por %p346, %p347
      %p349 = scmp.ne.s32.totalorder %s335, %s336
      %p350 = scmp.eq.s32.totalorder %s35, 1
      %p351 = por %p349, %p350
      %p353 = scmp.ne.s32.totalorder %s336, %s352
      %p354 = scmp.eq.s32.totalorder %s35, 0
      %p355 = por %p353, %p354
      %s356 = ssub.s32 %s29, %s36
      %p357 = scmp.eq.s32.totalorder %s356, 0
      %s359 = sadd.s32 %s358, 1
      %s360 = scalar_select %p357, %s358, %s359
      %p363 = pneg %p357
      %p364 = scmp.eq.s32.totalorder %s29, 1
      %p365 = por %p363, %p364
      %p366 = scmp.ne.s32.totalorder %s358, %s361
      %p367 = scmp.eq.s32.totalorder %s29, 0
      %p368 = por %p366, %p367
      %p369 = scmp.ne.s32.totalorder %s358, %s361
      %p370 = scmp.eq.s32.totalorder %s34, 1
      %p371 = por %p369, %p370
      %p372 = scmp.ne.s32.totalorder %s361, %s362
      %p373 = scmp.eq.s32.totalorder %s34, 0
      %p374 = por %p372, %p373
      %p375 = scmp.ne.s32.totalorder %s361, %s362
      %p376 = scmp.eq.s32.totalorder %s35, 1
      %p377 = por %p375, %p376
      %p379 = scmp.ne.s32.totalorder %s362, %s378
      %p380 = scmp.eq.s32.totalorder %s35, 0
      %p381 = por %p379, %p380
      %p382 = scmp.le.s32.totalorder 1, %s29
      %p383 = scmp.lt.s32.totalorder %s29, 3
      %p384 = pnand %p382, %p383
      %p385 = pneg %p384
      // Predicated region
      $region9: #{bi_multi_head_attention_forward.3} parent=5 // pred_check
        _
      $region10: #{bi_multi_head_attention_forward.3} parent=5 // pred_check_branch
        %387 = sbr.rel (%p384) target = $region12
      $region11: #{bi_multi_head_attention_forward.3} parent=5 // pred_region
        %s388 = ssub.s32 %s29, 1
        // Predicated region
        $region13: #{bi_multi_head_attention_forward.3} parent=11 // pred_check
          %p389 = pneg %p154
        $region14: #{bi_multi_head_attention_forward.3} parent=11 // pred_check_branch
          %391 = sbr.rel (%p389) target = $region16
        $region15: #{bi_multi_head_attention_forward.3} parent=11 // pred_region
          _
        $region16: #{bi_multi_head_attention_forward.3} parent=11 // pred_fallthru
          _
        // Predicated region
        $region17: #{bi_multi_head_attention_forward.3} parent=11 // pred_check
          %p392 = pneg %p175
        $region18: #{bi_multi_head_attention_forward.3} parent=11 // pred_check_branch
          %394 = sbr.rel (%p392) target = $region20
        $region19: #{bi_multi_head_attention_forward.3} parent=11 // pred_region
          _
        $region20: #{bi_multi_head_attention_forward.3} parent=11 // pred_fallthru
          _
        // Predicated region
        $region21: #{bi_multi_head_attention_forward.3} parent=11 // pred_check
          %p395 = pneg %p196
        $region22: #{bi_multi_head_attention_forward.3} parent=11 // pred_check_branch
          %397 = sbr.rel (%p395) target = $region24
        $region23: #{bi_multi_head_attention_forward.3} parent=11 // pred_region
          _
        $region24: #{bi_multi_head_attention_forward.3} parent=11 // pred_fallthru
          _
        // Predicated region
        $region25: #{bi_multi_head_attention_forward.3} parent=11 // pred_check
          %p398 = pneg %p217
        $region26: #{bi_multi_head_attention_forward.3} parent=11 // pred_check_branch
          %400 = sbr.rel (%p398) target = $region28
        $region27: #{bi_multi_head_attention_forward.3} parent=11 // pred_region
          _
        $region28: #{bi_multi_head_attention_forward.3} parent=11 // pred_fallthru
          _
        // Predicated region
        $region29: #{bi_multi_head_attention_forward.3} parent=11 // pred_check
          %p401 = pneg %p238
        $region30: #{bi_multi_head_attention_forward.3} parent=11 // pred_check_branch
          %403 = sbr.rel (%p401) target = $region32
        $region31: #{bi_multi_head_attention_forward.3} parent=11 // pred_region
          _
        $region32: #{bi_multi_head_attention_forward.3} parent=11 // pred_fallthru
          _
        // Predicated region
        $region33: #{bi_multi_head_attention_forward.3} parent=11 // pred_check
          %p404 = pneg %p259
        $region34: #{bi_multi_head_attention_forward.3} parent=11 // pred_check_branch
          %406 = sbr.rel (%p404) target = $region36
        $region35: #{bi_multi_head_attention_forward.3} parent=11 // pred_region
          _
        $region36: #{bi_multi_head_attention_forward.3} parent=11 // pred_fallthru
          _
        // Predicated region
        $region37: #{bi_multi_head_attention_forward.3} parent=11 // pred_check
          %p407 = pneg %p280
        $region38: #{bi_multi_head_attention_forward.3} parent=11 // pred_check_branch
          %409 = sbr.rel (%p407) target = $region40
        $region39: #{bi_multi_head_attention_forward.3} parent=11 // pred_region
          _
        $region40: #{bi_multi_head_attention_forward.3} parent=11 // pred_fallthru
          _
        // Predicated region
        $region41: #{bi_multi_head_attention_forward.3} parent=11 // pred_check
          %p410 = pneg %p301
        $region42: #{bi_multi_head_attention_forward.3} parent=11 // pred_check_branch
          %412 = sbr.rel (%p410) target = $region44
        $region43: #{bi_multi_head_attention_forward.3} parent=11 // pred_region
          _
        $region44: #{bi_multi_head_attention_forward.3} parent=11 // pred_fallthru
          _
        // Predicated region
        $region45: #{bi_multi_head_attention_forward.3} parent=11 // pred_check
          %p413 = pneg %p322
        $region46: #{bi_multi_head_attention_forward.3} parent=11 // pred_check_branch
          %415 = sbr.rel (%p413) target = $region48
        $region47: #{bi_multi_head_attention_forward.3} parent=11 // pred_region
          _
        $region48: #{bi_multi_head_attention_forward.3} parent=11 // pred_fallthru
          _
      $region12: #{bi_multi_head_attention_forward.3} parent=5 // pred_fallthru
        _
      %p416 = scmp.lt.s32.totalorder %s29, 2
      // Predicated region
      $region49: #{bi_multi_head_attention_forward.3} parent=5 // pred_check
        %p417 = pneg %p416
      $region50: #{bi_multi_head_attention_forward.3} parent=5 // pred_check_branch
        %419 = sbr.rel (%p417) target = $region52
      $region51: #{bi_multi_head_attention_forward.3} parent=5 // pred_region
        // Predicated region
        $region53: #{bi_multi_head_attention_forward.3} parent=51 // pred_check
          %p420 = pneg %p49
        $region54: #{bi_multi_head_attention_forward.3} parent=51 // pred_check_branch
          %422 = sbr.rel (%p420) target = $region56
        $region55: #{bi_multi_head_attention_forward.3} parent=51 // pred_region
          %p423 = scmp.lt.s32.totalorder %s29, 1
          %s424 = scalar_select %p423, %s29, 1
          %s425 = smul.addr %s424, 16
          %s426 = smul.addr %s425, 8
          %s427 = scalar_lea.vmem %s0, %s426
        $region56: #{bi_multi_head_attention_forward.3} parent=51 // pred_fallthru
          _
        // Predicated region
        $region57: #{bi_multi_head_attention_forward.3} parent=51 // pred_check
          %p428 = pneg %p75
        $region58: #{bi_multi_head_attention_forward.3} parent=51 // pred_check_branch
          %430 = sbr.rel (%p428) target = $region60
        $region59: #{bi_multi_head_attention_forward.3} parent=51 // pred_region
          %p431 = scmp.lt.s32.totalorder %s29, 1
          %s432 = scalar_select %p431, %s29, 1
          %s433 = smul.addr %s432, 16
          %s434 = smul.addr %s433, 8
          %s435 = scalar_lea.vmem %s1, %s434
        $region60: #{bi_multi_head_attention_forward.3} parent=51 // pred_fallthru
          _
        // Predicated region
        $region61: #{bi_multi_head_attention_forward.3} parent=51 // pred_check
          %p436 = pneg %p101
        $region62: #{bi_multi_head_attention_forward.3} parent=51 // pred_check_branch
          %438 = sbr.rel (%p436) target = $region64
        $region63: #{bi_multi_head_attention_forward.3} parent=51 // pred_region
          %p439 = scmp.lt.s32.totalorder %s29, 1
          %s440 = scalar_select %p439, %s29, 1
          %s441 = smul.addr %s440, 16
          %s442 = smul.addr %s441, 4
          %s443 = scalar_lea.vmem %s2, %s442
        $region64: #{bi_multi_head_attention_forward.3} parent=51 // pred_fallthru
          _
        // Predicated region
        $region65: #{bi_multi_head_attention_forward.3} parent=51 // pred_check
          %p444 = pneg %p127
        $region66: #{bi_multi_head_attention_forward.3} parent=51 // pred_check_branch
          %446 = sbr.rel (%p444) target = $region68
        $region67: #{bi_multi_head_attention_forward.3} parent=51 // pred_region
          %p447 = scmp.lt.s32.totalorder %s29, 1
          %s448 = scalar_select %p447, %s29, 1
          %s449 = smul.addr %s448, 16
          %s450 = smul.addr %s449, 4
          %s451 = scalar_lea.vmem %s3, %s450
        $region68: #{bi_multi_head_attention_forward.3} parent=51 // pred_fallthru
          _
      $region52: #{bi_multi_head_attention_forward.3} parent=5 // pred_fallthru
        _
      %p452 = scmp.le.s32.totalorder 1, %s29
      %p453 = scmp.lt.s32.totalorder %s29, 3
      %p454 = pnand %p452, %p453
      %p455 = pneg %p454
      // Predicated region
      $region69: #{bi_multi_head_attention_forward.3} parent=5 // pred_check
        _
      $region70: #{bi_multi_head_attention_forward.3} parent=5 // pred_check_branch
        %457 = sbr.rel (%p454) target = $region72
      $region71: #{bi_multi_head_attention_forward.3} parent=5 // pred_region
        %s458 = ssub.s32 %s29, 1
        %p459 = scmp.lt.s32.totalorder %s34, 1
        %s460 = scalar_select %p459, %s34, 1
        %s461 = smul.addr %s460, 16
        %s462 = smul.addr %s461, 8
        %s463 = scalar_lea.vmem %s0, %s462
        %p464 = pneg %p55
        %p465 = pneg %p52
        %p466 = scmp.lt.s32.totalorder %s34, 1
        %s467 = scalar_select %p466, %s34, 1
        %s468 = smul.addr %s467, 16
        %s469 = smul.addr %s468, 8
        %s470 = scalar_lea.vmem %s1, %s469
        %p471 = pneg %p81
        %p472 = pneg %p78
        %p473 = scmp.lt.s32.totalorder %s34, 1
        %s474 = scalar_select %p473, %s34, 1
        %s475 = smul.addr %s474, 16
        %s476 = smul.addr %s475, 4
        %s477 = scalar_lea.vmem %s2, %s476
        %p478 = pneg %p107
        %p479 = pneg %p104
        %p480 = scmp.lt.s32.totalorder %s34, 1
        %s481 = scalar_select %p480, %s34, 1
        %s482 = smul.addr %s481, 16
        %s483 = smul.addr %s482, 4
        %s484 = scalar_lea.vmem %s3, %s483
        %p485 = pneg %p133
        %p486 = pneg %p130
        %p487 = pneg %p154
        %p488 = pneg %p151
        %p489 = pneg %p175
        %p490 = pneg %p172
        %p491 = pneg %p196
        %p492 = pneg %p193
        %p493 = pneg %p217
        %p494 = pneg %p214
        %p495 = pneg %p238
        %p496 = pneg %p235
        %p497 = pneg %p259
        %p498 = pneg %p256
        %p499 = pneg %p280
        %p500 = pneg %p277
        %p501 = pneg %p301
        %p502 = pneg %p298
        %p503 = pneg %p322
        %p504 = pneg %p319
        %p505 = pneg %p348
        %p506 = pneg %p345
        %s507 = sand.u32 %s335, 1
        %s508 = scalar_lea.sflag [#allocation4], %s507
        %s509 = sand.u32 %s335, 1
        %s510 = smul.addr %s509, 128
        %s511 = scalar_lea.vmem [#allocation3], %s510
        %p512 = pneg %p374
        %p513 = pneg %p371
        %s514 = sand.u32 %s361, 1
        %s515 = scalar_lea.sflag [#allocation6], %s514
        %s516 = sand.u32 %s361, 1
        %s517 = smul.addr %s516, 128
        %s518 = scalar_lea.vmem [#allocation5], %s517
        %p519 = scmp.lt.s32.totalorder %s34, 1
        %s520 = scalar_select %p519, %s34, 1
        %s521 = smul.addr %s520, 16
        %s522 = smul.addr %s521, 8
        %s523 = scalar_lea.vmem %s0, %s522
        %p524 = scmp.lt.s32.totalorder %s34, 1
        %s525 = scalar_select %p524, %s34, 1
        %s526 = smul.addr %s525, 16
        %s527 = smul.addr %s526, 8
        %s528 = scalar_lea.vmem %s1, %s527
        %p529 = scmp.lt.s32.totalorder %s34, 1
        %s530 = scalar_select %p529, %s34, 1
        %s531 = smul.addr %s530, 16
        %s532 = smul.addr %s531, 4
        %s533 = scalar_lea.vmem %s2, %s532
        %p534 = scmp.lt.s32.totalorder %s34, 1
        %s535 = scalar_select %p534, %s34, 1
        %s536 = smul.addr %s535, 16
        %s537 = smul.addr %s536, 4
        %s538 = scalar_lea.vmem %s3, %s537
        %v539 = vld [vmem:[%s523] sm:$0xff]
        %v540 = vld [vmem:[%s523 + $0x8] sm:$0xff]
        %v541 = vld [vmem:[%s523 + $0x10] sm:$0xff]
        %v542 = vld [vmem:[%s523 + $0x18] sm:$0xff]
        %v543 = vld [vmem:[%s523 + $0x20] sm:$0xff]
        %v544 = vld [vmem:[%s523 + $0x28] sm:$0xff]
        %v545 = vld [vmem:[%s523 + $0x30] sm:$0xff]
        %v546 = vld [vmem:[%s523 + $0x38] sm:$0xff]
        %v547 = vld [vmem:[%s523 + $0x40] sm:$0xff]
        %v548 = vld [vmem:[%s523 + $0x48] sm:$0xff]
        %v549 = vld [vmem:[%s523 + $0x50] sm:$0xff]
        %v550 = vld [vmem:[%s523 + $0x58] sm:$0xff]
        %v551 = vld [vmem:[%s523 + $0x60] sm:$0xff]
        %v552 = vld [vmem:[%s523 + $0x68] sm:$0xff]
        %v553 = vld [vmem:[%s523 + $0x70] sm:$0xff]
        %v554 = vld [vmem:[%s523 + $0x78] sm:$0xff]
        %v555 = vpack.c.bf16 %v540, %v539
        %v556 = vpack.c.bf16 %v542, %v541
        %v557 = vpack.c.bf16 %v544, %v543
        %v558 = vpack.c.bf16 %v546, %v545
        %v559 = vpack.c.bf16 %v548, %v547
        %v560 = vpack.c.bf16 %v550, %v549
        %v561 = vpack.c.bf16 %v552, %v551
        %v562 = vpack.c.bf16 %v554, %v553
        %v563 = vld [vmem:[%s528] sm:$0xff]
        %v564 = vld [vmem:[%s528 + $0x8] sm:$0xff]
        %v565 = vld [vmem:[%s528 + $0x10] sm:$0xff]
        %v566 = vld [vmem:[%s528 + $0x18] sm:$0xff]
        %v567 = vld [vmem:[%s528 + $0x20] sm:$0xff]
        %v568 = vld [vmem:[%s528 + $0x28] sm:$0xff]
        %v569 = vld [vmem:[%s528 + $0x30] sm:$0xff]
        %v570 = vld [vmem:[%s528 + $0x38] sm:$0xff]
        %v571 = vld [vmem:[%s528 + $0x40] sm:$0xff]
        %v572 = vld [vmem:[%s528 + $0x48] sm:$0xff]
        %v573 = vld [vmem:[%s528 + $0x50] sm:$0xff]
        %v574 = vld [vmem:[%s528 + $0x58] sm:$0xff]
        %v575 = vld [vmem:[%s528 + $0x60] sm:$0xff]
        %v576 = vld [vmem:[%s528 + $0x68] sm:$0xff]
        %v577 = vld [vmem:[%s528 + $0x70] sm:$0xff]
        %v578 = vld [vmem:[%s528 + $0x78] sm:$0xff]
        %v579 = vpack.c.bf16 %v564, %v563
        %v580 = vpack.c.bf16 %v566, %v565
        %v581 = vpack.c.bf16 %v568, %v567
        %v582 = vpack.c.bf16 %v570, %v569
        %v583 = vpack.c.bf16 %v572, %v571
        %v584 = vpack.c.bf16 %v574, %v573
        %v585 = vpack.c.bf16 %v576, %v575
        %v586 = vpack.c.bf16 %v578, %v577
        %v587 = vld [vmem:[%s533] sm:$0xf]
        %v588 = vld [vmem:[%s533 + $0x4] sm:$0xf]
        %v589 = vld [vmem:[%s533 + $0x8] sm:$0xf]
        %v590 = vld [vmem:[%s533 + $0xc] sm:$0xf]
        %v591 = vld [vmem:[%s533 + $0x10] sm:$0xf]
        %v592 = vld [vmem:[%s533 + $0x14] sm:$0xf]
        %v593 = vld [vmem:[%s533 + $0x18] sm:$0xf]
        %v594 = vld [vmem:[%s533 + $0x1c] sm:$0xf]
        %v595 = vld [vmem:[%s533 + $0x20] sm:$0xf]
        %v596 = vld [vmem:[%s533 + $0x24] sm:$0xf]
        %v597 = vld [vmem:[%s533 + $0x28] sm:$0xf]
        %v598 = vld [vmem:[%s533 + $0x2c] sm:$0xf]
        %v599 = vld [vmem:[%s533 + $0x30] sm:$0xf]
        %v600 = vld [vmem:[%s533 + $0x34] sm:$0xf]
        %v601 = vld [vmem:[%s533 + $0x38] sm:$0xf]
        %v602 = vld [vmem:[%s533 + $0x3c] sm:$0xf]
        %v603 = vld [vmem:[%s538] sm:$0xf]
        %v604 = vld [vmem:[%s538 + $0x4] sm:$0xf]
        %v605 = vld [vmem:[%s538 + $0x8] sm:$0xf]
        %v606 = vld [vmem:[%s538 + $0xc] sm:$0xf]
        %v607 = vld [vmem:[%s538 + $0x10] sm:$0xf]
        %v608 = vld [vmem:[%s538 + $0x14] sm:$0xf]
        %v609 = vld [vmem:[%s538 + $0x18] sm:$0xf]
        %v610 = vld [vmem:[%s538 + $0x1c] sm:$0xf]
        %v611 = vld [vmem:[%s538 + $0x20] sm:$0xf]
        %v612 = vld [vmem:[%s538 + $0x24] sm:$0xf]
        %v613 = vld [vmem:[%s538 + $0x28] sm:$0xf]
        %v614 = vld [vmem:[%s538 + $0x2c] sm:$0xf]
        %v615 = vld [vmem:[%s538 + $0x30] sm:$0xf]
        %v616 = vld [vmem:[%s538 + $0x34] sm:$0xf]
        %v617 = vld [vmem:[%s538 + $0x38] sm:$0xf]
        %v618 = vld [vmem:[%s538 + $0x3c] sm:$0xf]
        %v619 = vld [vmem:[#allocation2] sm:$0x1]
        %v620 = vld [vmem:[%s5] sm:$0xf]
        %v621 = vld [vmem:[%s5 + $0x4] sm:$0xf]
        %v622 = vld [vmem:[%s5 + $0x8] sm:$0xf]
        %v623 = vld [vmem:[%s5 + $0xc] sm:$0xf]
        %v624 = vld [vmem:[%s5 + $0x10] sm:$0xf]
        %v625 = vld [vmem:[%s5 + $0x14] sm:$0xf]
        %v626 = vld [vmem:[%s5 + $0x18] sm:$0xf]
        %v627 = vld [vmem:[%s5 + $0x1c] sm:$0xf]
        %v628 = vld [vmem:[%s5 + $0x20] sm:$0xf]
        %v629 = vld [vmem:[%s5 + $0x24] sm:$0xf]
        %v630 = vld [vmem:[%s5 + $0x28] sm:$0xf]
        %v631 = vld [vmem:[%s5 + $0x2c] sm:$0xf]
        %v632 = vld [vmem:[%s5 + $0x30] sm:$0xf]
        %v633 = vld [vmem:[%s5 + $0x34] sm:$0xf]
        %v634 = vld [vmem:[%s5 + $0x38] sm:$0xf]
        %v635 = vld [vmem:[%s5 + $0x3c] sm:$0xf]
        %v636 = vld [vmem:[%s6] sm:$0x1]
        %v638 = vperm.slane %v636, 0
        %v656 = vunpack.c.l.b16 %v620
        %v657 = vunpack.c.l.b16 %v621
        %v658 = vunpack.c.l.b16 %v622
        %v659 = vunpack.c.l.b16 %v623
        %v660 = vunpack.c.l.b16 %v624
        %v661 = vunpack.c.l.b16 %v625
        %v662 = vunpack.c.l.b16 %v626
        %v663 = vunpack.c.l.b16 %v627
        %v664 = vunpack.c.l.b16 %v628
        %v665 = vunpack.c.l.b16 %v629
        %v666 = vunpack.c.l.b16 %v630
        %v667 = vunpack.c.l.b16 %v631
        %v668 = vunpack.c.l.b16 %v632
        %v669 = vunpack.c.l.b16 %v633
        %v670 = vunpack.c.l.b16 %v634
        %v671 = vunpack.c.l.b16 %v635
        %v672 = vpack.c.b16 %v657, %v656
        %v673 = vpack.c.b16 %v659, %v658
        %v674 = vpack.c.b16 %v661, %v660
        %v675 = vpack.c.b16 %v663, %v662
        %v676 = vpack.c.b16 %v665, %v664
        %v677 = vpack.c.b16 %v667, %v666
        %v678 = vpack.c.b16 %v669, %v668
        %v679 = vpack.c.b16 %v671, %v670
        %688 = vmatpush.bf16.msra.mxu0 %v679
        %689 = vmatpush.bf16.msra.mxu0 %v678
        %690 = vmatpush.bf16.msra.mxu0 %v677
        %691 = vmatpush.bf16.msra.mxu0 %v676
        %692 = vmatpush.bf16.msra.mxu0 %v675
        %693 = vmatpush.bf16.msra.mxu0 %v674
        %694 = vmatpush.bf16.msra.mxu0 %v673
        %695 = vmatpush.bf16.msra.mxu0 %v672
        %696 = vmatmul.bf16.gmra.mxu0 %v555
        %v697 = vpop.f32.mrf.mxu0
        %v698 = vadd.f32 %v638, %v697
        %v699 = vpop.f32.mrf.mxu0
        %v700 = vadd.f32 %v638, %v699
        %701 = vmatmul.bf16.gmra.mxu0 %v556
        %v702 = vpop.f32.mrf.mxu0
        %v703 = vadd.f32 %v638, %v702
        %v704 = vpop.f32.mrf.mxu0
        %v705 = vadd.f32 %v638, %v704
        %706 = vmatmul.bf16.gmra.mxu0 %v557
        %v707 = vpop.f32.mrf.mxu0
        %v708 = vadd.f32 %v638, %v707
        %v709 = vpop.f32.mrf.mxu0
        %v710 = vadd.f32 %v638, %v709
        %711 = vmatmul.bf16.gmra.mxu0 %v558
        %v712 = vpop.f32.mrf.mxu0
        %v713 = vadd.f32 %v638, %v712
        %v714 = vpop.f32.mrf.mxu0
        %v715 = vadd.f32 %v638, %v714
        %716 = vmatmul.bf16.gmra.mxu0 %v559
        %v717 = vpop.f32.mrf.mxu0
        %v718 = vadd.f32 %v638, %v717
        %v719 = vpop.f32.mrf.mxu0
        %v720 = vadd.f32 %v638, %v719
        %721 = vmatmul.bf16.gmra.mxu0 %v560
        %v722 = vpop.f32.mrf.mxu0
        %v723 = vadd.f32 %v638, %v722
        %v724 = vpop.f32.mrf.mxu0
        %v725 = vadd.f32 %v638, %v724
        %726 = vmatmul.bf16.gmra.mxu0 %v561
        %v727 = vpop.f32.mrf.mxu0
        %v728 = vadd.f32 %v638, %v727
        %v729 = vpop.f32.mrf.mxu0
        %v730 = vadd.f32 %v638, %v729
        %731 = vmatmul.bf16.gmra.mxu0 %v562
        %v732 = vpop.f32.mrf.mxu0
        %v733 = vadd.f32 %v638, %v732
        %v734 = vpop.f32.mrf.mxu0
        %v735 = vadd.f32 %v638, %v734
        %736 = vdwg.mxu0
        %v737 = vpack.c.bf16 %v698, %v698
        %v738 = vpack.c.bf16 %v700, %v700
        %v739 = vpack.c.bf16 %v703, %v703
        %v740 = vpack.c.bf16 %v705, %v705
        %v741 = vpack.c.bf16 %v708, %v708
        %v742 = vpack.c.bf16 %v710, %v710
        %v743 = vpack.c.bf16 %v713, %v713
        %v744 = vpack.c.bf16 %v715, %v715
        %v745 = vpack.c.bf16 %v718, %v718
        %v746 = vpack.c.bf16 %v720, %v720
        %v747 = vpack.c.bf16 %v723, %v723
        %v748 = vpack.c.bf16 %v725, %v725
        %v749 = vpack.c.bf16 %v728, %v728
        %v750 = vpack.c.bf16 %v730, %v730
        %v751 = vpack.c.bf16 %v733, %v733
        %v752 = vpack.c.bf16 %v735, %v735
        %v753 = vld [vmem:[%s7] sm:$0xf]
        %v754 = vld [vmem:[%s7 + $0x4] sm:$0xf]
        %v755 = vld [vmem:[%s7 + $0x8] sm:$0xf]
        %v756 = vld [vmem:[%s7 + $0xc] sm:$0xf]
        %v757 = vld [vmem:[%s7 + $0x10] sm:$0xf]
        %v758 = vld [vmem:[%s7 + $0x14] sm:$0xf]
        %v759 = vld [vmem:[%s7 + $0x18] sm:$0xf]
        %v760 = vld [vmem:[%s7 + $0x1c] sm:$0xf]
        %v761 = vld [vmem:[%s7 + $0x20] sm:$0xf]
        %v762 = vld [vmem:[%s7 + $0x24] sm:$0xf]
        %v763 = vld [vmem:[%s7 + $0x28] sm:$0xf]
        %v764 = vld [vmem:[%s7 + $0x2c] sm:$0xf]
        %v765 = vld [vmem:[%s7 + $0x30] sm:$0xf]
        %v766 = vld [vmem:[%s7 + $0x34] sm:$0xf]
        %v767 = vld [vmem:[%s7 + $0x38] sm:$0xf]
        %v768 = vld [vmem:[%s7 + $0x3c] sm:$0xf]
        %v769 = vld [vmem:[%s8] sm:$0x1]
        %v771 = vperm.slane %v769, 0
        %v789 = vunpack.c.l.b16 %v753
        %v790 = vunpack.c.l.b16 %v754
        %v791 = vunpack.c.l.b16 %v755
        %v792 = vunpack.c.l.b16 %v756
        %v793 = vunpack.c.l.b16 %v757
        %v794 = vunpack.c.l.b16 %v758
        %v795 = vunpack.c.l.b16 %v759
        %v796 = vunpack.c.l.b16 %v760
        %v797 = vunpack.c.l.b16 %v761
        %v798 = vunpack.c.l.b16 %v762
        %v799 = vunpack.c.l.b16 %v763
        %v800 = vunpack.c.l.b16 %v764
        %v801 = vunpack.c.l.b16 %v765
        %v802 = vunpack.c.l.b16 %v766
        %v803 = vunpack.c.l.b16 %v767
        %v804 = vunpack.c.l.b16 %v768
        %v805 = vpack.c.b16 %v790, %v789
        %v806 = vpack.c.b16 %v792, %v791
        %v807 = vpack.c.b16 %v794, %v793
        %v808 = vpack.c.b16 %v796, %v795
        %v809 = vpack.c.b16 %v798, %v797
        %v810 = vpack.c.b16 %v800, %v799
        %v811 = vpack.c.b16 %v802, %v801
        %v812 = vpack.c.b16 %v804, %v803
        %821 = vmatpush.bf16.msra.mxu0 %v812
        %822 = vmatpush.bf16.msra.mxu0 %v811
        %823 = vmatpush.bf16.msra.mxu0 %v810
        %824 = vmatpush.bf16.msra.mxu0 %v809
        %825 = vmatpush.bf16.msra.mxu0 %v808
        %826 = vmatpush.bf16.msra.mxu0 %v807
        %827 = vmatpush.bf16.msra.mxu0 %v806
        %828 = vmatpush.bf16.msra.mxu0 %v805
        %829 = vmatmul.bf16.gmra.mxu0 %v579
        %v830 = vpop.f32.mrf.mxu0
        %v831 = vadd.f32 %v771, %v830
        %v832 = vpop.f32.mrf.mxu0
        %v833 = vadd.f32 %v771, %v832
        %834 = vmatmul.bf16.gmra.mxu0 %v580
        %v835 = vpop.f32.mrf.mxu0
        %v836 = vadd.f32 %v771, %v835
        %v837 = vpop.f32.mrf.mxu0
        %v838 = vadd.f32 %v771, %v837
        %839 = vmatmul.bf16.gmra.mxu0 %v581
        %v840 = vpop.f32.mrf.mxu0
        %v841 = vadd.f32 %v771, %v840
        %v842 = vpop.f32.mrf.mxu0
        %v843 = vadd.f32 %v771, %v842
        %844 = vmatmul.bf16.gmra.mxu0 %v582
        %v845 = vpop.f32.mrf.mxu0
        %v846 = vadd.f32 %v771, %v845
        %v847 = vpop.f32.mrf.mxu0
        %v848 = vadd.f32 %v771, %v847
        %849 = vmatmul.bf16.gmra.mxu0 %v583
        %v850 = vpop.f32.mrf.mxu0
        %v851 = vadd.f32 %v771, %v850
        %v852 = vpop.f32.mrf.mxu0
        %v853 = vadd.f32 %v771, %v852
        %854 = vmatmul.bf16.gmra.mxu0 %v584
        %v855 = vpop.f32.mrf.mxu0
        %v856 = vadd.f32 %v771, %v855
        %v857 = vpop.f32.mrf.mxu0
        %v858 = vadd.f32 %v771, %v857
        %859 = vmatmul.bf16.gmra.mxu0 %v585
        %v860 = vpop.f32.mrf.mxu0
        %v861 = vadd.f32 %v771, %v860
        %v862 = vpop.f32.mrf.mxu0
        %v863 = vadd.f32 %v771, %v862
        %864 = vmatmul.bf16.gmra.mxu0 %v586
        %v865 = vpop.f32.mrf.mxu0
        %v866 = vadd.f32 %v771, %v865
        %v867 = vpop.f32.mrf.mxu0
        %v868 = vadd.f32 %v771, %v867
        %869 = vdwg.mxu0
        %v870 = vpack.c.bf16 %v831, %v831
        %v871 = vpack.c.bf16 %v833, %v833
        %v872 = vpack.c.bf16 %v836, %v836
        %v873 = vpack.c.bf16 %v838, %v838
        %v874 = vpack.c.bf16 %v841, %v841
        %v875 = vpack.c.bf16 %v843, %v843
        %v876 = vpack.c.bf16 %v846, %v846
        %v877 = vpack.c.bf16 %v848, %v848
        %v878 = vpack.c.bf16 %v851, %v851
        %v879 = vpack.c.bf16 %v853, %v853
        %v880 = vpack.c.bf16 %v856, %v856
        %v881 = vpack.c.bf16 %v858, %v858
        %v882 = vpack.c.bf16 %v861, %v861
        %v883 = vpack.c.bf16 %v863, %v863
        %v884 = vpack.c.bf16 %v866, %v866
        %v885 = vpack.c.bf16 %v868, %v868
        %v902 = vunpack.c.l.b16 %v587
        %v903 = vunpack.c.l.b16 %v588
        %v904 = vunpack.c.l.b16 %v589
        %v905 = vunpack.c.l.b16 %v590
        %v906 = vunpack.c.l.b16 %v591
        %v907 = vunpack.c.l.b16 %v592
        %v908 = vunpack.c.l.b16 %v593
        %v909 = vunpack.c.l.b16 %v594
        %v910 = vunpack.c.l.b16 %v595
        %v911 = vunpack.c.l.b16 %v596
        %v912 = vunpack.c.l.b16 %v597
        %v913 = vunpack.c.l.b16 %v598
        %v914 = vunpack.c.l.b16 %v599
        %v915 = vunpack.c.l.b16 %v600
        %v916 = vunpack.c.l.b16 %v601
        %v917 = vunpack.c.l.b16 %v602
        %v918 = vpack.c.b16 %v903, %v902
        %v919 = vpack.c.b16 %v905, %v904
        %v920 = vpack.c.b16 %v907, %v906
        %v921 = vpack.c.b16 %v909, %v908
        %v922 = vpack.c.b16 %v911, %v910
        %v923 = vpack.c.b16 %v913, %v912
        %v924 = vpack.c.b16 %v915, %v914
        %v925 = vpack.c.b16 %v917, %v916
        %v942 = vunpack.c.l.b16 %v603
        %v943 = vunpack.c.l.b16 %v604
        %v944 = vunpack.c.l.b16 %v605
        %v945 = vunpack.c.l.b16 %v606
        %v946 = vunpack.c.l.b16 %v607
        %v947 = vunpack.c.l.b16 %v608
        %v948 = vunpack.c.l.b16 %v609
        %v949 = vunpack.c.l.b16 %v610
        %v950 = vunpack.c.l.b16 %v611
        %v951 = vunpack.c.l.b16 %v612
        %v952 = vunpack.c.l.b16 %v613
        %v953 = vunpack.c.l.b16 %v614
        %v954 = vunpack.c.l.b16 %v615
        %v955 = vunpack.c.l.b16 %v616
        %v956 = vunpack.c.l.b16 %v617
        %v957 = vunpack.c.l.b16 %v618
        %v958 = vpack.c.b16 %v943, %v942
        %v959 = vpack.c.b16 %v945, %v944
        %v960 = vpack.c.b16 %v947, %v946
        %v961 = vpack.c.b16 %v949, %v948
        %v962 = vpack.c.b16 %v951, %v950
        %v963 = vpack.c.b16 %v953, %v952
        %v964 = vpack.c.b16 %v955, %v954
        %v965 = vpack.c.b16 %v957, %v956
        %vm966 = vcmask 261120
        %v968 = vsel %vm966, %v918, 0
        %v971 = vsel %vm966, %v919, 0
        %v974 = vsel %vm966, %v920, 0
        %v977 = vsel %vm966, %v921, 0
        %v980 = vsel %vm966, %v922, 0
        %v983 = vsel %vm966, %v923, 0
        %v986 = vsel %vm966, %v924, 0
        %v989 = vsel %vm966, %v925, 0
        %v992 = vsel %vm966, %v958, 0
        %v995 = vsel %vm966, %v959, 0
        %v998 = vsel %vm966, %v960, 0
        %v1001 = vsel %vm966, %v961, 0
        %v1004 = vsel %vm966, %v962, 0
        %v1007 = vsel %vm966, %v963, 0
        %v1010 = vsel %vm966, %v964, 0
        %v1013 = vsel %vm966, %v965, 0
        %1015 = vmatpush.bf16.xpose.msra.mxu0 %v1013
        %1016 = vmatpush.bf16.xpose.msra.mxu0 %v1010
        %1017 = vmatpush.bf16.xpose.msra.mxu0 %v1007
        %1018 = vmatpush.bf16.xpose.msra.mxu0 %v1004
        %1019 = vmatpush.bf16.xpose.msra.mxu0 %v1001
        %1020 = vmatpush.bf16.xpose.msra.mxu0 %v998
        %1021 = vmatpush.bf16.xpose.msra.mxu0 %v995
        %1022 = vmatpush.bf16.xpose.msra.mxu0 %v992
        %1023 = vmatmul.bf16.gmra.mxu0 %v968
        %v1024 = vpop.f32.mrf.mxu0
        %v1025 = vadd.f32 0.0, %v1024
        %v1026 = vpop.f32.mrf.mxu0
        %v1027 = vadd.f32 0.0, %v1026
        %1028 = vmatmul.bf16.gmra.mxu0 %v971
        %v1029 = vpop.f32.mrf.mxu0
        %v1030 = vadd.f32 0.0, %v1029
        %v1031 = vpop.f32.mrf.mxu0
        %v1032 = vadd.f32 0.0, %v1031
        %1033 = vmatmul.bf16.gmra.mxu0 %v974
        %v1034 = vpop.f32.mrf.mxu0
        %v1035 = vadd.f32 0.0, %v1034
        %v1036 = vpop.f32.mrf.mxu0
        %v1037 = vadd.f32 0.0, %v1036
        %1038 = vmatmul.bf16.gmra.mxu0 %v977
        %v1039 = vpop.f32.mrf.mxu0
        %v1040 = vadd.f32 0.0, %v1039
        %v1041 = vpop.f32.mrf.mxu0
        %v1042 = vadd.f32 0.0, %v1041
        %1043 = vmatmul.bf16.gmra.mxu0 %v980
        %v1044 = vpop.f32.mrf.mxu0
        %v1045 = vadd.f32 0.0, %v1044
        %v1046 = vpop.f32.mrf.mxu0
        %v1047 = vadd.f32 0.0, %v1046
        %1048 = vmatmul.bf16.gmra.mxu0 %v983
        %v1049 = vpop.f32.mrf.mxu0
        %v1050 = vadd.f32 0.0, %v1049
        %v1051 = vpop.f32.mrf.mxu0
        %v1052 = vadd.f32 0.0, %v1051
        %1053 = vmatmul.bf16.gmra.mxu0 %v986
        %v1054 = vpop.f32.mrf.mxu0
        %v1055 = vadd.f32 0.0, %v1054
        %v1056 = vpop.f32.mrf.mxu0
        %v1057 = vadd.f32 0.0, %v1056
        %1058 = vmatmul.bf16.gmra.mxu0 %v989
        %v1059 = vpop.f32.mrf.mxu0
        %v1060 = vadd.f32 0.0, %v1059
        %v1061 = vpop.f32.mrf.mxu0
        %v1062 = vadd.f32 0.0, %v1061
        %1063 = vdwg.mxu0
        %v1065 = vperm.slane %v619, 0
        %1066 = vset.pattern.permute.xlu0 0
        %1067 = vperm.xlu0 %1066, %v1065
        %v1068 = vpop.permute.xlu0 %1067
        %v1070 = vsub.f32 %v1025, %v1068
        %v1071 = vsub.f32 %v1027, %v1068
        %v1072 = vsub.f32 %v1030, %v1068
        %v1073 = vsub.f32 %v1032, %v1068
        %v1074 = vsub.f32 %v1035, %v1068
        %v1075 = vsub.f32 %v1037, %v1068
        %v1076 = vsub.f32 %v1040, %v1068
        %v1077 = vsub.f32 %v1042, %v1068
        %v1078 = vsub.f32 %v1045, %v1068
        %v1079 = vsub.f32 %v1047, %v1068
        %v1080 = vsub.f32 %v1050, %v1068
        %v1081 = vsub.f32 %v1052, %v1068
        %v1082 = vsub.f32 %v1055, %v1068
        %v1083 = vsub.f32 %v1057, %v1068
        %v1084 = vsub.f32 %v1060, %v1068
        %v1085 = vsub.f32 %v1062, %v1068
        %v1086 = vmax.f32 %v1070, -50000.0
        %v1087 = vmax.f32 %v1071, -50000.0
        %v1088 = vmax.f32 %v1072, -50000.0
        %v1089 = vmax.f32 %v1073, -50000.0
        %v1090 = vmax.f32 %v1074, -50000.0
        %v1091 = vmax.f32 %v1075, -50000.0
        %v1092 = vmax.f32 %v1076, -50000.0
        %v1093 = vmax.f32 %v1077, -50000.0
        %v1094 = vmax.f32 %v1078, -50000.0
        %v1095 = vmax.f32 %v1079, -50000.0
        %v1096 = vmax.f32 %v1080, -50000.0
        %v1097 = vmax.f32 %v1081, -50000.0
        %v1098 = vmax.f32 %v1082, -50000.0
        %v1099 = vmax.f32 %v1083, -50000.0
        %v1100 = vmax.f32 %v1084, -50000.0
        %v1101 = vmax.f32 %v1085, -50000.0
        %v1102 = vmin.f32 %v1086, 50000.0
        %v1103 = vmin.f32 %v1087, 50000.0
        %v1104 = vmin.f32 %v1088, 50000.0
        %v1105 = vmin.f32 %v1089, 50000.0
        %v1106 = vmin.f32 %v1090, 50000.0
        %v1107 = vmin.f32 %v1091, 50000.0
        %v1108 = vmin.f32 %v1092, 50000.0
        %v1109 = vmin.f32 %v1093, 50000.0
        %v1110 = vmin.f32 %v1094, 50000.0
        %v1111 = vmin.f32 %v1095, 50000.0
        %v1112 = vmin.f32 %v1096, 50000.0
        %v1113 = vmin.f32 %v1097, 50000.0
        %v1114 = vmin.f32 %v1098, 50000.0
        %v1115 = vmin.f32 %v1099, 50000.0
        %v1116 = vmin.f32 %v1100, 50000.0
        %v1117 = vmin.f32 %v1101, 50000.0
        %1118 = vmax.xlane.f32.xlu0 %v1102
        %v1119 = vpop.xlane.xlu0 %1118
        %1120 = vmax.xlane.f32.xlu0 %v1103
        %v1121 = vpop.xlane.xlu0 %1120
        %1122 = vmax.xlane.f32.xlu0 %v1104
        %v1123 = vpop.xlane.xlu0 %1122
        %1124 = vmax.xlane.f32.xlu0 %v1105
        %v1125 = vpop.xlane.xlu0 %1124
        %1126 = vmax.xlane.f32.xlu0 %v1106
        %v1127 = vpop.xlane.xlu0 %1126
        %1128 = vmax.xlane.f32.xlu0 %v1107
        %v1129 = vpop.xlane.xlu0 %1128
        %1130 = vmax.xlane.f32.xlu0 %v1108
        %v1131 = vpop.xlane.xlu0 %1130
        %1132 = vmax.xlane.f32.xlu0 %v1109
        %v1133 = vpop.xlane.xlu0 %1132
        %1134 = vmax.xlane.f32.xlu0 %v1110
        %v1135 = vpop.xlane.xlu0 %1134
        %1136 = vmax.xlane.f32.xlu0 %v1111
        %v1137 = vpop.xlane.xlu0 %1136
        %1138 = vmax.xlane.f32.xlu0 %v1112
        %v1139 = vpop.xlane.xlu0 %1138
        %1140 = vmax.xlane.f32.xlu0 %v1113
        %v1141 = vpop.xlane.xlu0 %1140
        %1142 = vmax.xlane.f32.xlu0 %v1114
        %v1143 = vpop.xlane.xlu0 %1142
        %1144 = vmax.xlane.f32.xlu0 %v1115
        %v1145 = vpop.xlane.xlu0 %1144
        %1146 = vmax.xlane.f32.xlu0 %v1116
        %v1147 = vpop.xlane.xlu0 %1146
        %1148 = vmax.xlane.f32.xlu0 %v1117
        %v1149 = vpop.xlane.xlu0 %1148
        %v1150 = vsub.f32 %v1102, %v1119
        %v1151 = vsub.f32 %v1103, %v1121
        %v1152 = vsub.f32 %v1104, %v1123
        %v1153 = vsub.f32 %v1105, %v1125
        %v1154 = vsub.f32 %v1106, %v1127
        %v1155 = vsub.f32 %v1107, %v1129
        %v1156 = vsub.f32 %v1108, %v1131
        %v1157 = vsub.f32 %v1109, %v1133
        %v1158 = vsub.f32 %v1110, %v1135
        %v1159 = vsub.f32 %v1111, %v1137
        %v1160 = vsub.f32 %v1112, %v1139
        %v1161 = vsub.f32 %v1113, %v1141
        %v1162 = vsub.f32 %v1114, %v1143
        %v1163 = vsub.f32 %v1115, %v1145
        %v1164 = vsub.f32 %v1116, %v1147
        %v1165 = vsub.f32 %v1117, %v1149
        %v1166 = vmul.f32 %v1150, 1.442695
        %v1167 = vpow.pop %v1166
        %v1168 = vmul.f32 %v1151, 1.442695
        %v1169 = vpow.pop %v1168
        %v1170 = vmul.f32 %v1152, 1.442695
        %v1171 = vpow.pop %v1170
        %v1172 = vmul.f32 %v1153, 1.442695
        %v1173 = vpow.pop %v1172
        %v1174 = vmul.f32 %v1154, 1.442695
        %v1175 = vpow.pop %v1174
        %v1176 = vmul.f32 %v1155, 1.442695
        %v1177 = vpow.pop %v1176
        %v1178 = vmul.f32 %v1156, 1.442695
        %v1179 = vpow.pop %v1178
        %v1180 = vmul.f32 %v1157, 1.442695
        %v1181 = vpow.pop %v1180
        %v1182 = vmul.f32 %v1158, 1.442695
        %v1183 = vpow.pop %v1182
        %v1184 = vmul.f32 %v1159, 1.442695
        %v1185 = vpow.pop %v1184
        %v1186 = vmul.f32 %v1160, 1.442695
        %v1187 = vpow.pop %v1186
        %v1188 = vmul.f32 %v1161, 1.442695
        %v1189 = vpow.pop %v1188
        %v1190 = vmul.f32 %v1162, 1.442695
        %v1191 = vpow.pop %v1190
        %v1192 = vmul.f32 %v1163, 1.442695
        %v1193 = vpow.pop %v1192
        %v1194 = vmul.f32 %v1164, 1.442695
        %v1195 = vpow.pop %v1194
        %v1196 = vmul.f32 %v1165, 1.442695
        %v1197 = vpow.pop %v1196
        %1198 = vadd.xlane.f32.xlu0 %v1167
        %v1199 = vpop.xlane.xlu0 %1198
        %1200 = vadd.xlane.f32.xlu0 %v1169
        %v1201 = vpop.xlane.xlu0 %1200
        %1202 = vadd.xlane.f32.xlu0 %v1171
        %v1203 = vpop.xlane.xlu0 %1202
        %1204 = vadd.xlane.f32.xlu0 %v1173
        %v1205 = vpop.xlane.xlu0 %1204
        %1206 = vadd.xlane.f32.xlu0 %v1175
        %v1207 = vpop.xlane.xlu0 %1206
        %1208 = vadd.xlane.f32.xlu0 %v1177
        %v1209 = vpop.xlane.xlu0 %1208
        %1210 = vadd.xlane.f32.xlu0 %v1179
        %v1211 = vpop.xlane.xlu0 %1210
        %1212 = vadd.xlane.f32.xlu0 %v1181
        %v1213 = vpop.xlane.xlu0 %1212
        %1214 = vadd.xlane.f32.xlu0 %v1183
        %v1215 = vpop.xlane.xlu0 %1214
        %1216 = vadd.xlane.f32.xlu0 %v1185
        %v1217 = vpop.xlane.xlu0 %1216
        %1218 = vadd.xlane.f32.xlu0 %v1187
        %v1219 = vpop.xlane.xlu0 %1218
        %1220 = vadd.xlane.f32.xlu0 %v1189
        %v1221 = vpop.xlane.xlu0 %1220
        %1222 = vadd.xlane.f32.xlu0 %v1191
        %v1223 = vpop.xlane.xlu0 %1222
        %1224 = vadd.xlane.f32.xlu0 %v1193
        %v1225 = vpop.xlane.xlu0 %1224
        %1226 = vadd.xlane.f32.xlu0 %v1195
        %v1227 = vpop.xlane.xlu0 %1226
        %1228 = vadd.xlane.f32.xlu0 %v1197
        %v1229 = vpop.xlane.xlu0 %1228
        %v1230 = vrcp.pop %v1199
        %v1231 = vrcp.pop %v1201
        %v1232 = vrcp.pop %v1203
        %v1233 = vrcp.pop %v1205
        %v1234 = vrcp.pop %v1207
        %v1235 = vrcp.pop %v1209
        %v1236 = vrcp.pop %v1211
        %v1237 = vrcp.pop %v1213
        %v1238 = vrcp.pop %v1215
        %v1239 = vrcp.pop %v1217
        %v1240 = vrcp.pop %v1219
        %v1241 = vrcp.pop %v1221
        %v1242 = vrcp.pop %v1223
        %v1243 = vrcp.pop %v1225
        %v1244 = vrcp.pop %v1227
        %v1245 = vrcp.pop %v1229
        %v1246 = vmul.f32 %v1167, %v1230
        %v1247 = vmul.f32 %v1169, %v1231
        %v1248 = vmul.f32 %v1171, %v1232
        %v1249 = vmul.f32 %v1173, %v1233
        %v1250 = vmul.f32 %v1175, %v1234
        %v1251 = vmul.f32 %v1177, %v1235
        %v1252 = vmul.f32 %v1179, %v1236
        %v1253 = vmul.f32 %v1181, %v1237
        %v1254 = vmul.f32 %v1183, %v1238
        %v1255 = vmul.f32 %v1185, %v1239
        %v1256 = vmul.f32 %v1187, %v1240
        %v1257 = vmul.f32 %v1189, %v1241
        %v1258 = vmul.f32 %v1191, %v1242
        %v1259 = vmul.f32 %v1193, %v1243
        %v1260 = vmul.f32 %v1195, %v1244
        %v1261 = vmul.f32 %v1197, %v1245
        %v1262 = vpack.c.bf16 %v1247, %v1246
        %v1263 = vpack.c.bf16 %v1249, %v1248
        %v1264 = vpack.c.bf16 %v1251, %v1250
        %v1265 = vpack.c.bf16 %v1253, %v1252
        %v1266 = vpack.c.bf16 %v1255, %v1254
        %v1267 = vpack.c.bf16 %v1257, %v1256
        %v1268 = vpack.c.bf16 %v1259, %v1258
        %v1269 = vpack.c.bf16 %v1261, %v1260
        %1270 = vxpose.xlu0.b32.start [1/16] %v1102, 128
        %1271 = vxpose.xlu0.b32.cont [2/16] %v1103, 128
        %1272 = vxpose.xlu0.b32.cont [3/16] %v1104, 128
        %1273 = vxpose.xlu0.b32.cont [4/16] %v1105, 128
        %1274 = vxpose.xlu0.b32.cont [5/16] %v1106, 128
        %1275 = vxpose.xlu0.b32.cont [6/16] %v1107, 128
        %1276 = vxpose.xlu0.b32.cont [7/16] %v1108, 128
        %1277 = vxpose.xlu0.b32.cont [8/16] %v1109, 128
        %1278 = vxpose.xlu0.b32.cont [9/16] %v1110, 128
        %1279 = vxpose.xlu0.b32.cont [10/16] %v1111, 128
        %1280 = vxpose.xlu0.b32.cont [11/16] %v1112, 128
        %1281 = vxpose.xlu0.b32.cont [12/16] %v1113, 128
        %1282 = vxpose.xlu0.b32.cont [13/16] %v1114, 128
        %1283 = vxpose.xlu0.b32.cont [14/16] %v1115, 128
        %1284 = vxpose.xlu0.b32.cont [15/16] %v1116, 128
        %1285 = vxpose.xlu0.b32.end [16/16] %v1117, 128
        %v1286 = vpop.trf.xlu0
        %v1287 = vpop.trf.xlu0
        %v1288 = vpop.trf.xlu0
        %v1289 = vpop.trf.xlu0
        %v1290 = vpop.trf.xlu0
        %v1291 = vpop.trf.xlu0
        %v1292 = vpop.trf.xlu0
        %v1293 = vpop.trf.xlu0
        %v1294 = vpop.trf.xlu0
        %v1295 = vpop.trf.xlu0
        %v1296 = vpop.trf.xlu0
        %v1297 = vpop.trf.xlu0
        %v1298 = vpop.trf.xlu0
        %v1299 = vpop.trf.xlu0
        %v1300 = vpop.trf.xlu0
        %v1301 = vpop.trf.xlu0
        %1302 = vmax.xlane.f32.xlu0 %v1286
        %v1303 = vpop.xlane.xlu0 %1302
        %1304 = vmax.xlane.f32.xlu0 %v1287
        %v1305 = vpop.xlane.xlu0 %1304
        %1306 = vmax.xlane.f32.xlu0 %v1288
        %v1307 = vpop.xlane.xlu0 %1306
        %1308 = vmax.xlane.f32.xlu0 %v1289
        %v1309 = vpop.xlane.xlu0 %1308
        %1310 = vmax.xlane.f32.xlu0 %v1290
        %v1311 = vpop.xlane.xlu0 %1310
        %1312 = vmax.xlane.f32.xlu0 %v1291
        %v1313 = vpop.xlane.xlu0 %1312
        %1314 = vmax.xlane.f32.xlu0 %v1292
        %v1315 = vpop.xlane.xlu0 %1314
        %1316 = vmax.xlane.f32.xlu0 %v1293
        %v1317 = vpop.xlane.xlu0 %1316
        %1318 = vmax.xlane.f32.xlu0 %v1294
        %v1319 = vpop.xlane.xlu0 %1318
        %1320 = vmax.xlane.f32.xlu0 %v1295
        %v1321 = vpop.xlane.xlu0 %1320
        %1322 = vmax.xlane.f32.xlu0 %v1296
        %v1323 = vpop.xlane.xlu0 %1322
        %1324 = vmax.xlane.f32.xlu0 %v1297
        %v1325 = vpop.xlane.xlu0 %1324
        %1326 = vmax.xlane.f32.xlu0 %v1298
        %v1327 = vpop.xlane.xlu0 %1326
        %1328 = vmax.xlane.f32.xlu0 %v1299
        %v1329 = vpop.xlane.xlu0 %1328
        %1330 = vmax.xlane.f32.xlu0 %v1300
        %v1331 = vpop.xlane.xlu0 %1330
        %1332 = vmax.xlane.f32.xlu0 %v1301
        %v1333 = vpop.xlane.xlu0 %1332
        %v1334 = vsub.f32 %v1286, %v1303
        %v1335 = vsub.f32 %v1287, %v1305
        %v1336 = vsub.f32 %v1288, %v1307
        %v1337 = vsub.f32 %v1289, %v1309
        %v1338 = vsub.f32 %v1290, %v1311
        %v1339 = vsub.f32 %v1291, %v1313
        %v1340 = vsub.f32 %v1292, %v1315
        %v1341 = vsub.f32 %v1293, %v1317
        %v1342 = vsub.f32 %v1294, %v1319
        %v1343 = vsub.f32 %v1295, %v1321
        %v1344 = vsub.f32 %v1296, %v1323
        %v1345 = vsub.f32 %v1297, %v1325
        %v1346 = vsub.f32 %v1298, %v1327
        %v1347 = vsub.f32 %v1299, %v1329
        %v1348 = vsub.f32 %v1300, %v1331
        %v1349 = vsub.f32 %v1301, %v1333
        %v1350 = vmax.f32 %v1334, -50000.0
        %v1351 = vmax.f32 %v1335, -50000.0
        %v1352 = vmax.f32 %v1336, -50000.0
        %v1353 = vmax.f32 %v1337, -50000.0
        %v1354 = vmax.f32 %v1338, -50000.0
        %v1355 = vmax.f32 %v1339, -50000.0
        %v1356 = vmax.f32 %v1340, -50000.0
        %v1357 = vmax.f32 %v1341, -50000.0
        %v1358 = vmax.f32 %v1342, -50000.0
        %v1359 = vmax.f32 %v1343, -50000.0
        %v1360 = vmax.f32 %v1344, -50000.0
        %v1361 = vmax.f32 %v1345, -50000.0
        %v1362 = vmax.f32 %v1346, -50000.0
        %v1363 = vmax.f32 %v1347, -50000.0
        %v1364 = vmax.f32 %v1348, -50000.0
        %v1365 = vmax.f32 %v1349, -50000.0
        %v1366 = vmin.f32 %v1350, 50000.0
        %v1367 = vmin.f32 %v1351, 50000.0
        %v1368 = vmin.f32 %v1352, 50000.0
        %v1369 = vmin.f32 %v1353, 50000.0
        %v1370 = vmin.f32 %v1354, 50000.0
        %v1371 = vmin.f32 %v1355, 50000.0
        %v1372 = vmin.f32 %v1356, 50000.0
        %v1373 = vmin.f32 %v1357, 50000.0
        %v1374 = vmin.f32 %v1358, 50000.0
        %v1375 = vmin.f32 %v1359, 50000.0
        %v1376 = vmin.f32 %v1360, 50000.0
        %v1377 = vmin.f32 %v1361, 50000.0
        %v1378 = vmin.f32 %v1362, 50000.0
        %v1379 = vmin.f32 %v1363, 50000.0
        %v1380 = vmin.f32 %v1364, 50000.0
        %v1381 = vmin.f32 %v1365, 50000.0
        %v1382 = vmul.f32 %v1366, 1.442695
        %v1383 = vpow.pop %v1382
        %v1384 = vmul.f32 %v1367, 1.442695
        %v1385 = vpow.pop %v1384
        %v1386 = vmul.f32 %v1368, 1.442695
        %v1387 = vpow.pop %v1386
        %v1388 = vmul.f32 %v1369, 1.442695
        %v1389 = vpow.pop %v1388
        %v1390 = vmul.f32 %v1370, 1.442695
        %v1391 = vpow.pop %v1390
        %v1392 = vmul.f32 %v1371, 1.442695
        %v1393 = vpow.pop %v1392
        %v1394 = vmul.f32 %v1372, 1.442695
        %v1395 = vpow.pop %v1394
        %v1396 = vmul.f32 %v1373, 1.442695
        %v1397 = vpow.pop %v1396
        %v1398 = vmul.f32 %v1374, 1.442695
        %v1399 = vpow.pop %v1398
        %v1400 = vmul.f32 %v1375, 1.442695
        %v1401 = vpow.pop %v1400
        %v1402 = vmul.f32 %v1376, 1.442695
        %v1403 = vpow.pop %v1402
        %v1404 = vmul.f32 %v1377, 1.442695
        %v1405 = vpow.pop %v1404
        %v1406 = vmul.f32 %v1378, 1.442695
        %v1407 = vpow.pop %v1406
        %v1408 = vmul.f32 %v1379, 1.442695
        %v1409 = vpow.pop %v1408
        %v1410 = vmul.f32 %v1380, 1.442695
        %v1411 = vpow.pop %v1410
        %v1412 = vmul.f32 %v1381, 1.442695
        %v1413 = vpow.pop %v1412
        %1414 = vadd.xlane.f32.xlu0 %v1383
        %v1415 = vpop.xlane.xlu0 %1414
        %1416 = vadd.xlane.f32.xlu0 %v1385
        %v1417 = vpop.xlane.xlu0 %1416
        %1418 = vadd.xlane.f32.xlu0 %v1387
        %v1419 = vpop.xlane.xlu0 %1418
        %1420 = vadd.xlane.f32.xlu0 %v1389
        %v1421 = vpop.xlane.xlu0 %1420
        %1422 = vadd.xlane.f32.xlu0 %v1391
        %v1423 = vpop.xlane.xlu0 %1422
        %1424 = vadd.xlane.f32.xlu0 %v1393
        %v1425 = vpop.xlane.xlu0 %1424
        %1426 = vadd.xlane.f32.xlu0 %v1395
        %v1427 = vpop.xlane.xlu0 %1426
        %1428 = vadd.xlane.f32.xlu0 %v1397
        %v1429 = vpop.xlane.xlu0 %1428
        %1430 = vadd.xlane.f32.xlu0 %v1399
        %v1431 = vpop.xlane.xlu0 %1430
        %1432 = vadd.xlane.f32.xlu0 %v1401
        %v1433 = vpop.xlane.xlu0 %1432
        %1434 = vadd.xlane.f32.xlu0 %v1403
        %v1435 = vpop.xlane.xlu0 %1434
        %1436 = vadd.xlane.f32.xlu0 %v1405
        %v1437 = vpop.xlane.xlu0 %1436
        %1438 = vadd.xlane.f32.xlu0 %v1407
        %v1439 = vpop.xlane.xlu0 %1438
        %1440 = vadd.xlane.f32.xlu0 %v1409
        %v1441 = vpop.xlane.xlu0 %1440
        %1442 = vadd.xlane.f32.xlu0 %v1411
        %v1443 = vpop.xlane.xlu0 %1442
        %1444 = vadd.xlane.f32.xlu0 %v1413
        %v1445 = vpop.xlane.xlu0 %1444
        %v1446 = vrcp.pop %v1415
        %v1447 = vrcp.pop %v1417
        %v1448 = vrcp.pop %v1419
        %v1449 = vrcp.pop %v1421
        %v1450 = vrcp.pop %v1423
        %v1451 = vrcp.pop %v1425
        %v1452 = vrcp.pop %v1427
        %v1453 = vrcp.pop %v1429
        %v1454 = vrcp.pop %v1431
        %v1455 = vrcp.pop %v1433
        %v1456 = vrcp.pop %v1435
        %v1457 = vrcp.pop %v1437
        %v1458 = vrcp.pop %v1439
        %v1459 = vrcp.pop %v1441
        %v1460 = vrcp.pop %v1443
        %v1461 = vrcp.pop %v1445
        %v1462 = vmul.f32 %v1383, %v1446
        %v1463 = vmul.f32 %v1385, %v1447
        %v1464 = vmul.f32 %v1387, %v1448
        %v1465 = vmul.f32 %v1389, %v1449
        %v1466 = vmul.f32 %v1391, %v1450
        %v1467 = vmul.f32 %v1393, %v1451
        %v1468 = vmul.f32 %v1395, %v1452
        %v1469 = vmul.f32 %v1397, %v1453
        %v1470 = vmul.f32 %v1399, %v1454
        %v1471 = vmul.f32 %v1401, %v1455
        %v1472 = vmul.f32 %v1403, %v1456
        %v1473 = vmul.f32 %v1405, %v1457
        %v1474 = vmul.f32 %v1407, %v1458
        %v1475 = vmul.f32 %v1409, %v1459
        %v1476 = vmul.f32 %v1411, %v1460
        %v1477 = vmul.f32 %v1413, %v1461
        %v1478 = vpack.c.bf16 %v1463, %v1462
        %v1479 = vpack.c.bf16 %v1465, %v1464
        %v1480 = vpack.c.bf16 %v1467, %v1466
        %v1481 = vpack.c.bf16 %v1469, %v1468
        %v1482 = vpack.c.bf16 %v1471, %v1470
        %v1483 = vpack.c.bf16 %v1473, %v1472
        %v1484 = vpack.c.bf16 %v1475, %v1474
        %v1485 = vpack.c.bf16 %v1477, %v1476
        %v1502 = vunpack.c.l.b16 %v870
        %v1503 = vunpack.c.l.b16 %v871
        %v1504 = vunpack.c.l.b16 %v872
        %v1505 = vunpack.c.l.b16 %v873
        %v1506 = vunpack.c.l.b16 %v874
        %v1507 = vunpack.c.l.b16 %v875
        %v1508 = vunpack.c.l.b16 %v876
        %v1509 = vunpack.c.l.b16 %v877
        %v1510 = vunpack.c.l.b16 %v878
        %v1511 = vunpack.c.l.b16 %v879
        %v1512 = vunpack.c.l.b16 %v880
        %v1513 = vunpack.c.l.b16 %v881
        %v1514 = vunpack.c.l.b16 %v882
        %v1515 = vunpack.c.l.b16 %v883
        %v1516 = vunpack.c.l.b16 %v884
        %v1517 = vunpack.c.l.b16 %v885
        %v1518 = vpack.c.b16 %v1503, %v1502
        %v1519 = vpack.c.b16 %v1505, %v1504
        %v1520 = vpack.c.b16 %v1507, %v1506
        %v1521 = vpack.c.b16 %v1509, %v1508
        %v1522 = vpack.c.b16 %v1511, %v1510
        %v1523 = vpack.c.b16 %v1513, %v1512
        %v1524 = vpack.c.b16 %v1515, %v1514
        %v1525 = vpack.c.b16 %v1517, %v1516
        %1534 = vmatpush.bf16.msra.mxu0 %v1525
        %1535 = vmatpush.bf16.msra.mxu0 %v1524
        %1536 = vmatpush.bf16.msra.mxu0 %v1523
        %1537 = vmatpush.bf16.msra.mxu0 %v1522
        %1538 = vmatpush.bf16.msra.mxu0 %v1521
        %1539 = vmatpush.bf16.msra.mxu0 %v1520
        %1540 = vmatpush.bf16.msra.mxu0 %v1519
        %1541 = vmatpush.bf16.msra.mxu0 %v1518
        %1542 = vmatmul.bf16.gmra.mxu0 %v1262
        %v1543 = vpop.f32.mrf.mxu0
        %v1544 = vadd.f32 0.0, %v1543
        %v1545 = vpop.f32.mrf.mxu0
        %v1546 = vadd.f32 0.0, %v1545
        %1547 = vmatmul.bf16.gmra.mxu0 %v1263
        %v1548 = vpop.f32.mrf.mxu0
        %v1549 = vadd.f32 0.0, %v1548
        %v1550 = vpop.f32.mrf.mxu0
        %v1551 = vadd.f32 0.0, %v1550
        %1552 = vmatmul.bf16.gmra.mxu0 %v1264
        %v1553 = vpop.f32.mrf.mxu0
        %v1554 = vadd.f32 0.0, %v1553
        %v1555 = vpop.f32.mrf.mxu0
        %v1556 = vadd.f32 0.0, %v1555
        %1557 = vmatmul.bf16.gmra.mxu0 %v1265
        %v1558 = vpop.f32.mrf.mxu0
        %v1559 = vadd.f32 0.0, %v1558
        %v1560 = vpop.f32.mrf.mxu0
        %v1561 = vadd.f32 0.0, %v1560
        %1562 = vmatmul.bf16.gmra.mxu0 %v1266
        %v1563 = vpop.f32.mrf.mxu0
        %v1564 = vadd.f32 0.0, %v1563
        %v1565 = vpop.f32.mrf.mxu0
        %v1566 = vadd.f32 0.0, %v1565
        %1567 = vmatmul.bf16.gmra.mxu0 %v1267
        %v1568 = vpop.f32.mrf.mxu0
        %v1569 = vadd.f32 0.0, %v1568
        %v1570 = vpop.f32.mrf.mxu0
        %v1571 = vadd.f32 0.0, %v1570
        %1572 = vmatmul.bf16.gmra.mxu0 %v1268
        %v1573 = vpop.f32.mrf.mxu0
        %v1574 = vadd.f32 0.0, %v1573
        %v1575 = vpop.f32.mrf.mxu0
        %v1576 = vadd.f32 0.0, %v1575
        %1577 = vmatmul.bf16.gmra.mxu0 %v1269
        %v1578 = vpop.f32.mrf.mxu0
        %v1579 = vadd.f32 0.0, %v1578
        %v1580 = vpop.f32.mrf.mxu0
        %v1581 = vadd.f32 0.0, %v1580
        %1582 = vdwg.mxu0
        %v1599 = vunpack.c.l.b16 %v737
        %v1600 = vunpack.c.l.b16 %v738
        %v1601 = vunpack.c.l.b16 %v739
        %v1602 = vunpack.c.l.b16 %v740
        %v1603 = vunpack.c.l.b16 %v741
        %v1604 = vunpack.c.l.b16 %v742
        %v1605 = vunpack.c.l.b16 %v743
        %v1606 = vunpack.c.l.b16 %v744
        %v1607 = vunpack.c.l.b16 %v745
        %v1608 = vunpack.c.l.b16 %v746
        %v1609 = vunpack.c.l.b16 %v747
        %v1610 = vunpack.c.l.b16 %v748
        %v1611 = vunpack.c.l.b16 %v749
        %v1612 = vunpack.c.l.b16 %v750
        %v1613 = vunpack.c.l.b16 %v751
        %v1614 = vunpack.c.l.b16 %v752
        %v1615 = vpack.c.b16 %v1600, %v1599
        %v1616 = vpack.c.b16 %v1602, %v1601
        %v1617 = vpack.c.b16 %v1604, %v1603
        %v1618 = vpack.c.b16 %v1606, %v1605
        %v1619 = vpack.c.b16 %v1608, %v1607
        %v1620 = vpack.c.b16 %v1610, %v1609
        %v1621 = vpack.c.b16 %v1612, %v1611
        %v1622 = vpack.c.b16 %v1614, %v1613
        %1631 = vmatpush.bf16.msra.mxu0 %v1622
        %1632 = vmatpush.bf16.msra.mxu0 %v1621
        %1633 = vmatpush.bf16.msra.mxu0 %v1620
        %1634 = vmatpush.bf16.msra.mxu0 %v1619
        %1635 = vmatpush.bf16.msra.mxu0 %v1618
        %1636 = vmatpush.bf16.msra.mxu0 %v1617
        %1637 = vmatpush.bf16.msra.mxu0 %v1616
        %1638 = vmatpush.bf16.msra.mxu0 %v1615
        %1639 = vmatmul.bf16.gmra.mxu0 %v1478
        %v1640 = vpop.f32.mrf.mxu0
        %v1641 = vadd.f32 0.0, %v1640
        %v1642 = vpop.f32.mrf.mxu0
        %v1643 = vadd.f32 0.0, %v1642
        %1644 = vmatmul.bf16.gmra.mxu0 %v1479
        %v1645 = vpop.f32.mrf.mxu0
        %v1646 = vadd.f32 0.0, %v1645
        %v1647 = vpop.f32.mrf.mxu0
        %v1648 = vadd.f32 0.0, %v1647
        %1649 = vmatmul.bf16.gmra.mxu0 %v1480
        %v1650 = vpop.f32.mrf.mxu0
        %v1651 = vadd.f32 0.0, %v1650
        %v1652 = vpop.f32.mrf.mxu0
        %v1653 = vadd.f32 0.0, %v1652
        %1654 = vmatmul.bf16.gmra.mxu0 %v1481
        %v1655 = vpop.f32.mrf.mxu0
        %v1656 = vadd.f32 0.0, %v1655
        %v1657 = vpop.f32.mrf.mxu0
        %v1658 = vadd.f32 0.0, %v1657
        %1659 = vmatmul.bf16.gmra.mxu0 %v1482
        %v1660 = vpop.f32.mrf.mxu0
        %v1661 = vadd.f32 0.0, %v1660
        %v1662 = vpop.f32.mrf.mxu0
        %v1663 = vadd.f32 0.0, %v1662
        %1664 = vmatmul.bf16.gmra.mxu0 %v1483
        %v1665 = vpop.f32.mrf.mxu0
        %v1666 = vadd.f32 0.0, %v1665
        %v1667 = vpop.f32.mrf.mxu0
        %v1668 = vadd.f32 0.0, %v1667
        %1669 = vmatmul.bf16.gmra.mxu0 %v1484
        %v1670 = vpop.f32.mrf.mxu0
        %v1671 = vadd.f32 0.0, %v1670
        %v1672 = vpop.f32.mrf.mxu0
        %v1673 = vadd.f32 0.0, %v1672
        %1674 = vmatmul.bf16.gmra.mxu0 %v1485
        %v1675 = vpop.f32.mrf.mxu0
        %v1676 = vadd.f32 0.0, %v1675
        %v1677 = vpop.f32.mrf.mxu0
        %v1678 = vadd.f32 0.0, %v1677
        %1679 = vdwg.mxu0
        %1680 = vrot.lane.b32.xlu0 %v918, 96
        %v1681 = vpop.permute.xlu0 %1680
        %1682 = vrot.lane.b32.xlu0 %v919, 96
        %v1683 = vpop.permute.xlu0 %1682
        %1684 = vrot.lane.b32.xlu0 %v920, 96
        %v1685 = vpop.permute.xlu0 %1684
        %1686 = vrot.lane.b32.xlu0 %v921, 96
        %v1687 = vpop.permute.xlu0 %1686
        %1688 = vrot.lane.b32.xlu0 %v922, 96
        %v1689 = vpop.permute.xlu0 %1688
        %1690 = vrot.lane.b32.xlu0 %v923, 96
        %v1691 = vpop.permute.xlu0 %1690
        %1692 = vrot.lane.b32.xlu0 %v924, 96
        %v1693 = vpop.permute.xlu0 %1692
        %1694 = vrot.lane.b32.xlu0 %v925, 96
        %v1695 = vpop.permute.xlu0 %1694
        %1696 = vrot.lane.b32.xlu0 %v958, 96
        %v1697 = vpop.permute.xlu0 %1696
        %1698 = vrot.lane.b32.xlu0 %v959, 96
        %v1699 = vpop.permute.xlu0 %1698
        %1700 = vrot.lane.b32.xlu0 %v960, 96
        %v1701 = vpop.permute.xlu0 %1700
        %1702 = vrot.lane.b32.xlu0 %v961, 96
        %v1703 = vpop.permute.xlu0 %1702
        %1704 = vrot.lane.b32.xlu0 %v962, 96
        %v1705 = vpop.permute.xlu0 %1704
        %1706 = vrot.lane.b32.xlu0 %v963, 96
        %v1707 = vpop.permute.xlu0 %1706
        %1708 = vrot.lane.b32.xlu0 %v964, 96
        %v1709 = vpop.permute.xlu0 %1708
        %1710 = vrot.lane.b32.xlu0 %v965, 96
        %v1711 = vpop.permute.xlu0 %1710
        %v1713 = vsel %vm966, %v1681, 0
        %v1716 = vsel %vm966, %v1683, 0
        %v1719 = vsel %vm966, %v1685, 0
        %v1722 = vsel %vm966, %v1687, 0
        %v1725 = vsel %vm966, %v1689, 0
        %v1728 = vsel %vm966, %v1691, 0
        %v1731 = vsel %vm966, %v1693, 0
        %v1734 = vsel %vm966, %v1695, 0
        %v1737 = vsel %vm966, %v1697, 0
        %v1740 = vsel %vm966, %v1699, 0
        %v1743 = vsel %vm966, %v1701, 0
        %v1746 = vsel %vm966, %v1703, 0
        %v1749 = vsel %vm966, %v1705, 0
        %v1752 = vsel %vm966, %v1707, 0
        %v1755 = vsel %vm966, %v1709, 0
        %v1758 = vsel %vm966, %v1711, 0
        %1760 = vmatpush.bf16.xpose.msra.mxu0 %v1758
        %1761 = vmatpush.bf16.xpose.msra.mxu0 %v1755
        %1762 = vmatpush.bf16.xpose.msra.mxu0 %v1752
        %1763 = vmatpush.bf16.xpose.msra.mxu0 %v1749
        %1764 = vmatpush.bf16.xpose.msra.mxu0 %v1746
        %1765 = vmatpush.bf16.xpose.msra.mxu0 %v1743
        %1766 = vmatpush.bf16.xpose.msra.mxu0 %v1740
        %1767 = vmatpush.bf16.xpose.msra.mxu0 %v1737
        %1768 = vmatmul.bf16.gmra.mxu0 %v1713
        %v1769 = vpop.f32.mrf.mxu0
        %v1770 = vadd.f32 0.0, %v1769
        %v1771 = vpop.f32.mrf.mxu0
        %v1772 = vadd.f32 0.0, %v1771
        %1773 = vmatmul.bf16.gmra.mxu0 %v1716
        %v1774 = vpop.f32.mrf.mxu0
        %v1775 = vadd.f32 0.0, %v1774
        %v1776 = vpop.f32.mrf.mxu0
        %v1777 = vadd.f32 0.0, %v1776
        %1778 = vmatmul.bf16.gmra.mxu0 %v1719
        %v1779 = vpop.f32.mrf.mxu0
        %v1780 = vadd.f32 0.0, %v1779
        %v1781 = vpop.f32.mrf.mxu0
        %v1782 = vadd.f32 0.0, %v1781
        %1783 = vmatmul.bf16.gmra.mxu0 %v1722
        %v1784 = vpop.f32.mrf.mxu0
        %v1785 = vadd.f32 0.0, %v1784
        %v1786 = vpop.f32.mrf.mxu0
        %v1787 = vadd.f32 0.0, %v1786
        %1788 = vmatmul.bf16.gmra.mxu0 %v1725
        %v1789 = vpop.f32.mrf.mxu0
        %v1790 = vadd.f32 0.0, %v1789
        %v1791 = vpop.f32.mrf.mxu0
        %v1792 = vadd.f32 0.0, %v1791
        %1793 = vmatmul.bf16.gmra.mxu0 %v1728
        %v1794 = vpop.f32.mrf.mxu0
        %v1795 = vadd.f32 0.0, %v1794
        %v1796 = vpop.f32.mrf.mxu0
        %v1797 = vadd.f32 0.0, %v1796
        %1798 = vmatmul.bf16.gmra.mxu0 %v1731
        %v1799 = vpop.f32.mrf.mxu0
        %v1800 = vadd.f32 0.0, %v1799
        %v1801 = vpop.f32.mrf.mxu0
        %v1802 = vadd.f32 0.0, %v1801
        %1803 = vmatmul.bf16.gmra.mxu0 %v1734
        %v1804 = vpop.f32.mrf.mxu0
        %v1805 = vadd.f32 0.0, %v1804
        %v1806 = vpop.f32.mrf.mxu0
        %v1807 = vadd.f32 0.0, %v1806
        %1808 = vdwg.mxu0
        %v1809 = vsub.f32 %v1770, %v1068
        %v1810 = vsub.f32 %v1772, %v1068
        %v1811 = vsub.f32 %v1775, %v1068
        %v1812 = vsub.f32 %v1777, %v1068
        %v1813 = vsub.f32 %v1780, %v1068
        %v1814 = vsub.f32 %v1782, %v1068
        %v1815 = vsub.f32 %v1785, %v1068
        %v1816 = vsub.f32 %v1787, %v1068
        %v1817 = vsub.f32 %v1790, %v1068
        %v1818 = vsub.f32 %v1792, %v1068
        %v1819 = vsub.f32 %v1795, %v1068
        %v1820 = vsub.f32 %v1797, %v1068
        %v1821 = vsub.f32 %v1800, %v1068
        %v1822 = vsub.f32 %v1802, %v1068
        %v1823 = vsub.f32 %v1805, %v1068
        %v1824 = vsub.f32 %v1807, %v1068
        %v1825 = vmax.f32 %v1809, -50000.0
        %v1826 = vmax.f32 %v1810, -50000.0
        %v1827 = vmax.f32 %v1811, -50000.0
        %v1828 = vmax.f32 %v1812, -50000.0
        %v1829 = vmax.f32 %v1813, -50000.0
        %v1830 = vmax.f32 %v1814, -50000.0
        %v1831 = vmax.f32 %v1815, -50000.0
        %v1832 = vmax.f32 %v1816, -50000.0
        %v1833 = vmax.f32 %v1817, -50000.0
        %v1834 = vmax.f32 %v1818, -50000.0
        %v1835 = vmax.f32 %v1819, -50000.0
        %v1836 = vmax.f32 %v1820, -50000.0
        %v1837 = vmax.f32 %v1821, -50000.0
        %v1838 = vmax.f32 %v1822, -50000.0
        %v1839 = vmax.f32 %v1823, -50000.0
        %v1840 = vmax.f32 %v1824, -50000.0
        %v1841 = vmin.f32 %v1825, 50000.0
        %v1842 = vmin.f32 %v1826, 50000.0
        %v1843 = vmin.f32 %v1827, 50000.0
        %v1844 = vmin.f32 %v1828, 50000.0
        %v1845 = vmin.f32 %v1829, 50000.0
        %v1846 = vmin.f32 %v1830, 50000.0
        %v1847 = vmin.f32 %v1831, 50000.0
        %v1848 = vmin.f32 %v1832, 50000.0
        %v1849 = vmin.f32 %v1833, 50000.0
        %v1850 = vmin.f32 %v1834, 50000.0
        %v1851 = vmin.f32 %v1835, 50000.0
        %v1852 = vmin.f32 %v1836, 50000.0
        %v1853 = vmin.f32 %v1837, 50000.0
        %v1854 = vmin.f32 %v1838, 50000.0
        %v1855 = vmin.f32 %v1839, 50000.0
        %v1856 = vmin.f32 %v1840, 50000.0
        %1857 = vmax.xlane.f32.xlu0 %v1841
        %v1858 = vpop.xlane.xlu0 %1857
        %1859 = vmax.xlane.f32.xlu0 %v1842
        %v1860 = vpop.xlane.xlu0 %1859
        %1861 = vmax.xlane.f32.xlu0 %v1843
        %v1862 = vpop.xlane.xlu0 %1861
        %1863 = vmax.xlane.f32.xlu0 %v1844
        %v1864 = vpop.xlane.xlu0 %1863
        %1865 = vmax.xlane.f32.xlu0 %v1845
        %v1866 = vpop.xlane.xlu0 %1865
        %1867 = vmax.xlane.f32.xlu0 %v1846
        %v1868 = vpop.xlane.xlu0 %1867
        %1869 = vmax.xlane.f32.xlu0 %v1847
        %v1870 = vpop.xlane.xlu0 %1869
        %1871 = vmax.xlane.f32.xlu0 %v1848
        %v1872 = vpop.xlane.xlu0 %1871
        %1873 = vmax.xlane.f32.xlu0 %v1849
        %v1874 = vpop.xlane.xlu0 %1873
        %1875 = vmax.xlane.f32.xlu0 %v1850
        %v1876 = vpop.xlane.xlu0 %1875
        %1877 = vmax.xlane.f32.xlu0 %v1851
        %v1878 = vpop.xlane.xlu0 %1877
        %1879 = vmax.xlane.f32.xlu0 %v1852
        %v1880 = vpop.xlane.xlu0 %1879
        %1881 = vmax.xlane.f32.xlu0 %v1853
        %v1882 = vpop.xlane.xlu0 %1881
        %1883 = vmax.xlane.f32.xlu0 %v1854
        %v1884 = vpop.xlane.xlu0 %1883
        %1885 = vmax.xlane.f32.xlu0 %v1855
        %v1886 = vpop.xlane.xlu0 %1885
        %1887 = vmax.xlane.f32.xlu0 %v1856
        %v1888 = vpop.xlane.xlu0 %1887
        %v1889 = vsub.f32 %v1841, %v1858
        %v1890 = vsub.f32 %v1842, %v1860
        %v1891 = vsub.f32 %v1843, %v1862
        %v1892 = vsub.f32 %v1844, %v1864
        %v1893 = vsub.f32 %v1845, %v1866
        %v1894 = vsub.f32 %v1846, %v1868
        %v1895 = vsub.f32 %v1847, %v1870
        %v1896 = vsub.f32 %v1848, %v1872
        %v1897 = vsub.f32 %v1849, %v1874
        %v1898 = vsub.f32 %v1850, %v1876
        %v1899 = vsub.f32 %v1851, %v1878
        %v1900 = vsub.f32 %v1852, %v1880
        %v1901 = vsub.f32 %v1853, %v1882
        %v1902 = vsub.f32 %v1854, %v1884
        %v1903 = vsub.f32 %v1855, %v1886
        %v1904 = vsub.f32 %v1856, %v1888
        %v1905 = vmul.f32 %v1889, 1.442695
        %v1906 = vpow.pop %v1905
        %v1907 = vmul.f32 %v1890, 1.442695
        %v1908 = vpow.pop %v1907
        %v1909 = vmul.f32 %v1891, 1.442695
        %v1910 = vpow.pop %v1909
        %v1911 = vmul.f32 %v1892, 1.442695
        %v1912 = vpow.pop %v1911
        %v1913 = vmul.f32 %v1893, 1.442695
        %v1914 = vpow.pop %v1913
        %v1915 = vmul.f32 %v1894, 1.442695
        %v1916 = vpow.pop %v1915
        %v1917 = vmul.f32 %v1895, 1.442695
        %v1918 = vpow.pop %v1917
        %v1919 = vmul.f32 %v1896, 1.442695
        %v1920 = vpow.pop %v1919
        %v1921 = vmul.f32 %v1897, 1.442695
        %v1922 = vpow.pop %v1921
        %v1923 = vmul.f32 %v1898, 1.442695
        %v1924 = vpow.pop %v1923
        %v1925 = vmul.f32 %v1899, 1.442695
        %v1926 = vpow.pop %v1925
        %v1927 = vmul.f32 %v1900, 1.442695
        %v1928 = vpow.pop %v1927
        %v1929 = vmul.f32 %v1901, 1.442695
        %v1930 = vpow.pop %v1929
        %v1931 = vmul.f32 %v1902, 1.442695
        %v1932 = vpow.pop %v1931
        %v1933 = vmul.f32 %v1903, 1.442695
        %v1934 = vpow.pop %v1933
        %v1935 = vmul.f32 %v1904, 1.442695
        %v1936 = vpow.pop %v1935
        %1937 = vadd.xlane.f32.xlu0 %v1906
        %v1938 = vpop.xlane.xlu0 %1937
        %1939 = vadd.xlane.f32.xlu0 %v1908
        %v1940 = vpop.xlane.xlu0 %1939
        %1941 = vadd.xlane.f32.xlu0 %v1910
        %v1942 = vpop.xlane.xlu0 %1941
        %1943 = vadd.xlane.f32.xlu0 %v1912
        %v1944 = vpop.xlane.xlu0 %1943
        %1945 = vadd.xlane.f32.xlu0 %v1914
        %v1946 = vpop.xlane.xlu0 %1945
        %1947 = vadd.xlane.f32.xlu0 %v1916
        %v1948 = vpop.xlane.xlu0 %1947
        %1949 = vadd.xlane.f32.xlu0 %v1918
        %v1950 = vpop.xlane.xlu0 %1949
        %1951 = vadd.xlane.f32.xlu0 %v1920
        %v1952 = vpop.xlane.xlu0 %1951
        %1953 = vadd.xlane.f32.xlu0 %v1922
        %v1954 = vpop.xlane.xlu0 %1953
        %1955 = vadd.xlane.f32.xlu0 %v1924
        %v1956 = vpop.xlane.xlu0 %1955
        %1957 = vadd.xlane.f32.xlu0 %v1926
        %v1958 = vpop.xlane.xlu0 %1957
        %1959 = vadd.xlane.f32.xlu0 %v1928
        %v1960 = vpop.xlane.xlu0 %1959
        %1961 = vadd.xlane.f32.xlu0 %v1930
        %v1962 = vpop.xlane.xlu0 %1961
        %1963 = vadd.xlane.f32.xlu0 %v1932
        %v1964 = vpop.xlane.xlu0 %1963
        %1965 = vadd.xlane.f32.xlu0 %v1934
        %v1966 = vpop.xlane.xlu0 %1965
        %1967 = vadd.xlane.f32.xlu0 %v1936
        %v1968 = vpop.xlane.xlu0 %1967
        %v1969 = vrcp.pop %v1938
        %v1970 = vrcp.pop %v1940
        %v1971 = vrcp.pop %v1942
        %v1972 = vrcp.pop %v1944
        %v1973 = vrcp.pop %v1946
        %v1974 = vrcp.pop %v1948
        %v1975 = vrcp.pop %v1950
        %v1976 = vrcp.pop %v1952
        %v1977 = vrcp.pop %v1954
        %v1978 = vrcp.pop %v1956
        %v1979 = vrcp.pop %v1958
        %v1980 = vrcp.pop %v1960
        %v1981 = vrcp.pop %v1962
        %v1982 = vrcp.pop %v1964
        %v1983 = vrcp.pop %v1966
        %v1984 = vrcp.pop %v1968
        %v1985 = vmul.f32 %v1906, %v1969
        %v1986 = vmul.f32 %v1908, %v1970
        %v1987 = vmul.f32 %v1910, %v1971
        %v1988 = vmul.f32 %v1912, %v1972
        %v1989 = vmul.f32 %v1914, %v1973
        %v1990 = vmul.f32 %v1916, %v1974
        %v1991 = vmul.f32 %v1918, %v1975
        %v1992 = vmul.f32 %v1920, %v1976
        %v1993 = vmul.f32 %v1922, %v1977
        %v1994 = vmul.f32 %v1924, %v1978
        %v1995 = vmul.f32 %v1926, %v1979
        %v1996 = vmul.f32 %v1928, %v1980
        %v1997 = vmul.f32 %v1930, %v1981
        %v1998 = vmul.f32 %v1932, %v1982
        %v1999 = vmul.f32 %v1934, %v1983
        %v2000 = vmul.f32 %v1936, %v1984
        %v2001 = vpack.c.bf16 %v1986, %v1985
        %v2002 = vpack.c.bf16 %v1988, %v1987
        %v2003 = vpack.c.bf16 %v1990, %v1989
        %v2004 = vpack.c.bf16 %v1992, %v1991
        %v2005 = vpack.c.bf16 %v1994, %v1993
        %v2006 = vpack.c.bf16 %v1996, %v1995
        %v2007 = vpack.c.bf16 %v1998, %v1997
        %v2008 = vpack.c.bf16 %v2000, %v1999
        %2009 = vxpose.xlu0.b32.start [1/16] %v1841, 128
        %2010 = vxpose.xlu0.b32.cont [2/16] %v1842, 128
        %2011 = vxpose.xlu0.b32.cont [3/16] %v1843, 128
        %2012 = vxpose.xlu0.b32.cont [4/16] %v1844, 128
        %2013 = vxpose.xlu0.b32.cont [5/16] %v1845, 128
        %2014 = vxpose.xlu0.b32.cont [6/16] %v1846, 128
        %2015 = vxpose.xlu0.b32.cont [7/16] %v1847, 128
        %2016 = vxpose.xlu0.b32.cont [8/16] %v1848, 128
        %2017 = vxpose.xlu0.b32.cont [9/16] %v1849, 128
        %2018 = vxpose.xlu0.b32.cont [10/16] %v1850, 128
        %2019 = vxpose.xlu0.b32.cont [11/16] %v1851, 128
        %2020 = vxpose.xlu0.b32.cont [12/16] %v1852, 128
        %2021 = vxpose.xlu0.b32.cont [13/16] %v1853, 128
        %2022 = vxpose.xlu0.b32.cont [14/16] %v1854, 128
        %2023 = vxpose.xlu0.b32.cont [15/16] %v1855, 128
        %2024 = vxpose.xlu0.b32.end [16/16] %v1856, 128
        %v2025 = vpop.trf.xlu0
        %v2026 = vpop.trf.xlu0
        %v2027 = vpop.trf.xlu0
        %v2028 = vpop.trf.xlu0
        %v2029 = vpop.trf.xlu0
        %v2030 = vpop.trf.xlu0
        %v2031 = vpop.trf.xlu0
        %v2032 = vpop.trf.xlu0
        %v2033 = vpop.trf.xlu0
        %v2034 = vpop.trf.xlu0
        %v2035 = vpop.trf.xlu0
        %v2036 = vpop.trf.xlu0
        %v2037 = vpop.trf.xlu0
        %v2038 = vpop.trf.xlu0
        %v2039 = vpop.trf.xlu0
        %v2040 = vpop.trf.xlu0
        %2041 = vmax.xlane.f32.xlu0 %v2025
        %v2042 = vpop.xlane.xlu0 %2041
        %2043 = vmax.xlane.f32.xlu0 %v2026
        %v2044 = vpop.xlane.xlu0 %2043
        %2045 = vmax.xlane.f32.xlu0 %v2027
        %v2046 = vpop.xlane.xlu0 %2045
        %2047 = vmax.xlane.f32.xlu0 %v2028
        %v2048 = vpop.xlane.xlu0 %2047
        %2049 = vmax.xlane.f32.xlu0 %v2029
        %v2050 = vpop.xlane.xlu0 %2049
        %2051 = vmax.xlane.f32.xlu0 %v2030
        %v2052 = vpop.xlane.xlu0 %2051
        %2053 = vmax.xlane.f32.xlu0 %v2031
        %v2054 = vpop.xlane.xlu0 %2053
        %2055 = vmax.xlane.f32.xlu0 %v2032
        %v2056 = vpop.xlane.xlu0 %2055
        %2057 = vmax.xlane.f32.xlu0 %v2033
        %v2058 = vpop.xlane.xlu0 %2057
        %2059 = vmax.xlane.f32.xlu0 %v2034
        %v2060 = vpop.xlane.xlu0 %2059
        %2061 = vmax.xlane.f32.xlu0 %v2035
        %v2062 = vpop.xlane.xlu0 %2061
        %2063 = vmax.xlane.f32.xlu0 %v2036
        %v2064 = vpop.xlane.xlu0 %2063
        %2065 = vmax.xlane.f32.xlu0 %v2037
        %v2066 = vpop.xlane.xlu0 %2065
        %2067 = vmax.xlane.f32.xlu0 %v2038
        %v2068 = vpop.xlane.xlu0 %2067
        %2069 = vmax.xlane.f32.xlu0 %v2039
        %v2070 = vpop.xlane.xlu0 %2069
        %2071 = vmax.xlane.f32.xlu0 %v2040
        %v2072 = vpop.xlane.xlu0 %2071
        %v2073 = vsub.f32 %v2025, %v2042
        %v2074 = vsub.f32 %v2026, %v2044
        %v2075 = vsub.f32 %v2027, %v2046
        %v2076 = vsub.f32 %v2028, %v2048
        %v2077 = vsub.f32 %v2029, %v2050
        %v2078 = vsub.f32 %v2030, %v2052
        %v2079 = vsub.f32 %v2031, %v2054
        %v2080 = vsub.f32 %v2032, %v2056
        %v2081 = vsub.f32 %v2033, %v2058
        %v2082 = vsub.f32 %v2034, %v2060
        %v2083 = vsub.f32 %v2035, %v2062
        %v2084 = vsub.f32 %v2036, %v2064
        %v2085 = vsub.f32 %v2037, %v2066
        %v2086 = vsub.f32 %v2038, %v2068
        %v2087 = vsub.f32 %v2039, %v2070
        %v2088 = vsub.f32 %v2040, %v2072
        %v2089 = vmax.f32 %v2073, -50000.0
        %v2090 = vmax.f32 %v2074, -50000.0
        %v2091 = vmax.f32 %v2075, -50000.0
        %v2092 = vmax.f32 %v2076, -50000.0
        %v2093 = vmax.f32 %v2077, -50000.0
        %v2094 = vmax.f32 %v2078, -50000.0
        %v2095 = vmax.f32 %v2079, -50000.0
        %v2096 = vmax.f32 %v2080, -50000.0
        %v2097 = vmax.f32 %v2081, -50000.0
        %v2098 = vmax.f32 %v2082, -50000.0
        %v2099 = vmax.f32 %v2083, -50000.0
        %v2100 = vmax.f32 %v2084, -50000.0
        %v2101 = vmax.f32 %v2085, -50000.0
        %v2102 = vmax.f32 %v2086, -50000.0
        %v2103 = vmax.f32 %v2087, -50000.0
        %v2104 = vmax.f32 %v2088, -50000.0
        %v2105 = vmin.f32 %v2089, 50000.0
        %v2106 = vmin.f32 %v2090, 50000.0
        %v2107 = vmin.f32 %v2091, 50000.0
        %v2108 = vmin.f32 %v2092, 50000.0
        %v2109 = vmin.f32 %v2093, 50000.0
        %v2110 = vmin.f32 %v2094, 50000.0
        %v2111 = vmin.f32 %v2095, 50000.0
        %v2112 = vmin.f32 %v2096, 50000.0
        %v2113 = vmin.f32 %v2097, 50000.0
        %v2114 = vmin.f32 %v2098, 50000.0
        %v2115 = vmin.f32 %v2099, 50000.0
        %v2116 = vmin.f32 %v2100, 50000.0
        %v2117 = vmin.f32 %v2101, 50000.0
        %v2118 = vmin.f32 %v2102, 50000.0
        %v2119 = vmin.f32 %v2103, 50000.0
        %v2120 = vmin.f32 %v2104, 50000.0
        %v2121 = vmul.f32 %v2105, 1.442695
        %v2122 = vpow.pop %v2121
        %v2123 = vmul.f32 %v2106, 1.442695
        %v2124 = vpow.pop %v2123
        %v2125 = vmul.f32 %v2107, 1.442695
        %v2126 = vpow.pop %v2125
        %v2127 = vmul.f32 %v2108, 1.442695
        %v2128 = vpow.pop %v2127
        %v2129 = vmul.f32 %v2109, 1.442695
        %v2130 = vpow.pop %v2129
        %v2131 = vmul.f32 %v2110, 1.442695
        %v2132 = vpow.pop %v2131
        %v2133 = vmul.f32 %v2111, 1.442695
        %v2134 = vpow.pop %v2133
        %v2135 = vmul.f32 %v2112, 1.442695
        %v2136 = vpow.pop %v2135
        %v2137 = vmul.f32 %v2113, 1.442695
        %v2138 = vpow.pop %v2137
        %v2139 = vmul.f32 %v2114, 1.442695
        %v2140 = vpow.pop %v2139
        %v2141 = vmul.f32 %v2115, 1.442695
        %v2142 = vpow.pop %v2141
        %v2143 = vmul.f32 %v2116, 1.442695
        %v2144 = vpow.pop %v2143
        %v2145 = vmul.f32 %v2117, 1.442695
        %v2146 = vpow.pop %v2145
        %v2147 = vmul.f32 %v2118, 1.442695
        %v2148 = vpow.pop %v2147
        %v2149 = vmul.f32 %v2119, 1.442695
        %v2150 = vpow.pop %v2149
        %v2151 = vmul.f32 %v2120, 1.442695
        %v2152 = vpow.pop %v2151
        %2153 = vadd.xlane.f32.xlu0 %v2122
        %v2154 = vpop.xlane.xlu0 %2153
        %2155 = vadd.xlane.f32.xlu0 %v2124
        %v2156 = vpop.xlane.xlu0 %2155
        %2157 = vadd.xlane.f32.xlu0 %v2126
        %v2158 = vpop.xlane.xlu0 %2157
        %2159 = vadd.xlane.f32.xlu0 %v2128
        %v2160 = vpop.xlane.xlu0 %2159
        %2161 = vadd.xlane.f32.xlu0 %v2130
        %v2162 = vpop.xlane.xlu0 %2161
        %2163 = vadd.xlane.f32.xlu0 %v2132
        %v2164 = vpop.xlane.xlu0 %2163
        %2165 = vadd.xlane.f32.xlu0 %v2134
        %v2166 = vpop.xlane.xlu0 %2165
        %2167 = vadd.xlane.f32.xlu0 %v2136
        %v2168 = vpop.xlane.xlu0 %2167
        %2169 = vadd.xlane.f32.xlu0 %v2138
        %v2170 = vpop.xlane.xlu0 %2169
        %2171 = vadd.xlane.f32.xlu0 %v2140
        %v2172 = vpop.xlane.xlu0 %2171
        %2173 = vadd.xlane.f32.xlu0 %v2142
        %v2174 = vpop.xlane.xlu0 %2173
        %2175 = vadd.xlane.f32.xlu0 %v2144
        %v2176 = vpop.xlane.xlu0 %2175
        %2177 = vadd.xlane.f32.xlu0 %v2146
        %v2178 = vpop.xlane.xlu0 %2177
        %2179 = vadd.xlane.f32.xlu0 %v2148
        %v2180 = vpop.xlane.xlu0 %2179
        %2181 = vadd.xlane.f32.xlu0 %v2150
        %v2182 = vpop.xlane.xlu0 %2181
        %2183 = vadd.xlane.f32.xlu0 %v2152
        %v2184 = vpop.xlane.xlu0 %2183
        %v2185 = vrcp.pop %v2154
        %v2186 = vrcp.pop %v2156
        %v2187 = vrcp.pop %v2158
        %v2188 = vrcp.pop %v2160
        %v2189 = vrcp.pop %v2162
        %v2190 = vrcp.pop %v2164
        %v2191 = vrcp.pop %v2166
        %v2192 = vrcp.pop %v2168
        %v2193 = vrcp.pop %v2170
        %v2194 = vrcp.pop %v2172
        %v2195 = vrcp.pop %v2174
        %v2196 = vrcp.pop %v2176
        %v2197 = vrcp.pop %v2178
        %v2198 = vrcp.pop %v2180
        %v2199 = vrcp.pop %v2182
        %v2200 = vrcp.pop %v2184
        %v2201 = vmul.f32 %v2122, %v2185
        %v2202 = vmul.f32 %v2124, %v2186
        %v2203 = vmul.f32 %v2126, %v2187
        %v2204 = vmul.f32 %v2128, %v2188
        %v2205 = vmul.f32 %v2130, %v2189
        %v2206 = vmul.f32 %v2132, %v2190
        %v2207 = vmul.f32 %v2134, %v2191
        %v2208 = vmul.f32 %v2136, %v2192
        %v2209 = vmul.f32 %v2138, %v2193
        %v2210 = vmul.f32 %v2140, %v2194
        %v2211 = vmul.f32 %v2142, %v2195
        %v2212 = vmul.f32 %v2144, %v2196
        %v2213 = vmul.f32 %v2146, %v2197
        %v2214 = vmul.f32 %v2148, %v2198
        %v2215 = vmul.f32 %v2150, %v2199
        %v2216 = vmul.f32 %v2152, %v2200
        %v2217 = vpack.c.bf16 %v2202, %v2201
        %v2218 = vpack.c.bf16 %v2204, %v2203
        %v2219 = vpack.c.bf16 %v2206, %v2205
        %v2220 = vpack.c.bf16 %v2208, %v2207
        %v2221 = vpack.c.bf16 %v2210, %v2209
        %v2222 = vpack.c.bf16 %v2212, %v2211
        %v2223 = vpack.c.bf16 %v2214, %v2213
        %v2224 = vpack.c.bf16 %v2216, %v2215
        %2225 = vrot.lane.b32.xlu0 %v1518, 96
        %v2226 = vpop.permute.xlu0 %2225
        %2227 = vrot.lane.b32.xlu0 %v1519, 96
        %v2228 = vpop.permute.xlu0 %2227
        %2229 = vrot.lane.b32.xlu0 %v1520, 96
        %v2230 = vpop.permute.xlu0 %2229
        %2231 = vrot.lane.b32.xlu0 %v1521, 96
        %v2232 = vpop.permute.xlu0 %2231
        %2233 = vrot.lane.b32.xlu0 %v1522, 96
        %v2234 = vpop.permute.xlu0 %2233
        %2235 = vrot.lane.b32.xlu0 %v1523, 96
        %v2236 = vpop.permute.xlu0 %2235
        %2237 = vrot.lane.b32.xlu0 %v1524, 96
        %v2238 = vpop.permute.xlu0 %2237
        %2239 = vrot.lane.b32.xlu0 %v1525, 96
        %v2240 = vpop.permute.xlu0 %2239
        %2249 = vmatpush.bf16.msra.mxu0 %v2240
        %2250 = vmatpush.bf16.msra.mxu0 %v2238
        %2251 = vmatpush.bf16.msra.mxu0 %v2236
        %2252 = vmatpush.bf16.msra.mxu0 %v2234
        %2253 = vmatpush.bf16.msra.mxu0 %v2232
        %2254 = vmatpush.bf16.msra.mxu0 %v2230
        %2255 = vmatpush.bf16.msra.mxu0 %v2228
        %2256 = vmatpush.bf16.msra.mxu0 %v2226
        %2257 = vmatmul.bf16.gmra.mxu0 %v2001
        %v2258 = vpop.f32.mrf.mxu0
        %v2259 = vadd.f32 0.0, %v2258
        %v2260 = vpop.f32.mrf.mxu0
        %v2261 = vadd.f32 0.0, %v2260
        %2262 = vmatmul.bf16.gmra.mxu0 %v2002
        %v2263 = vpop.f32.mrf.mxu0
        %v2264 = vadd.f32 0.0, %v2263
        %v2265 = vpop.f32.mrf.mxu0
        %v2266 = vadd.f32 0.0, %v2265
        %2267 = vmatmul.bf16.gmra.mxu0 %v2003
        %v2268 = vpop.f32.mrf.mxu0
        %v2269 = vadd.f32 0.0, %v2268
        %v2270 = vpop.f32.mrf.mxu0
        %v2271 = vadd.f32 0.0, %v2270
        %2272 = vmatmul.bf16.gmra.mxu0 %v2004
        %v2273 = vpop.f32.mrf.mxu0
        %v2274 = vadd.f32 0.0, %v2273
        %v2275 = vpop.f32.mrf.mxu0
        %v2276 = vadd.f32 0.0, %v2275
        %2277 = vmatmul.bf16.gmra.mxu0 %v2005
        %v2278 = vpop.f32.mrf.mxu0
        %v2279 = vadd.f32 0.0, %v2278
        %v2280 = vpop.f32.mrf.mxu0
        %v2281 = vadd.f32 0.0, %v2280
        %2282 = vmatmul.bf16.gmra.mxu0 %v2006
        %v2283 = vpop.f32.mrf.mxu0
        %v2284 = vadd.f32 0.0, %v2283
        %v2285 = vpop.f32.mrf.mxu0
        %v2286 = vadd.f32 0.0, %v2285
        %2287 = vmatmul.bf16.gmra.mxu0 %v2007
        %v2288 = vpop.f32.mrf.mxu0
        %v2289 = vadd.f32 0.0, %v2288
        %v2290 = vpop.f32.mrf.mxu0
        %v2291 = vadd.f32 0.0, %v2290
        %2292 = vmatmul.bf16.gmra.mxu0 %v2008
        %v2293 = vpop.f32.mrf.mxu0
        %v2294 = vadd.f32 0.0, %v2293
        %v2295 = vpop.f32.mrf.mxu0
        %v2296 = vadd.f32 0.0, %v2295
        %2297 = vdwg.mxu0
        %2298 = vrot.lane.b32.xlu0 %v1615, 96
        %v2299 = vpop.permute.xlu0 %2298
        %2300 = vrot.lane.b32.xlu0 %v1616, 96
        %v2301 = vpop.permute.xlu0 %2300
        %2302 = vrot.lane.b32.xlu0 %v1617, 96
        %v2303 = vpop.permute.xlu0 %2302
        %2304 = vrot.lane.b32.xlu0 %v1618, 96
        %v2305 = vpop.permute.xlu0 %2304
        %2306 = vrot.lane.b32.xlu0 %v1619, 96
        %v2307 = vpop.permute.xlu0 %2306
        %2308 = vrot.lane.b32.xlu0 %v1620, 96
        %v2309 = vpop.permute.xlu0 %2308
        %2310 = vrot.lane.b32.xlu0 %v1621, 96
        %v2311 = vpop.permute.xlu0 %2310
        %2312 = vrot.lane.b32.xlu0 %v1622, 96
        %v2313 = vpop.permute.xlu0 %2312
        %2322 = vmatpush.bf16.msra.mxu0 %v2313
        %2323 = vmatpush.bf16.msra.mxu0 %v2311
        %2324 = vmatpush.bf16.msra.mxu0 %v2309
        %2325 = vmatpush.bf16.msra.mxu0 %v2307
        %2326 = vmatpush.bf16.msra.mxu0 %v2305
        %2327 = vmatpush.bf16.msra.mxu0 %v2303
        %2328 = vmatpush.bf16.msra.mxu0 %v2301
        %2329 = vmatpush.bf16.msra.mxu0 %v2299
        %2330 = vmatmul.bf16.gmra.mxu0 %v2217
        %v2331 = vpop.f32.mrf.mxu0
        %v2332 = vadd.f32 0.0, %v2331
        %v2333 = vpop.f32.mrf.mxu0
        %v2334 = vadd.f32 0.0, %v2333
        %2335 = vmatmul.bf16.gmra.mxu0 %v2218
        %v2336 = vpop.f32.mrf.mxu0
        %v2337 = vadd.f32 0.0, %v2336
        %v2338 = vpop.f32.mrf.mxu0
        %v2339 = vadd.f32 0.0, %v2338
        %2340 = vmatmul.bf16.gmra.mxu0 %v2219
        %v2341 = vpop.f32.mrf.mxu0
        %v2342 = vadd.f32 0.0, %v2341
        %v2343 = vpop.f32.mrf.mxu0
        %v2344 = vadd.f32 0.0, %v2343
        %2345 = vmatmul.bf16.gmra.mxu0 %v2220
        %v2346 = vpop.f32.mrf.mxu0
        %v2347 = vadd.f32 0.0, %v2346
        %v2348 = vpop.f32.mrf.mxu0
        %v2349 = vadd.f32 0.0, %v2348
        %2350 = vmatmul.bf16.gmra.mxu0 %v2221
        %v2351 = vpop.f32.mrf.mxu0
        %v2352 = vadd.f32 0.0, %v2351
        %v2353 = vpop.f32.mrf.mxu0
        %v2354 = vadd.f32 0.0, %v2353
        %2355 = vmatmul.bf16.gmra.mxu0 %v2222
        %v2356 = vpop.f32.mrf.mxu0
        %v2357 = vadd.f32 0.0, %v2356
        %v2358 = vpop.f32.mrf.mxu0
        %v2359 = vadd.f32 0.0, %v2358
        %2360 = vmatmul.bf16.gmra.mxu0 %v2223
        %v2361 = vpop.f32.mrf.mxu0
        %v2362 = vadd.f32 0.0, %v2361
        %v2363 = vpop.f32.mrf.mxu0
        %v2364 = vadd.f32 0.0, %v2363
        %2365 = vmatmul.bf16.gmra.mxu0 %v2224
        %v2366 = vpop.f32.mrf.mxu0
        %v2367 = vadd.f32 0.0, %v2366
        %v2368 = vpop.f32.mrf.mxu0
        %v2369 = vadd.f32 0.0, %v2368
        %2370 = vdwg.mxu0
        %2371 = vrot.lane.b32.xlu0 %v918, 64
        %v2372 = vpop.permute.xlu0 %2371
        %2373 = vrot.lane.b32.xlu0 %v919, 64
        %v2374 = vpop.permute.xlu0 %2373
        %2375 = vrot.lane.b32.xlu0 %v920, 64
        %v2376 = vpop.permute.xlu0 %2375
        %2377 = vrot.lane.b32.xlu0 %v921, 64
        %v2378 = vpop.permute.xlu0 %2377
        %2379 = vrot.lane.b32.xlu0 %v922, 64
        %v2380 = vpop.permute.xlu0 %2379
        %2381 = vrot.lane.b32.xlu0 %v923, 64
        %v2382 = vpop.permute.xlu0 %2381
        %2383 = vrot.lane.b32.xlu0 %v924, 64
        %v2384 = vpop.permute.xlu0 %2383
        %2385 = vrot.lane.b32.xlu0 %v925, 64
        %v2386 = vpop.permute.xlu0 %2385
        %2387 = vrot.lane.b32.xlu0 %v958, 64
        %v2388 = vpop.permute.xlu0 %2387
        %2389 = vrot.lane.b32.xlu0 %v959, 64
        %v2390 = vpop.permute.xlu0 %2389
        %2391 = vrot.lane.b32.xlu0 %v960, 64
        %v2392 = vpop.permute.xlu0 %2391
        %2393 = vrot.lane.b32.xlu0 %v961, 64
        %v2394 = vpop.permute.xlu0 %2393
        %2395 = vrot.lane.b32.xlu0 %v962, 64
        %v2396 = vpop.permute.xlu0 %2395
        %2397 = vrot.lane.b32.xlu0 %v963, 64
        %v2398 = vpop.permute.xlu0 %2397
        %2399 = vrot.lane.b32.xlu0 %v964, 64
        %v2400 = vpop.permute.xlu0 %2399
        %2401 = vrot.lane.b32.xlu0 %v965, 64
        %v2402 = vpop.permute.xlu0 %2401
        %v2404 = vsel %vm966, %v2372, 0
        %v2407 = vsel %vm966, %v2374, 0
        %v2410 = vsel %vm966, %v2376, 0
        %v2413 = vsel %vm966, %v2378, 0
        %v2416 = vsel %vm966, %v2380, 0
        %v2419 = vsel %vm966, %v2382, 0
        %v2422 = vsel %vm966, %v2384, 0
        %v2425 = vsel %vm966, %v2386, 0
        %v2428 = vsel %vm966, %v2388, 0
        %v2431 = vsel %vm966, %v2390, 0
        %v2434 = vsel %vm966, %v2392, 0
        %v2437 = vsel %vm966, %v2394, 0
        %v2440 = vsel %vm966, %v2396, 0
        %v2443 = vsel %vm966, %v2398, 0
        %v2446 = vsel %vm966, %v2400, 0
        %v2449 = vsel %vm966, %v2402, 0
        %2451 = vmatpush.bf16.xpose.msra.mxu0 %v2449
        %2452 = vmatpush.bf16.xpose.msra.mxu0 %v2446
        %2453 = vmatpush.bf16.xpose.msra.mxu0 %v2443
        %2454 = vmatpush.bf16.xpose.msra.mxu0 %v2440
        %2455 = vmatpush.bf16.xpose.msra.mxu0 %v2437
        %2456 = vmatpush.bf16.xpose.msra.mxu0 %v2434
        %2457 = vmatpush.bf16.xpose.msra.mxu0 %v2431
        %2458 = vmatpush.bf16.xpose.msra.mxu0 %v2428
        %2459 = vmatmul.bf16.gmra.mxu0 %v2404
        %v2460 = vpop.f32.mrf.mxu0
        %v2461 = vadd.f32 0.0, %v2460
        %v2462 = vpop.f32.mrf.mxu0
        %v2463 = vadd.f32 0.0, %v2462
        %2464 = vmatmul.bf16.gmra.mxu0 %v2407
        %v2465 = vpop.f32.mrf.mxu0
        %v2466 = vadd.f32 0.0, %v2465
        %v2467 = vpop.f32.mrf.mxu0
        %v2468 = vadd.f32 0.0, %v2467
        %2469 = vmatmul.bf16.gmra.mxu0 %v2410
        %v2470 = vpop.f32.mrf.mxu0
        %v2471 = vadd.f32 0.0, %v2470
        %v2472 = vpop.f32.mrf.mxu0
        %v2473 = vadd.f32 0.0, %v2472
        %2474 = vmatmul.bf16.gmra.mxu0 %v2413
        %v2475 = vpop.f32.mrf.mxu0
        %v2476 = vadd.f32 0.0, %v2475
        %v2477 = vpop.f32.mrf.mxu0
        %v2478 = vadd.f32 0.0, %v2477
        %2479 = vmatmul.bf16.gmra.mxu0 %v2416
        %v2480 = vpop.f32.mrf.mxu0
        %v2481 = vadd.f32 0.0, %v2480
        %v2482 = vpop.f32.mrf.mxu0
        %v2483 = vadd.f32 0.0, %v2482
        %2484 = vmatmul.bf16.gmra.mxu0 %v2419
        %v2485 = vpop.f32.mrf.mxu0
        %v2486 = vadd.f32 0.0, %v2485
        %v2487 = vpop.f32.mrf.mxu0
        %v2488 = vadd.f32 0.0, %v2487
        %2489 = vmatmul.bf16.gmra.mxu0 %v2422
        %v2490 = vpop.f32.mrf.mxu0
        %v2491 = vadd.f32 0.0, %v2490
        %v2492 = vpop.f32.mrf.mxu0
        %v2493 = vadd.f32 0.0, %v2492
        %2494 = vmatmul.bf16.gmra.mxu0 %v2425
        %v2495 = vpop.f32.mrf.mxu0
        %v2496 = vadd.f32 0.0, %v2495
        %v2497 = vpop.f32.mrf.mxu0
        %v2498 = vadd.f32 0.0, %v2497
        %2499 = vdwg.mxu0
        %v2500 = vsub.f32 %v2461, %v1068
        %v2501 = vsub.f32 %v2463, %v1068
        %v2502 = vsub.f32 %v2466, %v1068
        %v2503 = vsub.f32 %v2468, %v1068
        %v2504 = vsub.f32 %v2471, %v1068
        %v2505 = vsub.f32 %v2473, %v1068
        %v2506 = vsub.f32 %v2476, %v1068
        %v2507 = vsub.f32 %v2478, %v1068
        %v2508 = vsub.f32 %v2481, %v1068
        %v2509 = vsub.f32 %v2483, %v1068
        %v2510 = vsub.f32 %v2486, %v1068
        %v2511 = vsub.f32 %v2488, %v1068
        %v2512 = vsub.f32 %v2491, %v1068
        %v2513 = vsub.f32 %v2493, %v1068
        %v2514 = vsub.f32 %v2496, %v1068
        %v2515 = vsub.f32 %v2498, %v1068
        %v2516 = vmax.f32 %v2500, -50000.0
        %v2517 = vmax.f32 %v2501, -50000.0
        %v2518 = vmax.f32 %v2502, -50000.0
        %v2519 = vmax.f32 %v2503, -50000.0
        %v2520 = vmax.f32 %v2504, -50000.0
        %v2521 = vmax.f32 %v2505, -50000.0
        %v2522 = vmax.f32 %v2506, -50000.0
        %v2523 = vmax.f32 %v2507, -50000.0
        %v2524 = vmax.f32 %v2508, -50000.0
        %v2525 = vmax.f32 %v2509, -50000.0
        %v2526 = vmax.f32 %v2510, -50000.0
        %v2527 = vmax.f32 %v2511, -50000.0
        %v2528 = vmax.f32 %v2512, -50000.0
        %v2529 = vmax.f32 %v2513, -50000.0
        %v2530 = vmax.f32 %v2514, -50000.0
        %v2531 = vmax.f32 %v2515, -50000.0
        %v2532 = vmin.f32 %v2516, 50000.0
        %v2533 = vmin.f32 %v2517, 50000.0
        %v2534 = vmin.f32 %v2518, 50000.0
        %v2535 = vmin.f32 %v2519, 50000.0
        %v2536 = vmin.f32 %v2520, 50000.0
        %v2537 = vmin.f32 %v2521, 50000.0
        %v2538 = vmin.f32 %v2522, 50000.0
        %v2539 = vmin.f32 %v2523, 50000.0
        %v2540 = vmin.f32 %v2524, 50000.0
        %v2541 = vmin.f32 %v2525, 50000.0
        %v2542 = vmin.f32 %v2526, 50000.0
        %v2543 = vmin.f32 %v2527, 50000.0
        %v2544 = vmin.f32 %v2528, 50000.0
        %v2545 = vmin.f32 %v2529, 50000.0
        %v2546 = vmin.f32 %v2530, 50000.0
        %v2547 = vmin.f32 %v2531, 50000.0
        %2548 = vmax.xlane.f32.xlu0 %v2532
        %v2549 = vpop.xlane.xlu0 %2548
        %2550 = vmax.xlane.f32.xlu0 %v2533
        %v2551 = vpop.xlane.xlu0 %2550
        %2552 = vmax.xlane.f32.xlu0 %v2534
        %v2553 = vpop.xlane.xlu0 %2552
        %2554 = vmax.xlane.f32.xlu0 %v2535
        %v2555 = vpop.xlane.xlu0 %2554
        %2556 = vmax.xlane.f32.xlu0 %v2536
        %v2557 = vpop.xlane.xlu0 %2556
        %2558 = vmax.xlane.f32.xlu0 %v2537
        %v2559 = vpop.xlane.xlu0 %2558
        %2560 = vmax.xlane.f32.xlu0 %v2538
        %v2561 = vpop.xlane.xlu0 %2560
        %2562 = vmax.xlane.f32.xlu0 %v2539
        %v2563 = vpop.xlane.xlu0 %2562
        %2564 = vmax.xlane.f32.xlu0 %v2540
        %v2565 = vpop.xlane.xlu0 %2564
        %2566 = vmax.xlane.f32.xlu0 %v2541
        %v2567 = vpop.xlane.xlu0 %2566
        %2568 = vmax.xlane.f32.xlu0 %v2542
        %v2569 = vpop.xlane.xlu0 %2568
        %2570 = vmax.xlane.f32.xlu0 %v2543
        %v2571 = vpop.xlane.xlu0 %2570
        %2572 = vmax.xlane.f32.xlu0 %v2544
        %v2573 = vpop.xlane.xlu0 %2572
        %2574 = vmax.xlane.f32.xlu0 %v2545
        %v2575 = vpop.xlane.xlu0 %2574
        %2576 = vmax.xlane.f32.xlu0 %v2546
        %v2577 = vpop.xlane.xlu0 %2576
        %2578 = vmax.xlane.f32.xlu0 %v2547
        %v2579 = vpop.xlane.xlu0 %2578
        %v2580 = vsub.f32 %v2532, %v2549
        %v2581 = vsub.f32 %v2533, %v2551
        %v2582 = vsub.f32 %v2534, %v2553
        %v2583 = vsub.f32 %v2535, %v2555
        %v2584 = vsub.f32 %v2536, %v2557
        %v2585 = vsub.f32 %v2537, %v2559
        %v2586 = vsub.f32 %v2538, %v2561
        %v2587 = vsub.f32 %v2539, %v2563
        %v2588 = vsub.f32 %v2540, %v2565
        %v2589 = vsub.f32 %v2541, %v2567
        %v2590 = vsub.f32 %v2542, %v2569
        %v2591 = vsub.f32 %v2543, %v2571
        %v2592 = vsub.f32 %v2544, %v2573
        %v2593 = vsub.f32 %v2545, %v2575
        %v2594 = vsub.f32 %v2546, %v2577
        %v2595 = vsub.f32 %v2547, %v2579
        %v2596 = vmul.f32 %v2580, 1.442695
        %v2597 = vpow.pop %v2596
        %v2598 = vmul.f32 %v2581, 1.442695
        %v2599 = vpow.pop %v2598
        %v2600 = vmul.f32 %v2582, 1.442695
        %v2601 = vpow.pop %v2600
        %v2602 = vmul.f32 %v2583, 1.442695
        %v2603 = vpow.pop %v2602
        %v2604 = vmul.f32 %v2584, 1.442695
        %v2605 = vpow.pop %v2604
        %v2606 = vmul.f32 %v2585, 1.442695
        %v2607 = vpow.pop %v2606
        %v2608 = vmul.f32 %v2586, 1.442695
        %v2609 = vpow.pop %v2608
        %v2610 = vmul.f32 %v2587, 1.442695
        %v2611 = vpow.pop %v2610
        %v2612 = vmul.f32 %v2588, 1.442695
        %v2613 = vpow.pop %v2612
        %v2614 = vmul.f32 %v2589, 1.442695
        %v2615 = vpow.pop %v2614
        %v2616 = vmul.f32 %v2590, 1.442695
        %v2617 = vpow.pop %v2616
        %v2618 = vmul.f32 %v2591, 1.442695
        %v2619 = vpow.pop %v2618
        %v2620 = vmul.f32 %v2592, 1.442695
        %v2621 = vpow.pop %v2620
        %v2622 = vmul.f32 %v2593, 1.442695
        %v2623 = vpow.pop %v2622
        %v2624 = vmul.f32 %v2594, 1.442695
        %v2625 = vpow.pop %v2624
        %v2626 = vmul.f32 %v2595, 1.442695
        %v2627 = vpow.pop %v2626
        %2628 = vadd.xlane.f32.xlu0 %v2597
        %v2629 = vpop.xlane.xlu0 %2628
        %2630 = vadd.xlane.f32.xlu0 %v2599
        %v2631 = vpop.xlane.xlu0 %2630
        %2632 = vadd.xlane.f32.xlu0 %v2601
        %v2633 = vpop.xlane.xlu0 %2632
        %2634 = vadd.xlane.f32.xlu0 %v2603
        %v2635 = vpop.xlane.xlu0 %2634
        %2636 = vadd.xlane.f32.xlu0 %v2605
        %v2637 = vpop.xlane.xlu0 %2636
        %2638 = vadd.xlane.f32.xlu0 %v2607
        %v2639 = vpop.xlane.xlu0 %2638
        %2640 = vadd.xlane.f32.xlu0 %v2609
        %v2641 = vpop.xlane.xlu0 %2640
        %2642 = vadd.xlane.f32.xlu0 %v2611
        %v2643 = vpop.xlane.xlu0 %2642
        %2644 = vadd.xlane.f32.xlu0 %v2613
        %v2645 = vpop.xlane.xlu0 %2644
        %2646 = vadd.xlane.f32.xlu0 %v2615
        %v2647 = vpop.xlane.xlu0 %2646
        %2648 = vadd.xlane.f32.xlu0 %v2617
        %v2649 = vpop.xlane.xlu0 %2648
        %2650 = vadd.xlane.f32.xlu0 %v2619
        %v2651 = vpop.xlane.xlu0 %2650
        %2652 = vadd.xlane.f32.xlu0 %v2621
        %v2653 = vpop.xlane.xlu0 %2652
        %2654 = vadd.xlane.f32.xlu0 %v2623
        %v2655 = vpop.xlane.xlu0 %2654
        %2656 = vadd.xlane.f32.xlu0 %v2625
        %v2657 = vpop.xlane.xlu0 %2656
        %2658 = vadd.xlane.f32.xlu0 %v2627
        %v2659 = vpop.xlane.xlu0 %2658
        %v2660 = vrcp.pop %v2629
        %v2661 = vrcp.pop %v2631
        %v2662 = vrcp.pop %v2633
        %v2663 = vrcp.pop %v2635
        %v2664 = vrcp.pop %v2637
        %v2665 = vrcp.pop %v2639
        %v2666 = vrcp.pop %v2641
        %v2667 = vrcp.pop %v2643
        %v2668 = vrcp.pop %v2645
        %v2669 = vrcp.pop %v2647
        %v2670 = vrcp.pop %v2649
        %v2671 = vrcp.pop %v2651
        %v2672 = vrcp.pop %v2653
        %v2673 = vrcp.pop %v2655
        %v2674 = vrcp.pop %v2657
        %v2675 = vrcp.pop %v2659
        %v2676 = vmul.f32 %v2597, %v2660
        %v2677 = vmul.f32 %v2599, %v2661
        %v2678 = vmul.f32 %v2601, %v2662
        %v2679 = vmul.f32 %v2603, %v2663
        %v2680 = vmul.f32 %v2605, %v2664
        %v2681 = vmul.f32 %v2607, %v2665
        %v2682 = vmul.f32 %v2609, %v2666
        %v2683 = vmul.f32 %v2611, %v2667
        %v2684 = vmul.f32 %v2613, %v2668
        %v2685 = vmul.f32 %v2615, %v2669
        %v2686 = vmul.f32 %v2617, %v2670
        %v2687 = vmul.f32 %v2619, %v2671
        %v2688 = vmul.f32 %v2621, %v2672
        %v2689 = vmul.f32 %v2623, %v2673
        %v2690 = vmul.f32 %v2625, %v2674
        %v2691 = vmul.f32 %v2627, %v2675
        %v2692 = vpack.c.bf16 %v2677, %v2676
        %v2693 = vpack.c.bf16 %v2679, %v2678
        %v2694 = vpack.c.bf16 %v2681, %v2680
        %v2695 = vpack.c.bf16 %v2683, %v2682
        %v2696 = vpack.c.bf16 %v2685, %v2684
        %v2697 = vpack.c.bf16 %v2687, %v2686
        %v2698 = vpack.c.bf16 %v2689, %v2688
        %v2699 = vpack.c.bf16 %v2691, %v2690
        %2700 = vxpose.xlu0.b32.start [1/16] %v2532, 128
        %2701 = vxpose.xlu0.b32.cont [2/16] %v2533, 128
        %2702 = vxpose.xlu0.b32.cont [3/16] %v2534, 128
        %2703 = vxpose.xlu0.b32.cont [4/16] %v2535, 128
        %2704 = vxpose.xlu0.b32.cont [5/16] %v2536, 128
        %2705 = vxpose.xlu0.b32.cont [6/16] %v2537, 128
        %2706 = vxpose.xlu0.b32.cont [7/16] %v2538, 128
        %2707 = vxpose.xlu0.b32.cont [8/16] %v2539, 128
        %2708 = vxpose.xlu0.b32.cont [9/16] %v2540, 128
        %2709 = vxpose.xlu0.b32.cont [10/16] %v2541, 128
        %2710 = vxpose.xlu0.b32.cont [11/16] %v2542, 128
        %2711 = vxpose.xlu0.b32.cont [12/16] %v2543, 128
        %2712 = vxpose.xlu0.b32.cont [13/16] %v2544, 128
        %2713 = vxpose.xlu0.b32.cont [14/16] %v2545, 128
        %2714 = vxpose.xlu0.b32.cont [15/16] %v2546, 128
        %2715 = vxpose.xlu0.b32.end [16/16] %v2547, 128
        %v2716 = vpop.trf.xlu0
        %v2717 = vpop.trf.xlu0
        %v2718 = vpop.trf.xlu0
        %v2719 = vpop.trf.xlu0
        %v2720 = vpop.trf.xlu0
        %v2721 = vpop.trf.xlu0
        %v2722 = vpop.trf.xlu0
        %v2723 = vpop.trf.xlu0
        %v2724 = vpop.trf.xlu0
        %v2725 = vpop.trf.xlu0
        %v2726 = vpop.trf.xlu0
        %v2727 = vpop.trf.xlu0
        %v2728 = vpop.trf.xlu0
        %v2729 = vpop.trf.xlu0
        %v2730 = vpop.trf.xlu0
        %v2731 = vpop.trf.xlu0
        %2732 = vmax.xlane.f32.xlu0 %v2716
        %v2733 = vpop.xlane.xlu0 %2732
        %2734 = vmax.xlane.f32.xlu0 %v2717
        %v2735 = vpop.xlane.xlu0 %2734
        %2736 = vmax.xlane.f32.xlu0 %v2718
        %v2737 = vpop.xlane.xlu0 %2736
        %2738 = vmax.xlane.f32.xlu0 %v2719
        %v2739 = vpop.xlane.xlu0 %2738
        %2740 = vmax.xlane.f32.xlu0 %v2720
        %v2741 = vpop.xlane.xlu0 %2740
        %2742 = vmax.xlane.f32.xlu0 %v2721
        %v2743 = vpop.xlane.xlu0 %2742
        %2744 = vmax.xlane.f32.xlu0 %v2722
        %v2745 = vpop.xlane.xlu0 %2744
        %2746 = vmax.xlane.f32.xlu0 %v2723
        %v2747 = vpop.xlane.xlu0 %2746
        %2748 = vmax.xlane.f32.xlu0 %v2724
        %v2749 = vpop.xlane.xlu0 %2748
        %2750 = vmax.xlane.f32.xlu0 %v2725
        %v2751 = vpop.xlane.xlu0 %2750
        %2752 = vmax.xlane.f32.xlu0 %v2726
        %v2753 = vpop.xlane.xlu0 %2752
        %2754 = vmax.xlane.f32.xlu0 %v2727
        %v2755 = vpop.xlane.xlu0 %2754
        %2756 = vmax.xlane.f32.xlu0 %v2728
        %v2757 = vpop.xlane.xlu0 %2756
        %2758 = vmax.xlane.f32.xlu0 %v2729
        %v2759 = vpop.xlane.xlu0 %2758
        %2760 = vmax.xlane.f32.xlu0 %v2730
        %v2761 = vpop.xlane.xlu0 %2760
        %2762 = vmax.xlane.f32.xlu0 %v2731
        %v2763 = vpop.xlane.xlu0 %2762
        %v2764 = vsub.f32 %v2716, %v2733
        %v2765 = vsub.f32 %v2717, %v2735
        %v2766 = vsub.f32 %v2718, %v2737
        %v2767 = vsub.f32 %v2719, %v2739
        %v2768 = vsub.f32 %v2720, %v2741
        %v2769 = vsub.f32 %v2721, %v2743
        %v2770 = vsub.f32 %v2722, %v2745
        %v2771 = vsub.f32 %v2723, %v2747
        %v2772 = vsub.f32 %v2724, %v2749
        %v2773 = vsub.f32 %v2725, %v2751
        %v2774 = vsub.f32 %v2726, %v2753
        %v2775 = vsub.f32 %v2727, %v2755
        %v2776 = vsub.f32 %v2728, %v2757
        %v2777 = vsub.f32 %v2729, %v2759
        %v2778 = vsub.f32 %v2730, %v2761
        %v2779 = vsub.f32 %v2731, %v2763
        %v2780 = vmax.f32 %v2764, -50000.0
        %v2781 = vmax.f32 %v2765, -50000.0
        %v2782 = vmax.f32 %v2766, -50000.0
        %v2783 = vmax.f32 %v2767, -50000.0
        %v2784 = vmax.f32 %v2768, -50000.0
        %v2785 = vmax.f32 %v2769, -50000.0
        %v2786 = vmax.f32 %v2770, -50000.0
        %v2787 = vmax.f32 %v2771, -50000.0
        %v2788 = vmax.f32 %v2772, -50000.0
        %v2789 = vmax.f32 %v2773, -50000.0
        %v2790 = vmax.f32 %v2774, -50000.0
        %v2791 = vmax.f32 %v2775, -50000.0
        %v2792 = vmax.f32 %v2776, -50000.0
        %v2793 = vmax.f32 %v2777, -50000.0
        %v2794 = vmax.f32 %v2778, -50000.0
        %v2795 = vmax.f32 %v2779, -50000.0
        %v2796 = vmin.f32 %v2780, 50000.0
        %v2797 = vmin.f32 %v2781, 50000.0
        %v2798 = vmin.f32 %v2782, 50000.0
        %v2799 = vmin.f32 %v2783, 50000.0
        %v2800 = vmin.f32 %v2784, 50000.0
        %v2801 = vmin.f32 %v2785, 50000.0
        %v2802 = vmin.f32 %v2786, 50000.0
        %v2803 = vmin.f32 %v2787, 50000.0
        %v2804 = vmin.f32 %v2788, 50000.0
        %v2805 = vmin.f32 %v2789, 50000.0
        %v2806 = vmin.f32 %v2790, 50000.0
        %v2807 = vmin.f32 %v2791, 50000.0
        %v2808 = vmin.f32 %v2792, 50000.0
        %v2809 = vmin.f32 %v2793, 50000.0
        %v2810 = vmin.f32 %v2794, 50000.0
        %v2811 = vmin.f32 %v2795, 50000.0
        %v2812 = vmul.f32 %v2796, 1.442695
        %v2813 = vpow.pop %v2812
        %v2814 = vmul.f32 %v2797, 1.442695
        %v2815 = vpow.pop %v2814
        %v2816 = vmul.f32 %v2798, 1.442695
        %v2817 = vpow.pop %v2816
        %v2818 = vmul.f32 %v2799, 1.442695
        %v2819 = vpow.pop %v2818
        %v2820 = vmul.f32 %v2800, 1.442695
        %v2821 = vpow.pop %v2820
        %v2822 = vmul.f32 %v2801, 1.442695
        %v2823 = vpow.pop %v2822
        %v2824 = vmul.f32 %v2802, 1.442695
        %v2825 = vpow.pop %v2824
        %v2826 = vmul.f32 %v2803, 1.442695
        %v2827 = vpow.pop %v2826
        %v2828 = vmul.f32 %v2804, 1.442695
        %v2829 = vpow.pop %v2828
        %v2830 = vmul.f32 %v2805, 1.442695
        %v2831 = vpow.pop %v2830
        %v2832 = vmul.f32 %v2806, 1.442695
        %v2833 = vpow.pop %v2832
        %v2834 = vmul.f32 %v2807, 1.442695
        %v2835 = vpow.pop %v2834
        %v2836 = vmul.f32 %v2808, 1.442695
        %v2837 = vpow.pop %v2836
        %v2838 = vmul.f32 %v2809, 1.442695
        %v2839 = vpow.pop %v2838
        %v2840 = vmul.f32 %v2810, 1.442695
        %v2841 = vpow.pop %v2840
        %v2842 = vmul.f32 %v2811, 1.442695
        %v2843 = vpow.pop %v2842
        %2844 = vadd.xlane.f32.xlu0 %v2813
        %v2845 = vpop.xlane.xlu0 %2844
        %2846 = vadd.xlane.f32.xlu0 %v2815
        %v2847 = vpop.xlane.xlu0 %2846
        %2848 = vadd.xlane.f32.xlu0 %v2817
        %v2849 = vpop.xlane.xlu0 %2848
        %2850 = vadd.xlane.f32.xlu0 %v2819
        %v2851 = vpop.xlane.xlu0 %2850
        %2852 = vadd.xlane.f32.xlu0 %v2821
        %v2853 = vpop.xlane.xlu0 %2852
        %2854 = vadd.xlane.f32.xlu0 %v2823
        %v2855 = vpop.xlane.xlu0 %2854
        %2856 = vadd.xlane.f32.xlu0 %v2825
        %v2857 = vpop.xlane.xlu0 %2856
        %2858 = vadd.xlane.f32.xlu0 %v2827
        %v2859 = vpop.xlane.xlu0 %2858
        %2860 = vadd.xlane.f32.xlu0 %v2829
        %v2861 = vpop.xlane.xlu0 %2860
        %2862 = vadd.xlane.f32.xlu0 %v2831
        %v2863 = vpop.xlane.xlu0 %2862
        %2864 = vadd.xlane.f32.xlu0 %v2833
        %v2865 = vpop.xlane.xlu0 %2864
        %2866 = vadd.xlane.f32.xlu0 %v2835
        %v2867 = vpop.xlane.xlu0 %2866
        %2868 = vadd.xlane.f32.xlu0 %v2837
        %v2869 = vpop.xlane.xlu0 %2868
        %2870 = vadd.xlane.f32.xlu0 %v2839
        %v2871 = vpop.xlane.xlu0 %2870
        %2872 = vadd.xlane.f32.xlu0 %v2841
        %v2873 = vpop.xlane.xlu0 %2872
        %2874 = vadd.xlane.f32.xlu0 %v2843
        %v2875 = vpop.xlane.xlu0 %2874
        %v2876 = vrcp.pop %v2845
        %v2877 = vrcp.pop %v2847
        %v2878 = vrcp.pop %v2849
        %v2879 = vrcp.pop %v2851
        %v2880 = vrcp.pop %v2853
        %v2881 = vrcp.pop %v2855
        %v2882 = vrcp.pop %v2857
        %v2883 = vrcp.pop %v2859
        %v2884 = vrcp.pop %v2861
        %v2885 = vrcp.pop %v2863
        %v2886 = vrcp.pop %v2865
        %v2887 = vrcp.pop %v2867
        %v2888 = vrcp.pop %v2869
        %v2889 = vrcp.pop %v2871
        %v2890 = vrcp.pop %v2873
        %v2891 = vrcp.pop %v2875
        %v2892 = vmul.f32 %v2813, %v2876
        %v2893 = vmul.f32 %v2815, %v2877
        %v2894 = vmul.f32 %v2817, %v2878
        %v2895 = vmul.f32 %v2819, %v2879
        %v2896 = vmul.f32 %v2821, %v2880
        %v2897 = vmul.f32 %v2823, %v2881
        %v2898 = vmul.f32 %v2825, %v2882
        %v2899 = vmul.f32 %v2827, %v2883
        %v2900 = vmul.f32 %v2829, %v2884
        %v2901 = vmul.f32 %v2831, %v2885
        %v2902 = vmul.f32 %v2833, %v2886
        %v2903 = vmul.f32 %v2835, %v2887
        %v2904 = vmul.f32 %v2837, %v2888
        %v2905 = vmul.f32 %v2839, %v2889
        %v2906 = vmul.f32 %v2841, %v2890
        %v2907 = vmul.f32 %v2843, %v2891
        %v2908 = vpack.c.bf16 %v2893, %v2892
        %v2909 = vpack.c.bf16 %v2895, %v2894
        %v2910 = vpack.c.bf16 %v2897, %v2896
        %v2911 = vpack.c.bf16 %v2899, %v2898
        %v2912 = vpack.c.bf16 %v2901, %v2900
        %v2913 = vpack.c.bf16 %v2903, %v2902
        %v2914 = vpack.c.bf16 %v2905, %v2904
        %v2915 = vpack.c.bf16 %v2907, %v2906
        %2916 = vrot.lane.b32.xlu0 %v1518, 64
        %v2917 = vpop.permute.xlu0 %2916
        %2918 = vrot.lane.b32.xlu0 %v1519, 64
        %v2919 = vpop.permute.xlu0 %2918
        %2920 = vrot.lane.b32.xlu0 %v1520, 64
        %v2921 = vpop.permute.xlu0 %2920
        %2922 = vrot.lane.b32.xlu0 %v1521, 64
        %v2923 = vpop.permute.xlu0 %2922
        %2924 = vrot.lane.b32.xlu0 %v1522, 64
        %v2925 = vpop.permute.xlu0 %2924
        %2926 = vrot.lane.b32.xlu0 %v1523, 64
        %v2927 = vpop.permute.xlu0 %2926
        %2928 = vrot.lane.b32.xlu0 %v1524, 64
        %v2929 = vpop.permute.xlu0 %2928
        %2930 = vrot.lane.b32.xlu0 %v1525, 64
        %v2931 = vpop.permute.xlu0 %2930
        %2940 = vmatpush.bf16.msra.mxu0 %v2931
        %2941 = vmatpush.bf16.msra.mxu0 %v2929
        %2942 = vmatpush.bf16.msra.mxu0 %v2927
        %2943 = vmatpush.bf16.msra.mxu0 %v2925
        %2944 = vmatpush.bf16.msra.mxu0 %v2923
        %2945 = vmatpush.bf16.msra.mxu0 %v2921
        %2946 = vmatpush.bf16.msra.mxu0 %v2919
        %2947 = vmatpush.bf16.msra.mxu0 %v2917
        %2948 = vmatmul.bf16.gmra.mxu0 %v2692
        %v2949 = vpop.f32.mrf.mxu0
        %v2950 = vadd.f32 0.0, %v2949
        %v2951 = vpop.f32.mrf.mxu0
        %v2952 = vadd.f32 0.0, %v2951
        %2953 = vmatmul.bf16.gmra.mxu0 %v2693
        %v2954 = vpop.f32.mrf.mxu0
        %v2955 = vadd.f32 0.0, %v2954
        %v2956 = vpop.f32.mrf.mxu0
        %v2957 = vadd.f32 0.0, %v2956
        %2958 = vmatmul.bf16.gmra.mxu0 %v2694
        %v2959 = vpop.f32.mrf.mxu0
        %v2960 = vadd.f32 0.0, %v2959
        %v2961 = vpop.f32.mrf.mxu0
        %v2962 = vadd.f32 0.0, %v2961
        %2963 = vmatmul.bf16.gmra.mxu0 %v2695
        %v2964 = vpop.f32.mrf.mxu0
        %v2965 = vadd.f32 0.0, %v2964
        %v2966 = vpop.f32.mrf.mxu0
        %v2967 = vadd.f32 0.0, %v2966
        %2968 = vmatmul.bf16.gmra.mxu0 %v2696
        %v2969 = vpop.f32.mrf.mxu0
        %v2970 = vadd.f32 0.0, %v2969
        %v2971 = vpop.f32.mrf.mxu0
        %v2972 = vadd.f32 0.0, %v2971
        %2973 = vmatmul.bf16.gmra.mxu0 %v2697
        %v2974 = vpop.f32.mrf.mxu0
        %v2975 = vadd.f32 0.0, %v2974
        %v2976 = vpop.f32.mrf.mxu0
        %v2977 = vadd.f32 0.0, %v2976
        %2978 = vmatmul.bf16.gmra.mxu0 %v2698
        %v2979 = vpop.f32.mrf.mxu0
        %v2980 = vadd.f32 0.0, %v2979
        %v2981 = vpop.f32.mrf.mxu0
        %v2982 = vadd.f32 0.0, %v2981
        %2983 = vmatmul.bf16.gmra.mxu0 %v2699
        %v2984 = vpop.f32.mrf.mxu0
        %v2985 = vadd.f32 0.0, %v2984
        %v2986 = vpop.f32.mrf.mxu0
        %v2987 = vadd.f32 0.0, %v2986
        %2988 = vdwg.mxu0
        %2989 = vrot.lane.b32.xlu0 %v1615, 64
        %v2990 = vpop.permute.xlu0 %2989
        %2991 = vrot.lane.b32.xlu0 %v1616, 64
        %v2992 = vpop.permute.xlu0 %2991
        %2993 = vrot.lane.b32.xlu0 %v1617, 64
        %v2994 = vpop.permute.xlu0 %2993
        %2995 = vrot.lane.b32.xlu0 %v1618, 64
        %v2996 = vpop.permute.xlu0 %2995
        %2997 = vrot.lane.b32.xlu0 %v1619, 64
        %v2998 = vpop.permute.xlu0 %2997
        %2999 = vrot.lane.b32.xlu0 %v1620, 64
        %v3000 = vpop.permute.xlu0 %2999
        %3001 = vrot.lane.b32.xlu0 %v1621, 64
        %v3002 = vpop.permute.xlu0 %3001
        %3003 = vrot.lane.b32.xlu0 %v1622, 64
        %v3004 = vpop.permute.xlu0 %3003
        %3013 = vmatpush.bf16.msra.mxu0 %v3004
        %3014 = vmatpush.bf16.msra.mxu0 %v3002
        %3015 = vmatpush.bf16.msra.mxu0 %v3000
        %3016 = vmatpush.bf16.msra.mxu0 %v2998
        %3017 = vmatpush.bf16.msra.mxu0 %v2996
        %3018 = vmatpush.bf16.msra.mxu0 %v2994
        %3019 = vmatpush.bf16.msra.mxu0 %v2992
        %3020 = vmatpush.bf16.msra.mxu0 %v2990
        %3021 = vmatmul.bf16.gmra.mxu0 %v2908
        %v3022 = vpop.f32.mrf.mxu0
        %v3023 = vadd.f32 0.0, %v3022
        %v3024 = vpop.f32.mrf.mxu0
        %v3025 = vadd.f32 0.0, %v3024
        %3026 = vmatmul.bf16.gmra.mxu0 %v2909
        %v3027 = vpop.f32.mrf.mxu0
        %v3028 = vadd.f32 0.0, %v3027
        %v3029 = vpop.f32.mrf.mxu0
        %v3030 = vadd.f32 0.0, %v3029
        %3031 = vmatmul.bf16.gmra.mxu0 %v2910
        %v3032 = vpop.f32.mrf.mxu0
        %v3033 = vadd.f32 0.0, %v3032
        %v3034 = vpop.f32.mrf.mxu0
        %v3035 = vadd.f32 0.0, %v3034
        %3036 = vmatmul.bf16.gmra.mxu0 %v2911
        %v3037 = vpop.f32.mrf.mxu0
        %v3038 = vadd.f32 0.0, %v3037
        %v3039 = vpop.f32.mrf.mxu0
        %v3040 = vadd.f32 0.0, %v3039
        %3041 = vmatmul.bf16.gmra.mxu0 %v2912
        %v3042 = vpop.f32.mrf.mxu0
        %v3043 = vadd.f32 0.0, %v3042
        %v3044 = vpop.f32.mrf.mxu0
        %v3045 = vadd.f32 0.0, %v3044
        %3046 = vmatmul.bf16.gmra.mxu0 %v2913
        %v3047 = vpop.f32.mrf.mxu0
        %v3048 = vadd.f32 0.0, %v3047
        %v3049 = vpop.f32.mrf.mxu0
        %v3050 = vadd.f32 0.0, %v3049
        %3051 = vmatmul.bf16.gmra.mxu0 %v2914
        %v3052 = vpop.f32.mrf.mxu0
        %v3053 = vadd.f32 0.0, %v3052
        %v3054 = vpop.f32.mrf.mxu0
        %v3055 = vadd.f32 0.0, %v3054
        %3056 = vmatmul.bf16.gmra.mxu0 %v2915
        %v3057 = vpop.f32.mrf.mxu0
        %v3058 = vadd.f32 0.0, %v3057
        %v3059 = vpop.f32.mrf.mxu0
        %v3060 = vadd.f32 0.0, %v3059
        %3061 = vdwg.mxu0
        %3062 = vrot.lane.b32.xlu0 %v918, 32
        %v3063 = vpop.permute.xlu0 %3062
        %3064 = vrot.lane.b32.xlu0 %v919, 32
        %v3065 = vpop.permute.xlu0 %3064
        %3066 = vrot.lane.b32.xlu0 %v920, 32
        %v3067 = vpop.permute.xlu0 %3066
        %3068 = vrot.lane.b32.xlu0 %v921, 32
        %v3069 = vpop.permute.xlu0 %3068
        %3070 = vrot.lane.b32.xlu0 %v922, 32
        %v3071 = vpop.permute.xlu0 %3070
        %3072 = vrot.lane.b32.xlu0 %v923, 32
        %v3073 = vpop.permute.xlu0 %3072
        %3074 = vrot.lane.b32.xlu0 %v924, 32
        %v3075 = vpop.permute.xlu0 %3074
        %3076 = vrot.lane.b32.xlu0 %v925, 32
        %v3077 = vpop.permute.xlu0 %3076
        %3078 = vrot.lane.b32.xlu0 %v958, 32
        %v3079 = vpop.permute.xlu0 %3078
        %3080 = vrot.lane.b32.xlu0 %v959, 32
        %v3081 = vpop.permute.xlu0 %3080
        %3082 = vrot.lane.b32.xlu0 %v960, 32
        %v3083 = vpop.permute.xlu0 %3082
        %3084 = vrot.lane.b32.xlu0 %v961, 32
        %v3085 = vpop.permute.xlu0 %3084
        %3086 = vrot.lane.b32.xlu0 %v962, 32
        %v3087 = vpop.permute.xlu0 %3086
        %3088 = vrot.lane.b32.xlu0 %v963, 32
        %v3089 = vpop.permute.xlu0 %3088
        %3090 = vrot.lane.b32.xlu0 %v964, 32
        %v3091 = vpop.permute.xlu0 %3090
        %3092 = vrot.lane.b32.xlu0 %v965, 32
        %v3093 = vpop.permute.xlu0 %3092
        %v3095 = vsel %vm966, %v3063, 0
        %v3098 = vsel %vm966, %v3065, 0
        %v3101 = vsel %vm966, %v3067, 0
        %v3104 = vsel %vm966, %v3069, 0
        %v3107 = vsel %vm966, %v3071, 0
        %v3110 = vsel %vm966, %v3073, 0
        %v3113 = vsel %vm966, %v3075, 0
        %v3116 = vsel %vm966, %v3077, 0
        %v3119 = vsel %vm966, %v3079, 0
        %v3122 = vsel %vm966, %v3081, 0
        %v3125 = vsel %vm966, %v3083, 0
        %v3128 = vsel %vm966, %v3085, 0
        %v3131 = vsel %vm966, %v3087, 0
        %v3134 = vsel %vm966, %v3089, 0
        %v3137 = vsel %vm966, %v3091, 0
        %v3140 = vsel %vm966, %v3093, 0
        %3142 = vmatpush.bf16.xpose.msra.mxu0 %v3140
        %3143 = vmatpush.bf16.xpose.msra.mxu0 %v3137
        %3144 = vmatpush.bf16.xpose.msra.mxu0 %v3134
        %3145 = vmatpush.bf16.xpose.msra.mxu0 %v3131
        %3146 = vmatpush.bf16.xpose.msra.mxu0 %v3128
        %3147 = vmatpush.bf16.xpose.msra.mxu0 %v3125
        %3148 = vmatpush.bf16.xpose.msra.mxu0 %v3122
        %3149 = vmatpush.bf16.xpose.msra.mxu0 %v3119
        %3150 = vmatmul.bf16.gmra.mxu0 %v3095
        %v3151 = vpop.f32.mrf.mxu0
        %v3152 = vadd.f32 0.0, %v3151
        %v3153 = vpop.f32.mrf.mxu0
        %v3154 = vadd.f32 0.0, %v3153
        %3155 = vmatmul.bf16.gmra.mxu0 %v3098
        %v3156 = vpop.f32.mrf.mxu0
        %v3157 = vadd.f32 0.0, %v3156
        %v3158 = vpop.f32.mrf.mxu0
        %v3159 = vadd.f32 0.0, %v3158
        %3160 = vmatmul.bf16.gmra.mxu0 %v3101
        %v3161 = vpop.f32.mrf.mxu0
        %v3162 = vadd.f32 0.0, %v3161
        %v3163 = vpop.f32.mrf.mxu0
        %v3164 = vadd.f32 0.0, %v3163
        %3165 = vmatmul.bf16.gmra.mxu0 %v3104
        %v3166 = vpop.f32.mrf.mxu0
        %v3167 = vadd.f32 0.0, %v3166
        %v3168 = vpop.f32.mrf.mxu0
        %v3169 = vadd.f32 0.0, %v3168
        %3170 = vmatmul.bf16.gmra.mxu0 %v3107
        %v3171 = vpop.f32.mrf.mxu0
        %v3172 = vadd.f32 0.0, %v3171
        %v3173 = vpop.f32.mrf.mxu0
        %v3174 = vadd.f32 0.0, %v3173
        %3175 = vmatmul.bf16.gmra.mxu0 %v3110
        %v3176 = vpop.f32.mrf.mxu0
        %v3177 = vadd.f32 0.0, %v3176
        %v3178 = vpop.f32.mrf.mxu0
        %v3179 = vadd.f32 0.0, %v3178
        %3180 = vmatmul.bf16.gmra.mxu0 %v3113
        %v3181 = vpop.f32.mrf.mxu0
        %v3182 = vadd.f32 0.0, %v3181
        %v3183 = vpop.f32.mrf.mxu0
        %v3184 = vadd.f32 0.0, %v3183
        %3185 = vmatmul.bf16.gmra.mxu0 %v3116
        %v3186 = vpop.f32.mrf.mxu0
        %v3187 = vadd.f32 0.0, %v3186
        %v3188 = vpop.f32.mrf.mxu0
        %v3189 = vadd.f32 0.0, %v3188
        %3190 = vdwg.mxu0
        %v3191 = vsub.f32 %v3152, %v1068
        %v3192 = vsub.f32 %v3154, %v1068
        %v3193 = vsub.f32 %v3157, %v1068
        %v3194 = vsub.f32 %v3159, %v1068
        %v3195 = vsub.f32 %v3162, %v1068
        %v3196 = vsub.f32 %v3164, %v1068
        %v3197 = vsub.f32 %v3167, %v1068
        %v3198 = vsub.f32 %v3169, %v1068
        %v3199 = vsub.f32 %v3172, %v1068
        %v3200 = vsub.f32 %v3174, %v1068
        %v3201 = vsub.f32 %v3177, %v1068
        %v3202 = vsub.f32 %v3179, %v1068
        %v3203 = vsub.f32 %v3182, %v1068
        %v3204 = vsub.f32 %v3184, %v1068
        %v3205 = vsub.f32 %v3187, %v1068
        %v3206 = vsub.f32 %v3189, %v1068
        %v3207 = vmax.f32 %v3191, -50000.0
        %v3208 = vmax.f32 %v3192, -50000.0
        %v3209 = vmax.f32 %v3193, -50000.0
        %v3210 = vmax.f32 %v3194, -50000.0
        %v3211 = vmax.f32 %v3195, -50000.0
        %v3212 = vmax.f32 %v3196, -50000.0
        %v3213 = vmax.f32 %v3197, -50000.0
        %v3214 = vmax.f32 %v3198, -50000.0
        %v3215 = vmax.f32 %v3199, -50000.0
        %v3216 = vmax.f32 %v3200, -50000.0
        %v3217 = vmax.f32 %v3201, -50000.0
        %v3218 = vmax.f32 %v3202, -50000.0
        %v3219 = vmax.f32 %v3203, -50000.0
        %v3220 = vmax.f32 %v3204, -50000.0
        %v3221 = vmax.f32 %v3205, -50000.0
        %v3222 = vmax.f32 %v3206, -50000.0
        %v3223 = vmin.f32 %v3207, 50000.0
        %v3224 = vmin.f32 %v3208, 50000.0
        %v3225 = vmin.f32 %v3209, 50000.0
        %v3226 = vmin.f32 %v3210, 50000.0
        %v3227 = vmin.f32 %v3211, 50000.0
        %v3228 = vmin.f32 %v3212, 50000.0
        %v3229 = vmin.f32 %v3213, 50000.0
        %v3230 = vmin.f32 %v3214, 50000.0
        %v3231 = vmin.f32 %v3215, 50000.0
        %v3232 = vmin.f32 %v3216, 50000.0
        %v3233 = vmin.f32 %v3217, 50000.0
        %v3234 = vmin.f32 %v3218, 50000.0
        %v3235 = vmin.f32 %v3219, 50000.0
        %v3236 = vmin.f32 %v3220, 50000.0
        %v3237 = vmin.f32 %v3221, 50000.0
        %v3238 = vmin.f32 %v3222, 50000.0
        %3239 = vmax.xlane.f32.xlu0 %v3223
        %v3240 = vpop.xlane.xlu0 %3239
        %3241 = vmax.xlane.f32.xlu0 %v3224
        %v3242 = vpop.xlane.xlu0 %3241
        %3243 = vmax.xlane.f32.xlu0 %v3225
        %v3244 = vpop.xlane.xlu0 %3243
        %3245 = vmax.xlane.f32.xlu0 %v3226
        %v3246 = vpop.xlane.xlu0 %3245
        %3247 = vmax.xlane.f32.xlu0 %v3227
        %v3248 = vpop.xlane.xlu0 %3247
        %3249 = vmax.xlane.f32.xlu0 %v3228
        %v3250 = vpop.xlane.xlu0 %3249
        %3251 = vmax.xlane.f32.xlu0 %v3229
        %v3252 = vpop.xlane.xlu0 %3251
        %3253 = vmax.xlane.f32.xlu0 %v3230
        %v3254 = vpop.xlane.xlu0 %3253
        %3255 = vmax.xlane.f32.xlu0 %v3231
        %v3256 = vpop.xlane.xlu0 %3255
        %3257 = vmax.xlane.f32.xlu0 %v3232
        %v3258 = vpop.xlane.xlu0 %3257
        %3259 = vmax.xlane.f32.xlu0 %v3233
        %v3260 = vpop.xlane.xlu0 %3259
        %3261 = vmax.xlane.f32.xlu0 %v3234
        %v3262 = vpop.xlane.xlu0 %3261
        %3263 = vmax.xlane.f32.xlu0 %v3235
        %v3264 = vpop.xlane.xlu0 %3263
        %3265 = vmax.xlane.f32.xlu0 %v3236
        %v3266 = vpop.xlane.xlu0 %3265
        %3267 = vmax.xlane.f32.xlu0 %v3237
        %v3268 = vpop.xlane.xlu0 %3267
        %3269 = vmax.xlane.f32.xlu0 %v3238
        %v3270 = vpop.xlane.xlu0 %3269
        %v3271 = vsub.f32 %v3223, %v3240
        %v3272 = vsub.f32 %v3224, %v3242
        %v3273 = vsub.f32 %v3225, %v3244
        %v3274 = vsub.f32 %v3226, %v3246
        %v3275 = vsub.f32 %v3227, %v3248
        %v3276 = vsub.f32 %v3228, %v3250
        %v3277 = vsub.f32 %v3229, %v3252
        %v3278 = vsub.f32 %v3230, %v3254
        %v3279 = vsub.f32 %v3231, %v3256
        %v3280 = vsub.f32 %v3232, %v3258
        %v3281 = vsub.f32 %v3233, %v3260
        %v3282 = vsub.f32 %v3234, %v3262
        %v3283 = vsub.f32 %v3235, %v3264
        %v3284 = vsub.f32 %v3236, %v3266
        %v3285 = vsub.f32 %v3237, %v3268
        %v3286 = vsub.f32 %v3238, %v3270
        %v3287 = vmul.f32 %v3271, 1.442695
        %v3288 = vpow.pop %v3287
        %v3289 = vmul.f32 %v3272, 1.442695
        %v3290 = vpow.pop %v3289
        %v3291 = vmul.f32 %v3273, 1.442695
        %v3292 = vpow.pop %v3291
        %v3293 = vmul.f32 %v3274, 1.442695
        %v3294 = vpow.pop %v3293
        %v3295 = vmul.f32 %v3275, 1.442695
        %v3296 = vpow.pop %v3295
        %v3297 = vmul.f32 %v3276, 1.442695
        %v3298 = vpow.pop %v3297
        %v3299 = vmul.f32 %v3277, 1.442695
        %v3300 = vpow.pop %v3299
        %v3301 = vmul.f32 %v3278, 1.442695
        %v3302 = vpow.pop %v3301
        %v3303 = vmul.f32 %v3279, 1.442695
        %v3304 = vpow.pop %v3303
        %v3305 = vmul.f32 %v3280, 1.442695
        %v3306 = vpow.pop %v3305
        %v3307 = vmul.f32 %v3281, 1.442695
        %v3308 = vpow.pop %v3307
        %v3309 = vmul.f32 %v3282, 1.442695
        %v3310 = vpow.pop %v3309
        %v3311 = vmul.f32 %v3283, 1.442695
        %v3312 = vpow.pop %v3311
        %v3313 = vmul.f32 %v3284, 1.442695
        %v3314 = vpow.pop %v3313
        %v3315 = vmul.f32 %v3285, 1.442695
        %v3316 = vpow.pop %v3315
        %v3317 = vmul.f32 %v3286, 1.442695
        %v3318 = vpow.pop %v3317
        %3319 = vadd.xlane.f32.xlu0 %v3288
        %v3320 = vpop.xlane.xlu0 %3319
        %3321 = vadd.xlane.f32.xlu0 %v3290
        %v3322 = vpop.xlane.xlu0 %3321
        %3323 = vadd.xlane.f32.xlu0 %v3292
        %v3324 = vpop.xlane.xlu0 %3323
        %3325 = vadd.xlane.f32.xlu0 %v3294
        %v3326 = vpop.xlane.xlu0 %3325
        %3327 = vadd.xlane.f32.xlu0 %v3296
        %v3328 = vpop.xlane.xlu0 %3327
        %3329 = vadd.xlane.f32.xlu0 %v3298
        %v3330 = vpop.xlane.xlu0 %3329
        %3331 = vadd.xlane.f32.xlu0 %v3300
        %v3332 = vpop.xlane.xlu0 %3331
        %3333 = vadd.xlane.f32.xlu0 %v3302
        %v3334 = vpop.xlane.xlu0 %3333
        %3335 = vadd.xlane.f32.xlu0 %v3304
        %v3336 = vpop.xlane.xlu0 %3335
        %3337 = vadd.xlane.f32.xlu0 %v3306
        %v3338 = vpop.xlane.xlu0 %3337
        %3339 = vadd.xlane.f32.xlu0 %v3308
        %v3340 = vpop.xlane.xlu0 %3339
        %3341 = vadd.xlane.f32.xlu0 %v3310
        %v3342 = vpop.xlane.xlu0 %3341
        %3343 = vadd.xlane.f32.xlu0 %v3312
        %v3344 = vpop.xlane.xlu0 %3343
        %3345 = vadd.xlane.f32.xlu0 %v3314
        %v3346 = vpop.xlane.xlu0 %3345
        %3347 = vadd.xlane.f32.xlu0 %v3316
        %v3348 = vpop.xlane.xlu0 %3347
        %3349 = vadd.xlane.f32.xlu0 %v3318
        %v3350 = vpop.xlane.xlu0 %3349
        %v3351 = vrcp.pop %v3320
        %v3352 = vrcp.pop %v3322
        %v3353 = vrcp.pop %v3324
        %v3354 = vrcp.pop %v3326
        %v3355 = vrcp.pop %v3328
        %v3356 = vrcp.pop %v3330
        %v3357 = vrcp.pop %v3332
        %v3358 = vrcp.pop %v3334
        %v3359 = vrcp.pop %v3336
        %v3360 = vrcp.pop %v3338
        %v3361 = vrcp.pop %v3340
        %v3362 = vrcp.pop %v3342
        %v3363 = vrcp.pop %v3344
        %v3364 = vrcp.pop %v3346
        %v3365 = vrcp.pop %v3348
        %v3366 = vrcp.pop %v3350
        %v3367 = vmul.f32 %v3288, %v3351
        %v3368 = vmul.f32 %v3290, %v3352
        %v3369 = vmul.f32 %v3292, %v3353
        %v3370 = vmul.f32 %v3294, %v3354
        %v3371 = vmul.f32 %v3296, %v3355
        %v3372 = vmul.f32 %v3298, %v3356
        %v3373 = vmul.f32 %v3300, %v3357
        %v3374 = vmul.f32 %v3302, %v3358
        %v3375 = vmul.f32 %v3304, %v3359
        %v3376 = vmul.f32 %v3306, %v3360
        %v3377 = vmul.f32 %v3308, %v3361
        %v3378 = vmul.f32 %v3310, %v3362
        %v3379 = vmul.f32 %v3312, %v3363
        %v3380 = vmul.f32 %v3314, %v3364
        %v3381 = vmul.f32 %v3316, %v3365
        %v3382 = vmul.f32 %v3318, %v3366
        %v3383 = vpack.c.bf16 %v3368, %v3367
        %v3384 = vpack.c.bf16 %v3370, %v3369
        %v3385 = vpack.c.bf16 %v3372, %v3371
        %v3386 = vpack.c.bf16 %v3374, %v3373
        %v3387 = vpack.c.bf16 %v3376, %v3375
        %v3388 = vpack.c.bf16 %v3378, %v3377
        %v3389 = vpack.c.bf16 %v3380, %v3379
        %v3390 = vpack.c.bf16 %v3382, %v3381
        %3391 = vxpose.xlu0.b32.start [1/16] %v3223, 128
        %3392 = vxpose.xlu0.b32.cont [2/16] %v3224, 128
        %3393 = vxpose.xlu0.b32.cont [3/16] %v3225, 128
        %3394 = vxpose.xlu0.b32.cont [4/16] %v3226, 128
        %3395 = vxpose.xlu0.b32.cont [5/16] %v3227, 128
        %3396 = vxpose.xlu0.b32.cont [6/16] %v3228, 128
        %3397 = vxpose.xlu0.b32.cont [7/16] %v3229, 128
        %3398 = vxpose.xlu0.b32.cont [8/16] %v3230, 128
        %3399 = vxpose.xlu0.b32.cont [9/16] %v3231, 128
        %3400 = vxpose.xlu0.b32.cont [10/16] %v3232, 128
        %3401 = vxpose.xlu0.b32.cont [11/16] %v3233, 128
        %3402 = vxpose.xlu0.b32.cont [12/16] %v3234, 128
        %3403 = vxpose.xlu0.b32.cont [13/16] %v3235, 128
        %3404 = vxpose.xlu0.b32.cont [14/16] %v3236, 128
        %3405 = vxpose.xlu0.b32.cont [15/16] %v3237, 128
        %3406 = vxpose.xlu0.b32.end [16/16] %v3238, 128
        %v3407 = vpop.trf.xlu0
        %v3408 = vpop.trf.xlu0
        %v3409 = vpop.trf.xlu0
        %v3410 = vpop.trf.xlu0
        %v3411 = vpop.trf.xlu0
        %v3412 = vpop.trf.xlu0
        %v3413 = vpop.trf.xlu0
        %v3414 = vpop.trf.xlu0
        %v3415 = vpop.trf.xlu0
        %v3416 = vpop.trf.xlu0
        %v3417 = vpop.trf.xlu0
        %v3418 = vpop.trf.xlu0
        %v3419 = vpop.trf.xlu0
        %v3420 = vpop.trf.xlu0
        %v3421 = vpop.trf.xlu0
        %v3422 = vpop.trf.xlu0
        %3423 = vmax.xlane.f32.xlu0 %v3407
        %v3424 = vpop.xlane.xlu0 %3423
        %3425 = vmax.xlane.f32.xlu0 %v3408
        %v3426 = vpop.xlane.xlu0 %3425
        %3427 = vmax.xlane.f32.xlu0 %v3409
        %v3428 = vpop.xlane.xlu0 %3427
        %3429 = vmax.xlane.f32.xlu0 %v3410
        %v3430 = vpop.xlane.xlu0 %3429
        %3431 = vmax.xlane.f32.xlu0 %v3411
        %v3432 = vpop.xlane.xlu0 %3431
        %3433 = vmax.xlane.f32.xlu0 %v3412
        %v3434 = vpop.xlane.xlu0 %3433
        %3435 = vmax.xlane.f32.xlu0 %v3413
        %v3436 = vpop.xlane.xlu0 %3435
        %3437 = vmax.xlane.f32.xlu0 %v3414
        %v3438 = vpop.xlane.xlu0 %3437
        %3439 = vmax.xlane.f32.xlu0 %v3415
        %v3440 = vpop.xlane.xlu0 %3439
        %3441 = vmax.xlane.f32.xlu0 %v3416
        %v3442 = vpop.xlane.xlu0 %3441
        %3443 = vmax.xlane.f32.xlu0 %v3417
        %v3444 = vpop.xlane.xlu0 %3443
        %3445 = vmax.xlane.f32.xlu0 %v3418
        %v3446 = vpop.xlane.xlu0 %3445
        %3447 = vmax.xlane.f32.xlu0 %v3419
        %v3448 = vpop.xlane.xlu0 %3447
        %3449 = vmax.xlane.f32.xlu0 %v3420
        %v3450 = vpop.xlane.xlu0 %3449
        %3451 = vmax.xlane.f32.xlu0 %v3421
        %v3452 = vpop.xlane.xlu0 %3451
        %3453 = vmax.xlane.f32.xlu0 %v3422
        %v3454 = vpop.xlane.xlu0 %3453
        %v3455 = vsub.f32 %v3407, %v3424
        %v3456 = vsub.f32 %v3408, %v3426
        %v3457 = vsub.f32 %v3409, %v3428
        %v3458 = vsub.f32 %v3410, %v3430
        %v3459 = vsub.f32 %v3411, %v3432
        %v3460 = vsub.f32 %v3412, %v3434
        %v3461 = vsub.f32 %v3413, %v3436
        %v3462 = vsub.f32 %v3414, %v3438
        %v3463 = vsub.f32 %v3415, %v3440
        %v3464 = vsub.f32 %v3416, %v3442
        %v3465 = vsub.f32 %v3417, %v3444
        %v3466 = vsub.f32 %v3418, %v3446
        %v3467 = vsub.f32 %v3419, %v3448
        %v3468 = vsub.f32 %v3420, %v3450
        %v3469 = vsub.f32 %v3421, %v3452
        %v3470 = vsub.f32 %v3422, %v3454
        %v3471 = vmax.f32 %v3455, -50000.0
        %v3472 = vmax.f32 %v3456, -50000.0
        %v3473 = vmax.f32 %v3457, -50000.0
        %v3474 = vmax.f32 %v3458, -50000.0
        %v3475 = vmax.f32 %v3459, -50000.0
        %v3476 = vmax.f32 %v3460, -50000.0
        %v3477 = vmax.f32 %v3461, -50000.0
        %v3478 = vmax.f32 %v3462, -50000.0
        %v3479 = vmax.f32 %v3463, -50000.0
        %v3480 = vmax.f32 %v3464, -50000.0
        %v3481 = vmax.f32 %v3465, -50000.0
        %v3482 = vmax.f32 %v3466, -50000.0
        %v3483 = vmax.f32 %v3467, -50000.0
        %v3484 = vmax.f32 %v3468, -50000.0
        %v3485 = vmax.f32 %v3469, -50000.0
        %v3486 = vmax.f32 %v3470, -50000.0
        %v3487 = vmin.f32 %v3471, 50000.0
        %v3488 = vmin.f32 %v3472, 50000.0
        %v3489 = vmin.f32 %v3473, 50000.0
        %v3490 = vmin.f32 %v3474, 50000.0
        %v3491 = vmin.f32 %v3475, 50000.0
        %v3492 = vmin.f32 %v3476, 50000.0
        %v3493 = vmin.f32 %v3477, 50000.0
        %v3494 = vmin.f32 %v3478, 50000.0
        %v3495 = vmin.f32 %v3479, 50000.0
        %v3496 = vmin.f32 %v3480, 50000.0
        %v3497 = vmin.f32 %v3481, 50000.0
        %v3498 = vmin.f32 %v3482, 50000.0
        %v3499 = vmin.f32 %v3483, 50000.0
        %v3500 = vmin.f32 %v3484, 50000.0
        %v3501 = vmin.f32 %v3485, 50000.0
        %v3502 = vmin.f32 %v3486, 50000.0
        %v3503 = vmul.f32 %v3487, 1.442695
        %v3504 = vpow.pop %v3503
        %v3505 = vmul.f32 %v3488, 1.442695
        %v3506 = vpow.pop %v3505
        %v3507 = vmul.f32 %v3489, 1.442695
        %v3508 = vpow.pop %v3507
        %v3509 = vmul.f32 %v3490, 1.442695
        %v3510 = vpow.pop %v3509
        %v3511 = vmul.f32 %v3491, 1.442695
        %v3512 = vpow.pop %v3511
        %v3513 = vmul.f32 %v3492, 1.442695
        %v3514 = vpow.pop %v3513
        %v3515 = vmul.f32 %v3493, 1.442695
        %v3516 = vpow.pop %v3515
        %v3517 = vmul.f32 %v3494, 1.442695
        %v3518 = vpow.pop %v3517
        %v3519 = vmul.f32 %v3495, 1.442695
        %v3520 = vpow.pop %v3519
        %v3521 = vmul.f32 %v3496, 1.442695
        %v3522 = vpow.pop %v3521
        %v3523 = vmul.f32 %v3497, 1.442695
        %v3524 = vpow.pop %v3523
        %v3525 = vmul.f32 %v3498, 1.442695
        %v3526 = vpow.pop %v3525
        %v3527 = vmul.f32 %v3499, 1.442695
        %v3528 = vpow.pop %v3527
        %v3529 = vmul.f32 %v3500, 1.442695
        %v3530 = vpow.pop %v3529
        %v3531 = vmul.f32 %v3501, 1.442695
        %v3532 = vpow.pop %v3531
        %v3533 = vmul.f32 %v3502, 1.442695
        %v3534 = vpow.pop %v3533
        %3535 = vadd.xlane.f32.xlu0 %v3504
        %v3536 = vpop.xlane.xlu0 %3535
        %3537 = vadd.xlane.f32.xlu0 %v3506
        %v3538 = vpop.xlane.xlu0 %3537
        %3539 = vadd.xlane.f32.xlu0 %v3508
        %v3540 = vpop.xlane.xlu0 %3539
        %3541 = vadd.xlane.f32.xlu0 %v3510
        %v3542 = vpop.xlane.xlu0 %3541
        %3543 = vadd.xlane.f32.xlu0 %v3512
        %v3544 = vpop.xlane.xlu0 %3543
        %3545 = vadd.xlane.f32.xlu0 %v3514
        %v3546 = vpop.xlane.xlu0 %3545
        %3547 = vadd.xlane.f32.xlu0 %v3516
        %v3548 = vpop.xlane.xlu0 %3547
        %3549 = vadd.xlane.f32.xlu0 %v3518
        %v3550 = vpop.xlane.xlu0 %3549
        %3551 = vadd.xlane.f32.xlu0 %v3520
        %v3552 = vpop.xlane.xlu0 %3551
        %3553 = vadd.xlane.f32.xlu0 %v3522
        %v3554 = vpop.xlane.xlu0 %3553
        %3555 = vadd.xlane.f32.xlu0 %v3524
        %v3556 = vpop.xlane.xlu0 %3555
        %3557 = vadd.xlane.f32.xlu0 %v3526
        %v3558 = vpop.xlane.xlu0 %3557
        %3559 = vadd.xlane.f32.xlu0 %v3528
        %v3560 = vpop.xlane.xlu0 %3559
        %3561 = vadd.xlane.f32.xlu0 %v3530
        %v3562 = vpop.xlane.xlu0 %3561
        %3563 = vadd.xlane.f32.xlu0 %v3532
        %v3564 = vpop.xlane.xlu0 %3563
        %3565 = vadd.xlane.f32.xlu0 %v3534
        %v3566 = vpop.xlane.xlu0 %3565
        %v3567 = vrcp.pop %v3536
        %v3568 = vrcp.pop %v3538
        %v3569 = vrcp.pop %v3540
        %v3570 = vrcp.pop %v3542
        %v3571 = vrcp.pop %v3544
        %v3572 = vrcp.pop %v3546
        %v3573 = vrcp.pop %v3548
        %v3574 = vrcp.pop %v3550
        %v3575 = vrcp.pop %v3552
        %v3576 = vrcp.pop %v3554
        %v3577 = vrcp.pop %v3556
        %v3578 = vrcp.pop %v3558
        %v3579 = vrcp.pop %v3560
        %v3580 = vrcp.pop %v3562
        %v3581 = vrcp.pop %v3564
        %v3582 = vrcp.pop %v3566
        %v3583 = vmul.f32 %v3504, %v3567
        %v3584 = vmul.f32 %v3506, %v3568
        %v3585 = vmul.f32 %v3508, %v3569
        %v3586 = vmul.f32 %v3510, %v3570
        %v3587 = vmul.f32 %v3512, %v3571
        %v3588 = vmul.f32 %v3514, %v3572
        %v3589 = vmul.f32 %v3516, %v3573
        %v3590 = vmul.f32 %v3518, %v3574
        %v3591 = vmul.f32 %v3520, %v3575
        %v3592 = vmul.f32 %v3522, %v3576
        %v3593 = vmul.f32 %v3524, %v3577
        %v3594 = vmul.f32 %v3526, %v3578
        %v3595 = vmul.f32 %v3528, %v3579
        %v3596 = vmul.f32 %v3530, %v3580
        %v3597 = vmul.f32 %v3532, %v3581
        %v3598 = vmul.f32 %v3534, %v3582
        %v3599 = vpack.c.bf16 %v3584, %v3583
        %v3600 = vpack.c.bf16 %v3586, %v3585
        %v3601 = vpack.c.bf16 %v3588, %v3587
        %v3602 = vpack.c.bf16 %v3590, %v3589
        %v3603 = vpack.c.bf16 %v3592, %v3591
        %v3604 = vpack.c.bf16 %v3594, %v3593
        %v3605 = vpack.c.bf16 %v3596, %v3595
        %v3606 = vpack.c.bf16 %v3598, %v3597
        %3607 = vrot.lane.b32.xlu0 %v1518, 32
        %v3608 = vpop.permute.xlu0 %3607
        %3609 = vrot.lane.b32.xlu0 %v1519, 32
        %v3610 = vpop.permute.xlu0 %3609
        %3611 = vrot.lane.b32.xlu0 %v1520, 32
        %v3612 = vpop.permute.xlu0 %3611
        %3613 = vrot.lane.b32.xlu0 %v1521, 32
        %v3614 = vpop.permute.xlu0 %3613
        %3615 = vrot.lane.b32.xlu0 %v1522, 32
        %v3616 = vpop.permute.xlu0 %3615
        %3617 = vrot.lane.b32.xlu0 %v1523, 32
        %v3618 = vpop.permute.xlu0 %3617
        %3619 = vrot.lane.b32.xlu0 %v1524, 32
        %v3620 = vpop.permute.xlu0 %3619
        %3621 = vrot.lane.b32.xlu0 %v1525, 32
        %v3622 = vpop.permute.xlu0 %3621
        %3631 = vmatpush.bf16.msra.mxu0 %v3622
        %3632 = vmatpush.bf16.msra.mxu0 %v3620
        %3633 = vmatpush.bf16.msra.mxu0 %v3618
        %3634 = vmatpush.bf16.msra.mxu0 %v3616
        %3635 = vmatpush.bf16.msra.mxu0 %v3614
        %3636 = vmatpush.bf16.msra.mxu0 %v3612
        %3637 = vmatpush.bf16.msra.mxu0 %v3610
        %3638 = vmatpush.bf16.msra.mxu0 %v3608
        %3639 = vmatmul.bf16.gmra.mxu0 %v3383
        %v3640 = vpop.f32.mrf.mxu0
        %v3641 = vadd.f32 0.0, %v3640
        %v3642 = vpop.f32.mrf.mxu0
        %v3643 = vadd.f32 0.0, %v3642
        %3644 = vmatmul.bf16.gmra.mxu0 %v3384
        %v3645 = vpop.f32.mrf.mxu0
        %v3646 = vadd.f32 0.0, %v3645
        %v3647 = vpop.f32.mrf.mxu0
        %v3648 = vadd.f32 0.0, %v3647
        %3649 = vmatmul.bf16.gmra.mxu0 %v3385
        %v3650 = vpop.f32.mrf.mxu0
        %v3651 = vadd.f32 0.0, %v3650
        %v3652 = vpop.f32.mrf.mxu0
        %v3653 = vadd.f32 0.0, %v3652
        %3654 = vmatmul.bf16.gmra.mxu0 %v3386
        %v3655 = vpop.f32.mrf.mxu0
        %v3656 = vadd.f32 0.0, %v3655
        %v3657 = vpop.f32.mrf.mxu0
        %v3658 = vadd.f32 0.0, %v3657
        %3659 = vmatmul.bf16.gmra.mxu0 %v3387
        %v3660 = vpop.f32.mrf.mxu0
        %v3661 = vadd.f32 0.0, %v3660
        %v3662 = vpop.f32.mrf.mxu0
        %v3663 = vadd.f32 0.0, %v3662
        %3664 = vmatmul.bf16.gmra.mxu0 %v3388
        %v3665 = vpop.f32.mrf.mxu0
        %v3666 = vadd.f32 0.0, %v3665
        %v3667 = vpop.f32.mrf.mxu0
        %v3668 = vadd.f32 0.0, %v3667
        %3669 = vmatmul.bf16.gmra.mxu0 %v3389
        %v3670 = vpop.f32.mrf.mxu0
        %v3671 = vadd.f32 0.0, %v3670
        %v3672 = vpop.f32.mrf.mxu0
        %v3673 = vadd.f32 0.0, %v3672
        %3674 = vmatmul.bf16.gmra.mxu0 %v3390
        %v3675 = vpop.f32.mrf.mxu0
        %v3676 = vadd.f32 0.0, %v3675
        %v3677 = vpop.f32.mrf.mxu0
        %v3678 = vadd.f32 0.0, %v3677
        %3679 = vdwg.mxu0
        %3680 = vrot.lane.b32.xlu0 %v1615, 32
        %v3681 = vpop.permute.xlu0 %3680
        %3682 = vrot.lane.b32.xlu0 %v1616, 32
        %v3683 = vpop.permute.xlu0 %3682
        %3684 = vrot.lane.b32.xlu0 %v1617, 32
        %v3685 = vpop.permute.xlu0 %3684
        %3686 = vrot.lane.b32.xlu0 %v1618, 32
        %v3687 = vpop.permute.xlu0 %3686
        %3688 = vrot.lane.b32.xlu0 %v1619, 32
        %v3689 = vpop.permute.xlu0 %3688
        %3690 = vrot.lane.b32.xlu0 %v1620, 32
        %v3691 = vpop.permute.xlu0 %3690
        %3692 = vrot.lane.b32.xlu0 %v1621, 32
        %v3693 = vpop.permute.xlu0 %3692
        %3694 = vrot.lane.b32.xlu0 %v1622, 32
        %v3695 = vpop.permute.xlu0 %3694
        %3704 = vmatpush.bf16.msra.mxu0 %v3695
        %3705 = vmatpush.bf16.msra.mxu0 %v3693
        %3706 = vmatpush.bf16.msra.mxu0 %v3691
        %3707 = vmatpush.bf16.msra.mxu0 %v3689
        %3708 = vmatpush.bf16.msra.mxu0 %v3687
        %3709 = vmatpush.bf16.msra.mxu0 %v3685
        %3710 = vmatpush.bf16.msra.mxu0 %v3683
        %3711 = vmatpush.bf16.msra.mxu0 %v3681
        %3712 = vmatmul.bf16.gmra.mxu0 %v3599
        %v3713 = vpop.f32.mrf.mxu0
        %v3714 = vadd.f32 0.0, %v3713
        %v3715 = vpop.f32.mrf.mxu0
        %v3716 = vadd.f32 0.0, %v3715
        %3717 = vmatmul.bf16.gmra.mxu0 %v3600
        %v3718 = vpop.f32.mrf.mxu0
        %v3719 = vadd.f32 0.0, %v3718
        %v3720 = vpop.f32.mrf.mxu0
        %v3721 = vadd.f32 0.0, %v3720
        %3722 = vmatmul.bf16.gmra.mxu0 %v3601
        %v3723 = vpop.f32.mrf.mxu0
        %v3724 = vadd.f32 0.0, %v3723
        %v3725 = vpop.f32.mrf.mxu0
        %v3726 = vadd.f32 0.0, %v3725
        %3727 = vmatmul.bf16.gmra.mxu0 %v3602
        %v3728 = vpop.f32.mrf.mxu0
        %v3729 = vadd.f32 0.0, %v3728
        %v3730 = vpop.f32.mrf.mxu0
        %v3731 = vadd.f32 0.0, %v3730
        %3732 = vmatmul.bf16.gmra.mxu0 %v3603
        %v3733 = vpop.f32.mrf.mxu0
        %v3734 = vadd.f32 0.0, %v3733
        %v3735 = vpop.f32.mrf.mxu0
        %v3736 = vadd.f32 0.0, %v3735
        %3737 = vmatmul.bf16.gmra.mxu0 %v3604
        %v3738 = vpop.f32.mrf.mxu0
        %v3739 = vadd.f32 0.0, %v3738
        %v3740 = vpop.f32.mrf.mxu0
        %v3741 = vadd.f32 0.0, %v3740
        %3742 = vmatmul.bf16.gmra.mxu0 %v3605
        %v3743 = vpop.f32.mrf.mxu0
        %v3744 = vadd.f32 0.0, %v3743
        %v3745 = vpop.f32.mrf.mxu0
        %v3746 = vadd.f32 0.0, %v3745
        %3747 = vmatmul.bf16.gmra.mxu0 %v3606
        %v3748 = vpop.f32.mrf.mxu0
        %v3749 = vadd.f32 0.0, %v3748
        %v3750 = vpop.f32.mrf.mxu0
        %v3751 = vadd.f32 0.0, %v3750
        %3752 = vdwg.mxu0
        %3769 = vrot.lane.b32.xlu0 %v2259, 32
        %v3770 = vpop.permute.xlu0 %3769
        %3771 = vrot.lane.b32.xlu0 %v2261, 32
        %v3772 = vpop.permute.xlu0 %3771
        %3773 = vrot.lane.b32.xlu0 %v2264, 32
        %v3774 = vpop.permute.xlu0 %3773
        %3775 = vrot.lane.b32.xlu0 %v2266, 32
        %v3776 = vpop.permute.xlu0 %3775
        %3777 = vrot.lane.b32.xlu0 %v2269, 32
        %v3778 = vpop.permute.xlu0 %3777
        %3779 = vrot.lane.b32.xlu0 %v2271, 32
        %v3780 = vpop.permute.xlu0 %3779
        %3781 = vrot.lane.b32.xlu0 %v2274, 32
        %v3782 = vpop.permute.xlu0 %3781
        %3783 = vrot.lane.b32.xlu0 %v2276, 32
        %v3784 = vpop.permute.xlu0 %3783
        %3785 = vrot.lane.b32.xlu0 %v2279, 32
        %v3786 = vpop.permute.xlu0 %3785
        %3787 = vrot.lane.b32.xlu0 %v2281, 32
        %v3788 = vpop.permute.xlu0 %3787
        %3789 = vrot.lane.b32.xlu0 %v2284, 32
        %v3790 = vpop.permute.xlu0 %3789
        %3791 = vrot.lane.b32.xlu0 %v2286, 32
        %v3792 = vpop.permute.xlu0 %3791
        %3793 = vrot.lane.b32.xlu0 %v2289, 32
        %v3794 = vpop.permute.xlu0 %3793
        %3795 = vrot.lane.b32.xlu0 %v2291, 32
        %v3796 = vpop.permute.xlu0 %3795
        %3797 = vrot.lane.b32.xlu0 %v2294, 32
        %v3798 = vpop.permute.xlu0 %3797
        %3799 = vrot.lane.b32.xlu0 %v2296, 32
        %v3800 = vpop.permute.xlu0 %3799
        %3833 = vrot.lane.b32.xlu0 %v2950, 64
        %v3834 = vpop.permute.xlu0 %3833
        %3835 = vrot.lane.b32.xlu0 %v2952, 64
        %v3836 = vpop.permute.xlu0 %3835
        %3837 = vrot.lane.b32.xlu0 %v2955, 64
        %v3838 = vpop.permute.xlu0 %3837
        %3839 = vrot.lane.b32.xlu0 %v2957, 64
        %v3840 = vpop.permute.xlu0 %3839
        %3841 = vrot.lane.b32.xlu0 %v2960, 64
        %v3842 = vpop.permute.xlu0 %3841
        %3843 = vrot.lane.b32.xlu0 %v2962, 64
        %v3844 = vpop.permute.xlu0 %3843
        %3845 = vrot.lane.b32.xlu0 %v2965, 64
        %v3846 = vpop.permute.xlu0 %3845
        %3847 = vrot.lane.b32.xlu0 %v2967, 64
        %v3848 = vpop.permute.xlu0 %3847
        %3849 = vrot.lane.b32.xlu0 %v2970, 64
        %v3850 = vpop.permute.xlu0 %3849
        %3851 = vrot.lane.b32.xlu0 %v2972, 64
        %v3852 = vpop.permute.xlu0 %3851
        %3853 = vrot.lane.b32.xlu0 %v2975, 64
        %v3854 = vpop.permute.xlu0 %3853
        %3855 = vrot.lane.b32.xlu0 %v2977, 64
        %v3856 = vpop.permute.xlu0 %3855
        %3857 = vrot.lane.b32.xlu0 %v2980, 64
        %v3858 = vpop.permute.xlu0 %3857
        %3859 = vrot.lane.b32.xlu0 %v2982, 64
        %v3860 = vpop.permute.xlu0 %3859
        %3861 = vrot.lane.b32.xlu0 %v2985, 64
        %v3862 = vpop.permute.xlu0 %3861
        %3863 = vrot.lane.b32.xlu0 %v2987, 64
        %v3864 = vpop.permute.xlu0 %3863
        %3897 = vrot.lane.b32.xlu0 %v3641, 96
        %v3898 = vpop.permute.xlu0 %3897
        %3899 = vrot.lane.b32.xlu0 %v3643, 96
        %v3900 = vpop.permute.xlu0 %3899
        %3901 = vrot.lane.b32.xlu0 %v3646, 96
        %v3902 = vpop.permute.xlu0 %3901
        %3903 = vrot.lane.b32.xlu0 %v3648, 96
        %v3904 = vpop.permute.xlu0 %3903
        %3905 = vrot.lane.b32.xlu0 %v3651, 96
        %v3906 = vpop.permute.xlu0 %3905
        %3907 = vrot.lane.b32.xlu0 %v3653, 96
        %v3908 = vpop.permute.xlu0 %3907
        %3909 = vrot.lane.b32.xlu0 %v3656, 96
        %v3910 = vpop.permute.xlu0 %3909
        %3911 = vrot.lane.b32.xlu0 %v3658, 96
        %v3912 = vpop.permute.xlu0 %3911
        %3913 = vrot.lane.b32.xlu0 %v3661, 96
        %v3914 = vpop.permute.xlu0 %3913
        %3915 = vrot.lane.b32.xlu0 %v3663, 96
        %v3916 = vpop.permute.xlu0 %3915
        %3917 = vrot.lane.b32.xlu0 %v3666, 96
        %v3918 = vpop.permute.xlu0 %3917
        %3919 = vrot.lane.b32.xlu0 %v3668, 96
        %v3920 = vpop.permute.xlu0 %3919
        %3921 = vrot.lane.b32.xlu0 %v3671, 96
        %v3922 = vpop.permute.xlu0 %3921
        %3923 = vrot.lane.b32.xlu0 %v3673, 96
        %v3924 = vpop.permute.xlu0 %3923
        %3925 = vrot.lane.b32.xlu0 %v3676, 96
        %v3926 = vpop.permute.xlu0 %3925
        %3927 = vrot.lane.b32.xlu0 %v3678, 96
        %v3928 = vpop.permute.xlu0 %3927
        %v3945 = vsel %vm966, %v1544, %v3770
        %v3946 = vsel %vm966, %v1546, %v3772
        %v3947 = vsel %vm966, %v1549, %v3774
        %v3948 = vsel %vm966, %v1551, %v3776
        %v3949 = vsel %vm966, %v1554, %v3778
        %v3950 = vsel %vm966, %v1556, %v3780
        %v3951 = vsel %vm966, %v1559, %v3782
        %v3952 = vsel %vm966, %v1561, %v3784
        %v3953 = vsel %vm966, %v1564, %v3786
        %v3954 = vsel %vm966, %v1566, %v3788
        %v3955 = vsel %vm966, %v1569, %v3790
        %v3956 = vsel %vm966, %v1571, %v3792
        %v3957 = vsel %vm966, %v1574, %v3794
        %v3958 = vsel %vm966, %v1576, %v3796
        %v3959 = vsel %vm966, %v1579, %v3798
        %v3960 = vsel %vm966, %v1581, %v3800
        %vm3961 = vcmask 523264
        %v3962 = vsel %vm3961, %v3945, %v3834
        %v3963 = vsel %vm3961, %v3946, %v3836
        %v3964 = vsel %vm3961, %v3947, %v3838
        %v3965 = vsel %vm3961, %v3948, %v3840
        %v3966 = vsel %vm3961, %v3949, %v3842
        %v3967 = vsel %vm3961, %v3950, %v3844
        %v3968 = vsel %vm3961, %v3951, %v3846
        %v3969 = vsel %vm3961, %v3952, %v3848
        %v3970 = vsel %vm3961, %v3953, %v3850
        %v3971 = vsel %vm3961, %v3954, %v3852
        %v3972 = vsel %vm3961, %v3955, %v3854
        %v3973 = vsel %vm3961, %v3956, %v3856
        %v3974 = vsel %vm3961, %v3957, %v3858
        %v3975 = vsel %vm3961, %v3958, %v3860
        %v3976 = vsel %vm3961, %v3959, %v3862
        %v3977 = vsel %vm3961, %v3960, %v3864
        %vm3978 = vcmask 785408
        %v3979 = vsel %vm3978, %v3962, %v3898
        %v3980 = vsel %vm3978, %v3963, %v3900
        %v3981 = vsel %vm3978, %v3964, %v3902
        %v3982 = vsel %vm3978, %v3965, %v3904
        %v3983 = vsel %vm3978, %v3966, %v3906
        %v3984 = vsel %vm3978, %v3967, %v3908
        %v3985 = vsel %vm3978, %v3968, %v3910
        %v3986 = vsel %vm3978, %v3969, %v3912
        %v3987 = vsel %vm3978, %v3970, %v3914
        %v3988 = vsel %vm3978, %v3971, %v3916
        %v3989 = vsel %vm3978, %v3972, %v3918
        %v3990 = vsel %vm3978, %v3973, %v3920
        %v3991 = vsel %vm3978, %v3974, %v3922
        %v3992 = vsel %vm3978, %v3975, %v3924
        %v3993 = vsel %vm3978, %v3976, %v3926
        %v3994 = vsel %vm3978, %v3977, %v3928
        %v3995 = vpack.c.bf16 %v3980, %v3979
        %v3996 = vpack.c.bf16 %v3982, %v3981
        %v3997 = vpack.c.bf16 %v3984, %v3983
        %v3998 = vpack.c.bf16 %v3986, %v3985
        %v3999 = vpack.c.bf16 %v3988, %v3987
        %v4000 = vpack.c.bf16 %v3990, %v3989
        %v4001 = vpack.c.bf16 %v3992, %v3991
        %v4002 = vpack.c.bf16 %v3994, %v3993
        %4019 = vrot.lane.b32.xlu0 %v2332, 32
        %v4020 = vpop.permute.xlu0 %4019
        %4021 = vrot.lane.b32.xlu0 %v2334, 32
        %v4022 = vpop.permute.xlu0 %4021
        %4023 = vrot.lane.b32.xlu0 %v2337, 32
        %v4024 = vpop.permute.xlu0 %4023
        %4025 = vrot.lane.b32.xlu0 %v2339, 32
        %v4026 = vpop.permute.xlu0 %4025
        %4027 = vrot.lane.b32.xlu0 %v2342, 32
        %v4028 = vpop.permute.xlu0 %4027
        %4029 = vrot.lane.b32.xlu0 %v2344, 32
        %v4030 = vpop.permute.xlu0 %4029
        %4031 = vrot.lane.b32.xlu0 %v2347, 32
        %v4032 = vpop.permute.xlu0 %4031
        %4033 = vrot.lane.b32.xlu0 %v2349, 32
        %v4034 = vpop.permute.xlu0 %4033
        %4035 = vrot.lane.b32.xlu0 %v2352, 32
        %v4036 = vpop.permute.xlu0 %4035
        %4037 = vrot.lane.b32.xlu0 %v2354, 32
        %v4038 = vpop.permute.xlu0 %4037
        %4039 = vrot.lane.b32.xlu0 %v2357, 32
        %v4040 = vpop.permute.xlu0 %4039
        %4041 = vrot.lane.b32.xlu0 %v2359, 32
        %v4042 = vpop.permute.xlu0 %4041
        %4043 = vrot.lane.b32.xlu0 %v2362, 32
        %v4044 = vpop.permute.xlu0 %4043
        %4045 = vrot.lane.b32.xlu0 %v2364, 32
        %v4046 = vpop.permute.xlu0 %4045
        %4047 = vrot.lane.b32.xlu0 %v2367, 32
        %v4048 = vpop.permute.xlu0 %4047
        %4049 = vrot.lane.b32.xlu0 %v2369, 32
        %v4050 = vpop.permute.xlu0 %4049
        %4083 = vrot.lane.b32.xlu0 %v3023, 64
        %v4084 = vpop.permute.xlu0 %4083
        %4085 = vrot.lane.b32.xlu0 %v3025, 64
        %v4086 = vpop.permute.xlu0 %4085
        %4087 = vrot.lane.b32.xlu0 %v3028, 64
        %v4088 = vpop.permute.xlu0 %4087
        %4089 = vrot.lane.b32.xlu0 %v3030, 64
        %v4090 = vpop.permute.xlu0 %4089
        %4091 = vrot.lane.b32.xlu0 %v3033, 64
        %v4092 = vpop.permute.xlu0 %4091
        %4093 = vrot.lane.b32.xlu0 %v3035, 64
        %v4094 = vpop.permute.xlu0 %4093
        %4095 = vrot.lane.b32.xlu0 %v3038, 64
        %v4096 = vpop.permute.xlu0 %4095
        %4097 = vrot.lane.b32.xlu0 %v3040, 64
        %v4098 = vpop.permute.xlu0 %4097
        %4099 = vrot.lane.b32.xlu0 %v3043, 64
        %v4100 = vpop.permute.xlu0 %4099
        %4101 = vrot.lane.b32.xlu0 %v3045, 64
        %v4102 = vpop.permute.xlu0 %4101
        %4103 = vrot.lane.b32.xlu0 %v3048, 64
        %v4104 = vpop.permute.xlu0 %4103
        %4105 = vrot.lane.b32.xlu0 %v3050, 64
        %v4106 = vpop.permute.xlu0 %4105
        %4107 = vrot.lane.b32.xlu0 %v3053, 64
        %v4108 = vpop.permute.xlu0 %4107
        %4109 = vrot.lane.b32.xlu0 %v3055, 64
        %v4110 = vpop.permute.xlu0 %4109
        %4111 = vrot.lane.b32.xlu0 %v3058, 64
        %v4112 = vpop.permute.xlu0 %4111
        %4113 = vrot.lane.b32.xlu0 %v3060, 64
        %v4114 = vpop.permute.xlu0 %4113
        %4147 = vrot.lane.b32.xlu0 %v3714, 96
        %v4148 = vpop.permute.xlu0 %4147
        %4149 = vrot.lane.b32.xlu0 %v3716, 96
        %v4150 = vpop.permute.xlu0 %4149
        %4151 = vrot.lane.b32.xlu0 %v3719, 96
        %v4152 = vpop.permute.xlu0 %4151
        %4153 = vrot.lane.b32.xlu0 %v3721, 96
        %v4154 = vpop.permute.xlu0 %4153
        %4155 = vrot.lane.b32.xlu0 %v3724, 96
        %v4156 = vpop.permute.xlu0 %4155
        %4157 = vrot.lane.b32.xlu0 %v3726, 96
        %v4158 = vpop.permute.xlu0 %4157
        %4159 = vrot.lane.b32.xlu0 %v3729, 96
        %v4160 = vpop.permute.xlu0 %4159
        %4161 = vrot.lane.b32.xlu0 %v3731, 96
        %v4162 = vpop.permute.xlu0 %4161
        %4163 = vrot.lane.b32.xlu0 %v3734, 96
        %v4164 = vpop.permute.xlu0 %4163
        %4165 = vrot.lane.b32.xlu0 %v3736, 96
        %v4166 = vpop.permute.xlu0 %4165
        %4167 = vrot.lane.b32.xlu0 %v3739, 96
        %v4168 = vpop.permute.xlu0 %4167
        %4169 = vrot.lane.b32.xlu0 %v3741, 96
        %v4170 = vpop.permute.xlu0 %4169
        %4171 = vrot.lane.b32.xlu0 %v3744, 96
        %v4172 = vpop.permute.xlu0 %4171
        %4173 = vrot.lane.b32.xlu0 %v3746, 96
        %v4174 = vpop.permute.xlu0 %4173
        %4175 = vrot.lane.b32.xlu0 %v3749, 96
        %v4176 = vpop.permute.xlu0 %4175
        %4177 = vrot.lane.b32.xlu0 %v3751, 96
        %v4178 = vpop.permute.xlu0 %4177
        %v4195 = vsel %vm966, %v1641, %v4020
        %v4196 = vsel %vm966, %v1643, %v4022
        %v4197 = vsel %vm966, %v1646, %v4024
        %v4198 = vsel %vm966, %v1648, %v4026
        %v4199 = vsel %vm966, %v1651, %v4028
        %v4200 = vsel %vm966, %v1653, %v4030
        %v4201 = vsel %vm966, %v1656, %v4032
        %v4202 = vsel %vm966, %v1658, %v4034
        %v4203 = vsel %vm966, %v1661, %v4036
        %v4204 = vsel %vm966, %v1663, %v4038
        %v4205 = vsel %vm966, %v1666, %v4040
        %v4206 = vsel %vm966, %v1668, %v4042
        %v4207 = vsel %vm966, %v1671, %v4044
        %v4208 = vsel %vm966, %v1673, %v4046
        %v4209 = vsel %vm966, %v1676, %v4048
        %v4210 = vsel %vm966, %v1678, %v4050
        %v4211 = vsel %vm3961, %v4195, %v4084
        %v4212 = vsel %vm3961, %v4196, %v4086
        %v4213 = vsel %vm3961, %v4197, %v4088
        %v4214 = vsel %vm3961, %v4198, %v4090
        %v4215 = vsel %vm3961, %v4199, %v4092
        %v4216 = vsel %vm3961, %v4200, %v4094
        %v4217 = vsel %vm3961, %v4201, %v4096
        %v4218 = vsel %vm3961, %v4202, %v4098
        %v4219 = vsel %vm3961, %v4203, %v4100
        %v4220 = vsel %vm3961, %v4204, %v4102
        %v4221 = vsel %vm3961, %v4205, %v4104
        %v4222 = vsel %vm3961, %v4206, %v4106
        %v4223 = vsel %vm3961, %v4207, %v4108
        %v4224 = vsel %vm3961, %v4208, %v4110
        %v4225 = vsel %vm3961, %v4209, %v4112
        %v4226 = vsel %vm3961, %v4210, %v4114
        %v4227 = vsel %vm3978, %v4211, %v4148
        %v4228 = vsel %vm3978, %v4212, %v4150
        %v4229 = vsel %vm3978, %v4213, %v4152
        %v4230 = vsel %vm3978, %v4214, %v4154
        %v4231 = vsel %vm3978, %v4215, %v4156
        %v4232 = vsel %vm3978, %v4216, %v4158
        %v4233 = vsel %vm3978, %v4217, %v4160
        %v4234 = vsel %vm3978, %v4218, %v4162
        %v4235 = vsel %vm3978, %v4219, %v4164
        %v4236 = vsel %vm3978, %v4220, %v4166
        %v4237 = vsel %vm3978, %v4221, %v4168
        %v4238 = vsel %vm3978, %v4222, %v4170
        %v4239 = vsel %vm3978, %v4223, %v4172
        %v4240 = vsel %vm3978, %v4224, %v4174
        %v4241 = vsel %vm3978, %v4225, %v4176
        %v4242 = vsel %vm3978, %v4226, %v4178
        %v4243 = vpack.c.bf16 %v4228, %v4227
        %v4244 = vpack.c.bf16 %v4230, %v4229
        %v4245 = vpack.c.bf16 %v4232, %v4231
        %v4246 = vpack.c.bf16 %v4234, %v4233
        %v4247 = vpack.c.bf16 %v4236, %v4235
        %v4248 = vpack.c.bf16 %v4238, %v4237
        %v4249 = vpack.c.bf16 %v4240, %v4239
        %v4250 = vpack.c.bf16 %v4242, %v4241
        %v4251 = vld [vmem:[%s9] sm:$0xf]
        %v4252 = vld [vmem:[%s9 + $0x4] sm:$0xf]
        %v4253 = vld [vmem:[%s9 + $0x8] sm:$0xf]
        %v4254 = vld [vmem:[%s9 + $0xc] sm:$0xf]
        %v4255 = vld [vmem:[%s9 + $0x10] sm:$0xf]
        %v4256 = vld [vmem:[%s9 + $0x14] sm:$0xf]
        %v4257 = vld [vmem:[%s9 + $0x18] sm:$0xf]
        %v4258 = vld [vmem:[%s9 + $0x1c] sm:$0xf]
        %v4259 = vld [vmem:[%s9 + $0x20] sm:$0xf]
        %v4260 = vld [vmem:[%s9 + $0x24] sm:$0xf]
        %v4261 = vld [vmem:[%s9 + $0x28] sm:$0xf]
        %v4262 = vld [vmem:[%s9 + $0x2c] sm:$0xf]
        %v4263 = vld [vmem:[%s9 + $0x30] sm:$0xf]
        %v4264 = vld [vmem:[%s9 + $0x34] sm:$0xf]
        %v4265 = vld [vmem:[%s9 + $0x38] sm:$0xf]
        %v4266 = vld [vmem:[%s9 + $0x3c] sm:$0xf]
        %v4267 = vld [vmem:[%s10] sm:$0x1]
        %v4269 = vperm.slane %v4267, 0
        %v4287 = vunpack.c.l.b16 %v4251
        %v4288 = vunpack.c.l.b16 %v4252
        %v4289 = vunpack.c.l.b16 %v4253
        %v4290 = vunpack.c.l.b16 %v4254
        %v4291 = vunpack.c.l.b16 %v4255
        %v4292 = vunpack.c.l.b16 %v4256
        %v4293 = vunpack.c.l.b16 %v4257
        %v4294 = vunpack.c.l.b16 %v4258
        %v4295 = vunpack.c.l.b16 %v4259
        %v4296 = vunpack.c.l.b16 %v4260
        %v4297 = vunpack.c.l.b16 %v4261
        %v4298 = vunpack.c.l.b16 %v4262
        %v4299 = vunpack.c.l.b16 %v4263
        %v4300 = vunpack.c.l.b16 %v4264
        %v4301 = vunpack.c.l.b16 %v4265
        %v4302 = vunpack.c.l.b16 %v4266
        %v4303 = vpack.c.b16 %v4288, %v4287
        %v4304 = vpack.c.b16 %v4290, %v4289
        %v4305 = vpack.c.b16 %v4292, %v4291
        %v4306 = vpack.c.b16 %v4294, %v4293
        %v4307 = vpack.c.b16 %v4296, %v4295
        %v4308 = vpack.c.b16 %v4298, %v4297
        %v4309 = vpack.c.b16 %v4300, %v4299
        %v4310 = vpack.c.b16 %v4302, %v4301
        %4319 = vmatpush.bf16.msra.mxu0 %v4310
        %4320 = vmatpush.bf16.msra.mxu0 %v4309
        %4321 = vmatpush.bf16.msra.mxu0 %v4308
        %4322 = vmatpush.bf16.msra.mxu0 %v4307
        %4323 = vmatpush.bf16.msra.mxu0 %v4306
        %4324 = vmatpush.bf16.msra.mxu0 %v4305
        %4325 = vmatpush.bf16.msra.mxu0 %v4304
        %4326 = vmatpush.bf16.msra.mxu0 %v4303
        %4327 = vmatmul.bf16.gmra.mxu0 %v3995
        %v4328 = vpop.f32.mrf.mxu0
        %v4329 = vadd.f32 %v4269, %v4328
        %v4330 = vpop.f32.mrf.mxu0
        %v4331 = vadd.f32 %v4269, %v4330
        %4332 = vmatmul.bf16.gmra.mxu0 %v3996
        %v4333 = vpop.f32.mrf.mxu0
        %v4334 = vadd.f32 %v4269, %v4333
        %v4335 = vpop.f32.mrf.mxu0
        %v4336 = vadd.f32 %v4269, %v4335
        %4337 = vmatmul.bf16.gmra.mxu0 %v3997
        %v4338 = vpop.f32.mrf.mxu0
        %v4339 = vadd.f32 %v4269, %v4338
        %v4340 = vpop.f32.mrf.mxu0
        %v4341 = vadd.f32 %v4269, %v4340
        %4342 = vmatmul.bf16.gmra.mxu0 %v3998
        %v4343 = vpop.f32.mrf.mxu0
        %v4344 = vadd.f32 %v4269, %v4343
        %v4345 = vpop.f32.mrf.mxu0
        %v4346 = vadd.f32 %v4269, %v4345
        %4347 = vmatmul.bf16.gmra.mxu0 %v3999
        %v4348 = vpop.f32.mrf.mxu0
        %v4349 = vadd.f32 %v4269, %v4348
        %v4350 = vpop.f32.mrf.mxu0
        %v4351 = vadd.f32 %v4269, %v4350
        %4352 = vmatmul.bf16.gmra.mxu0 %v4000
        %v4353 = vpop.f32.mrf.mxu0
        %v4354 = vadd.f32 %v4269, %v4353
        %v4355 = vpop.f32.mrf.mxu0
        %v4356 = vadd.f32 %v4269, %v4355
        %4357 = vmatmul.bf16.gmra.mxu0 %v4001
        %v4358 = vpop.f32.mrf.mxu0
        %v4359 = vadd.f32 %v4269, %v4358
        %v4360 = vpop.f32.mrf.mxu0
        %v4361 = vadd.f32 %v4269, %v4360
        %4362 = vmatmul.bf16.gmra.mxu0 %v4002
        %v4363 = vpop.f32.mrf.mxu0
        %v4364 = vadd.f32 %v4269, %v4363
        %v4365 = vpop.f32.mrf.mxu0
        %v4366 = vadd.f32 %v4269, %v4365
        %4367 = vdwg.mxu0
        %v4368 = vld [vmem:[%s11] sm:$0xf]
        %v4369 = vld [vmem:[%s11 + $0x4] sm:$0xf]
        %v4370 = vld [vmem:[%s11 + $0x8] sm:$0xf]
        %v4371 = vld [vmem:[%s11 + $0xc] sm:$0xf]
        %v4372 = vld [vmem:[%s11 + $0x10] sm:$0xf]
        %v4373 = vld [vmem:[%s11 + $0x14] sm:$0xf]
        %v4374 = vld [vmem:[%s11 + $0x18] sm:$0xf]
        %v4375 = vld [vmem:[%s11 + $0x1c] sm:$0xf]
        %v4376 = vld [vmem:[%s11 + $0x20] sm:$0xf]
        %v4377 = vld [vmem:[%s11 + $0x24] sm:$0xf]
        %v4378 = vld [vmem:[%s11 + $0x28] sm:$0xf]
        %v4379 = vld [vmem:[%s11 + $0x2c] sm:$0xf]
        %v4380 = vld [vmem:[%s11 + $0x30] sm:$0xf]
        %v4381 = vld [vmem:[%s11 + $0x34] sm:$0xf]
        %v4382 = vld [vmem:[%s11 + $0x38] sm:$0xf]
        %v4383 = vld [vmem:[%s11 + $0x3c] sm:$0xf]
        %v4384 = vld [vmem:[%s12] sm:$0x1]
        %v4386 = vperm.slane %v4384, 0
        %v4404 = vunpack.c.l.b16 %v4368
        %v4405 = vunpack.c.l.b16 %v4369
        %v4406 = vunpack.c.l.b16 %v4370
        %v4407 = vunpack.c.l.b16 %v4371
        %v4408 = vunpack.c.l.b16 %v4372
        %v4409 = vunpack.c.l.b16 %v4373
        %v4410 = vunpack.c.l.b16 %v4374
        %v4411 = vunpack.c.l.b16 %v4375
        %v4412 = vunpack.c.l.b16 %v4376
        %v4413 = vunpack.c.l.b16 %v4377
        %v4414 = vunpack.c.l.b16 %v4378
        %v4415 = vunpack.c.l.b16 %v4379
        %v4416 = vunpack.c.l.b16 %v4380
        %v4417 = vunpack.c.l.b16 %v4381
        %v4418 = vunpack.c.l.b16 %v4382
        %v4419 = vunpack.c.l.b16 %v4383
        %v4420 = vpack.c.b16 %v4405, %v4404
        %v4421 = vpack.c.b16 %v4407, %v4406
        %v4422 = vpack.c.b16 %v4409, %v4408
        %v4423 = vpack.c.b16 %v4411, %v4410
        %v4424 = vpack.c.b16 %v4413, %v4412
        %v4425 = vpack.c.b16 %v4415, %v4414
        %v4426 = vpack.c.b16 %v4417, %v4416
        %v4427 = vpack.c.b16 %v4419, %v4418
        %4436 = vmatpush.bf16.msra.mxu0 %v4427
        %4437 = vmatpush.bf16.msra.mxu0 %v4426
        %4438 = vmatpush.bf16.msra.mxu0 %v4425
        %4439 = vmatpush.bf16.msra.mxu0 %v4424
        %4440 = vmatpush.bf16.msra.mxu0 %v4423
        %4441 = vmatpush.bf16.msra.mxu0 %v4422
        %4442 = vmatpush.bf16.msra.mxu0 %v4421
        %4443 = vmatpush.bf16.msra.mxu0 %v4420
        %4444 = vmatmul.bf16.gmra.mxu0 %v4243
        %v4445 = vpop.f32.mrf.mxu0
        %v4446 = vadd.f32 %v4386, %v4445
        %v4447 = vpop.f32.mrf.mxu0
        %v4448 = vadd.f32 %v4386, %v4447
        %4449 = vmatmul.bf16.gmra.mxu0 %v4244
        %v4450 = vpop.f32.mrf.mxu0
        %v4451 = vadd.f32 %v4386, %v4450
        %v4452 = vpop.f32.mrf.mxu0
        %v4453 = vadd.f32 %v4386, %v4452
        %4454 = vmatmul.bf16.gmra.mxu0 %v4245
        %v4455 = vpop.f32.mrf.mxu0
        %v4456 = vadd.f32 %v4386, %v4455
        %v4457 = vpop.f32.mrf.mxu0
        %v4458 = vadd.f32 %v4386, %v4457
        %4459 = vmatmul.bf16.gmra.mxu0 %v4246
        %v4460 = vpop.f32.mrf.mxu0
        %v4461 = vadd.f32 %v4386, %v4460
        %v4462 = vpop.f32.mrf.mxu0
        %v4463 = vadd.f32 %v4386, %v4462
        %4464 = vmatmul.bf16.gmra.mxu0 %v4247
        %v4465 = vpop.f32.mrf.mxu0
        %v4466 = vadd.f32 %v4386, %v4465
        %v4467 = vpop.f32.mrf.mxu0
        %v4468 = vadd.f32 %v4386, %v4467
        %4469 = vmatmul.bf16.gmra.mxu0 %v4248
        %v4470 = vpop.f32.mrf.mxu0
        %v4471 = vadd.f32 %v4386, %v4470
        %v4472 = vpop.f32.mrf.mxu0
        %v4473 = vadd.f32 %v4386, %v4472
        %4474 = vmatmul.bf16.gmra.mxu0 %v4249
        %v4475 = vpop.f32.mrf.mxu0
        %v4476 = vadd.f32 %v4386, %v4475
        %v4477 = vpop.f32.mrf.mxu0
        %v4478 = vadd.f32 %v4386, %v4477
        %4479 = vmatmul.bf16.gmra.mxu0 %v4250
        %v4480 = vpop.f32.mrf.mxu0
        %v4481 = vadd.f32 %v4386, %v4480
        %v4482 = vpop.f32.mrf.mxu0
        %v4483 = vadd.f32 %v4386, %v4482
        %4484 = vdwg.mxu0
        %4485 = vst [vmem:[%s511] sm:$0xff] %v4329
        %4486 = vst [vmem:[%s511 + $0x8] sm:$0xff] %v4331
        %4487 = vst [vmem:[%s511 + $0x10] sm:$0xff] %v4334
        %4488 = vst [vmem:[%s511 + $0x18] sm:$0xff] %v4336
        %4489 = vst [vmem:[%s511 + $0x20] sm:$0xff] %v4339
        %4490 = vst [vmem:[%s511 + $0x28] sm:$0xff] %v4341
        %4491 = vst [vmem:[%s511 + $0x30] sm:$0xff] %v4344
        %4492 = vst [vmem:[%s511 + $0x38] sm:$0xff] %v4346
        %4493 = vst [vmem:[%s511 + $0x40] sm:$0xff] %v4349
        %4494 = vst [vmem:[%s511 + $0x48] sm:$0xff] %v4351
        %4495 = vst [vmem:[%s511 + $0x50] sm:$0xff] %v4354
        %4496 = vst [vmem:[%s511 + $0x58] sm:$0xff] %v4356
        %4497 = vst [vmem:[%s511 + $0x60] sm:$0xff] %v4359
        %4498 = vst [vmem:[%s511 + $0x68] sm:$0xff] %v4361
        %4499 = vst [vmem:[%s511 + $0x70] sm:$0xff] %v4364
        %4500 = vst [vmem:[%s511 + $0x78] sm:$0xff] %v4366
        %4501 = vst [vmem:[%s518] sm:$0xff] %v4446
        %4502 = vst [vmem:[%s518 + $0x8] sm:$0xff] %v4448
        %4503 = vst [vmem:[%s518 + $0x10] sm:$0xff] %v4451
        %4504 = vst [vmem:[%s518 + $0x18] sm:$0xff] %v4453
        %4505 = vst [vmem:[%s518 + $0x20] sm:$0xff] %v4456
        %4506 = vst [vmem:[%s518 + $0x28] sm:$0xff] %v4458
        %4507 = vst [vmem:[%s518 + $0x30] sm:$0xff] %v4461
        %4508 = vst [vmem:[%s518 + $0x38] sm:$0xff] %v4463
        %4509 = vst [vmem:[%s518 + $0x40] sm:$0xff] %v4466
        %4510 = vst [vmem:[%s518 + $0x48] sm:$0xff] %v4468
        %4511 = vst [vmem:[%s518 + $0x50] sm:$0xff] %v4471
        %4512 = vst [vmem:[%s518 + $0x58] sm:$0xff] %v4473
        %4513 = vst [vmem:[%s518 + $0x60] sm:$0xff] %v4476
        %4514 = vst [vmem:[%s518 + $0x68] sm:$0xff] %v4478
        %4515 = vst [vmem:[%s518 + $0x70] sm:$0xff] %v4481
        %4516 = vst [vmem:[%s518 + $0x78] sm:$0xff] %v4483
        %s4517 = sand.u32 %s335, 1
        %s4518 = scalar_lea.sflag [#allocation4], %s4517
        %s4519 = sand.u32 %s335, 1
        %s4520 = smul.addr %s4519, 128
        %s4521 = scalar_lea.vmem [#allocation3], %s4520
        %s4522 = sand.u32 %s361, 1
        %s4523 = scalar_lea.sflag [#allocation6], %s4522
        %s4524 = sand.u32 %s361, 1
        %s4525 = smul.addr %s4524, 128
        %s4526 = scalar_lea.vmem [#allocation5], %s4525
        // Predicated region
        $region73: #{bi_multi_head_attention_forward.3} parent=71 // pred_check
          %p4527 = pneg %p345
        $region74: #{bi_multi_head_attention_forward.3} parent=71 // pred_check_branch
          %4529 = sbr.rel (%p4527) target = $region76
        $region75: #{bi_multi_head_attention_forward.3} parent=71 // pred_region
          %4531 = vsyncadd %s4518, 0
          %s4532 = smul.addr %s34, 16
          %s4533 = smul.addr %s4532, 8
          %s4534 = scalar_lea.hbm %s13, %s4533
          %s4535 = sshll.u32 %s4521, 4
          %s4536 = int_to_ptr.vmem [resolvable:$true] %s4535
          %s4537 = sshll.u32 %s4534, 4
          %s4538 = int_to_ptr.hbm [resolvable:$true] %s4537
          %4543 = dma.vmem_to_hbm [thread:$0]  %s4536, 2048, %s4538, %s4518, 128, 128, 8
        $region76: #{bi_multi_head_attention_forward.3} parent=71 // pred_fallthru
          _
        // Predicated region
        $region77: #{bi_multi_head_attention_forward.3} parent=71 // pred_check
          %p4544 = pneg %p371
        $region78: #{bi_multi_head_attention_forward.3} parent=71 // pred_check_branch
          %4546 = sbr.rel (%p4544) target = $region80
        $region79: #{bi_multi_head_attention_forward.3} parent=71 // pred_region
          %4548 = vsyncadd %s4523, 0
          %s4549 = smul.addr %s34, 16
          %s4550 = smul.addr %s4549, 8
          %s4551 = scalar_lea.hbm %s14, %s4550
          %s4552 = sshll.u32 %s4526, 4
          %s4553 = int_to_ptr.vmem [resolvable:$true] %s4552
          %s4554 = sshll.u32 %s4551, 4
          %s4555 = int_to_ptr.hbm [resolvable:$true] %s4554
          %4560 = dma.vmem_to_hbm [thread:$0]  %s4553, 2048, %s4555, %s4523, 128, 128, 8
        $region80: #{bi_multi_head_attention_forward.3} parent=71 // pred_fallthru
          _
      $region72: #{bi_multi_head_attention_forward.3} parent=5 // pred_fallthru
        _
      %p4561 = scmp.le.s32.totalorder 2, %s29
      // Predicated region
      $region81: #{bi_multi_head_attention_forward.3} parent=5 // pred_check
        %p4562 = pneg %p4561
      $region82: #{bi_multi_head_attention_forward.3} parent=5 // pred_check_branch
        %4564 = sbr.rel (%p4562) target = $region84
      $region83: #{bi_multi_head_attention_forward.3} parent=5 // pred_region
        %s4565 = ssub.s32 %s29, 2
        // Predicated region
        $region85: #{bi_multi_head_attention_forward.3} parent=83 // pred_check
          %p4566 = pneg %p351
        $region86: #{bi_multi_head_attention_forward.3} parent=83 // pred_check_branch
          %4568 = sbr.rel (%p4566) target = $region88
        $region87: #{bi_multi_head_attention_forward.3} parent=83 // pred_region
          %s4569 = sand.u32 %s336, 1
          %s4570 = scalar_lea.sflag [#allocation4], %s4569
          %s4571 = sand.u32 %s336, 1
          %s4572 = smul.addr %s4571, 128
          %s4573 = scalar_lea.vmem [#allocation3], %s4572
          %4575 = dma.done %s4570, 2048
        $region88: #{bi_multi_head_attention_forward.3} parent=83 // pred_fallthru
          _
        // Predicated region
        $region89: #{bi_multi_head_attention_forward.3} parent=83 // pred_check
          %p4576 = pneg %p377
        $region90: #{bi_multi_head_attention_forward.3} parent=83 // pred_check_branch
          %4578 = sbr.rel (%p4576) target = $region92
        $region91: #{bi_multi_head_attention_forward.3} parent=83 // pred_region
          %s4579 = sand.u32 %s362, 1
          %s4580 = scalar_lea.sflag [#allocation6], %s4579
          %s4581 = sand.u32 %s362, 1
          %s4582 = smul.addr %s4581, 128
          %s4583 = scalar_lea.vmem [#allocation5], %s4582
          %4585 = dma.done %s4580, 2048
        $region92: #{bi_multi_head_attention_forward.3} parent=83 // pred_fallthru
          _
      $region84: #{bi_multi_head_attention_forward.3} parent=5 // pred_fallthru
        _
    $region6: #{bi_multi_head_attention_forward.3} parent=1 // loop_footer
      %s33 = sadd.s32 1, %s29
    $region7: #{bi_multi_head_attention_forward.3} parent=1 // loop_footer_branch
      %28 = sbr.rel target = $region3
    $region8: #{bi_multi_head_attention_forward.3} parent=1 // loop_exit
      _
    %4586 = vsyncpa [#allocation4], 1
    %s4587 = scalar_lea.sflag [#allocation4], 1
    %4588 = vsyncpa %s4587, 1
    %4589 = vsyncpa [#allocation6], 1
    %s4590 = scalar_lea.sflag [#allocation6], 1
    %4591 = vsyncpa %s4590, 1

</llo_original>
